<compile_context>
chip_gen: v7x
topology: tpu7x:2x2x1
jax: 0.10.0
libtpu: 0.0.40
codegen_flags: <defaults>
</compile_context>

<pallas_src>
import functools

import jax
import jax.numpy as jnp
from jax.experimental import pallas as pl
from jax.experimental.pallas import tpu as pltpu

# ----------------------------- model hyper-params ---------------------------
D_MODEL = 32
NHEAD = 4
HEAD_DIM = D_MODEL // NHEAD
DIM_FF = 64
EPS = 1e-5          # nn.LayerNorm default eps


# --------------------------------- the kernel -------------------------------
def decoder_layer_kernel(tq_ref, mp_ref, bias_ref, w_ref, out_ref, *, bt, L, S):
    E, H, DH, F = D_MODEL, NHEAD, HEAD_DIM, DIM_FF
    f32, bf16 = jnp.float32, jnp.bfloat16

    # ---- parameter views (static slices of the packed slabs, loaded once) ----
    g1, b1 = bias_ref[0:1, :E], bias_ref[1:2, :E]
    g2, b2 = bias_ref[2:3, :E], bias_ref[3:4, :E]
    g3, b3 = bias_ref[4:5, :E], bias_ref[5:6, :E]
    bff2 = bias_ref[6:7, :E]
    bff1 = bias_ref[7:8, :F]

    # lanes sliced BEFORE the dots -> no post-dot padded-lane slices
    wqk1 = w_ref[0 * E:1 * E, :2 * E]      # (E, 2E)  [scale*Wq1^T | Wk1^T]
    wvo1 = w_ref[1 * E:2 * E, :H * E]      # (E, H*E) folded Wv*Wo (self-attn)
    wq2 = w_ref[2 * E:3 * E, :E]           # (E, E)   scale*Wq2^T
    wk2 = w_ref[3 * E:4 * E, :E]           # (E, E)   Wk2^T
    wvo2 = w_ref[4 * E:5 * E, :H * E]      # (E, H*E) folded Wv*Wo (cross-attn)
    w1t = w_ref[5 * E:6 * E, :F]           # (E, F)   W_ff1^T
    w2t = w_ref[6 * E:6 * E + F, :E]       # (F, E)   W_ff2^T

    # ---- merged inputs (one DMA each): lanes [0:E]=data, [E:2E]=pos embed ----
    tq = tq_ref[...]                        # (bt*L, 2E) f32
    mp = mp_ref[...]                        # (bt*S, 2E) f32
    tgt, qpos = tq[:, :E], tq[:, E:2 * E]
    mem, mpos = mp[:, :E], mp[:, E:2 * E]

    def layernorm(x, g, b):
        mu = jnp.mean(x, axis=-1, keepdims=True)
        xc = x - mu
        var = jnp.mean(xc * xc, axis=-1, keepdims=True)
        return xc * jax.lax.rsqrt(var + EPS) * g + b

    def attend(q, k, vo, Lq, Lk):
        """Per-batch / per-head attention; out-proj is folded into vo.

        q: (bt*Lq, E) f32 (1/sqrt(DH) already folded into Wq)
        k: (bt*Lk, E) f32, vo: (bt*Lk, H*E) f32  ->  (bt*Lq, E) f32
        """
        qb, kb, vob = q.astype(bf16), k.astype(bf16), vo.astype(bf16)
        outs = []
        for b in range(bt):
            qs = qb[b * Lq:(b + 1) * Lq]
            ks = kb[b * Lk:(b + 1) * Lk]
            vs = vob[b * Lk:(b + 1) * Lk]
            acc = jnp.zeros((Lq, E), f32)
            for h in range(H):
                s = jax.lax.dot_general(
                    qs[:, h * DH:(h + 1) * DH], ks[:, h * DH:(h + 1) * DH],
                    (((1,), (1,)), ((), ())), preferred_element_type=f32)
                m = jnp.max(s, axis=-1, keepdims=True)          # per-head max
                p = jnp.exp(s - m)
                inv = pl.reciprocal(jnp.sum(p, axis=-1, keepdims=True),
                                    approx=True)
                oh = jnp.dot(p.astype(bf16), vs[:, h * E:(h + 1) * E],
                             preferred_element_type=f32)
                acc = acc + oh * inv
            outs.append(acc)
        return jnp.concatenate(outs, axis=0)                    # (bt*Lq, E)

    # ---------------- self-attention block (dropout1 == identity) ----------------
    t2 = layernorm(tgt, g1, b1)                                  # (bt*L, E)
    qk_in = (t2 + qpos).astype(bf16)
    qkp = jnp.dot(qk_in, wqk1, preferred_element_type=f32)       # fused [Q|K]
    vo1 = jnp.dot(t2.astype(bf16), wvo1, preferred_element_type=f32)
    x = tgt + attend(qkp[:, :E], qkp[:, E:2 * E], vo1, L, L)

    # ---------------- cross-attention block (dropout2 == identity) ---------------
    t2 = layernorm(x, g2, b2)
    q2 = jnp.dot((t2 + qpos).astype(bf16), wq2, preferred_element_type=f32)
    k2 = jnp.dot((mem + mpos).astype(bf16), wk2, preferred_element_type=f32)
    vo2 = jnp.dot(mem.astype(bf16), wvo2, preferred_element_type=f32)
    x = x + attend(q2, k2, vo2, L, S)

    # ---------------- feed-forward block (relu; dropouts == identity) ------------
    t2 = layernorm(x, g3, b3)
    hmid = jnp.dot(t2.astype(bf16), w1t, preferred_element_type=f32)   # (bt*L, F)
    hmid = jnp.maximum(hmid + bff1, 0.0)
    y = jnp.dot(hmid.astype(bf16), w2t, preferred_element_type=f32)    # (bt*L, E)

    out_ref[...] = x + y + bff2                      # one contiguous store


# --------------------------------- wrapper ----------------------------------
def _num_grid_steps(n):
    """1 grid step on single-TC chips (v5e/v6e); 2 'parallel' steps on v7x."""
    try:
        kind = jax.devices()[0].device_kind.lower()
    except Exception:
        kind = ""
    if "v7" in kind and n % 2 == 0 and n >= 2:
        return 2
    return 1


def _pack_params(params):
    """Pre-transpose / fold / pack all parameters into two slabs."""
    E, H, DH, F = D_MODEL, NHEAD, HEAD_DIM, DIM_FF
    scale = 1.0 / (DH ** 0.5)

    def pad_lanes(w, width=128):
        return jnp.pad(w, ((0, 0), (0, width - w.shape[1])))

    def fold_vo(w_in, w_out):
        # column block h = Wv_h^T @ Wo_h^T, so v @ block_h == (v @ Wv_h^T) @ Wo_h^T
        blocks = []
        for h in range(H):
            wv_h = w_in[2 * E + h * DH:2 * E + (h + 1) * DH, :]   # (DH, E)
            wo_h = w_out[:, h * DH:(h + 1) * DH]                  # (E, DH)
            blocks.append(wv_h.T @ wo_h.T)                        # (E, E)
        return jnp.concatenate(blocks, axis=1)                    # (E, H*E)

    w_in1, w_out1 = params["w_in1"], params["w_out1"]
    w_in2, w_out2 = params["w_in2"], params["w_out2"]
    # 1/sqrt(head_dim) folded into the Q projections -> no in-kernel scaling
    wqk1 = jnp.concatenate([scale * w_in1[:E].T, w_in1[E:2 * E].T], axis=1)

    w_slab = jnp.concatenate([
        pad_lanes(wqk1),
        pad_lanes(fold_vo(w_in1, w_out1)),
        pad_lanes(scale * w_in2[:E].T),
        pad_lanes(w_in2[E:2 * E].T),
        pad_lanes(fold_vo(w_in2, w_out2)),
        pad_lanes(params["w_ff1"].T),
        pad_lanes(params["w_ff2"].T),
    ], axis=0).astype(jnp.bfloat16)                               # (6E+F, 128)

    bias = jnp.zeros((8, 128), jnp.float32)
    for row, name in enumerate(["g1", "b1", "g2", "b2", "g3", "b3", "b_ff2"]):
        bias = bias.at[row, :E].set(params[name].reshape(-1))
    bias = bias.at[7, :DIM_FF].set(params["b_ff1"].reshape(-1))
    return bias, w_slab


def transformer_decoder_layer(tgt, memory, query_pos, pos, params):
    """tgt/query_pos: (N, L, E); memory/pos: (N, S, E)."""
    N, L, E = tgt.shape
    _, S, _ = memory.shape
    assert E == D_MODEL

    bias_slab, w_slab = _pack_params(params)

    steps = _num_grid_steps(N)
    bt = N // steps

    # Merge the positional embeddings into the data tensors (2 DMAs/step
    # instead of 4) and present them as 2-D row slabs.
    tq = jnp.concatenate([tgt, query_pos], axis=-1).reshape(N * L, 2 * E)
    mp = jnp.concatenate([memory, pos], axis=-1).reshape(N * S, 2 * E)

    kernel = functools.partial(decoder_layer_kernel, bt=bt, L=L, S=S)

    out_flat = pl.pallas_call(
        kernel,
        out_shape=jax.ShapeDtypeStruct((N * L, E), jnp.float32),
        grid=(steps,),
        in_specs=[
            pl.BlockSpec((bt * L, 2 * E), lambda i: (i, 0)),
            pl.BlockSpec((bt * S, 2 * E), lambda i: (i, 0)),
            pl.BlockSpec(bias_slab.shape, lambda i: (0, 0)),
            pl.BlockSpec(w_slab.shape, lambda i: (0, 0)),
        ],
        out_specs=pl.BlockSpec((bt * L, E), lambda i: (i, 0)),
        compiler_params=pltpu.CompilerParams(
            dimension_semantics=("parallel",)),
    )(tq, mp, bias_slab, w_slab)
    return out_flat.reshape(N, L, E)


# ------------------------- pure-JAX reference (check) ------------------------
def _ref_ln(x, g, b):
    mu = jnp.mean(x, axis=-1, keepdims=True)
    var = jnp.mean((x - mu) ** 2, axis=-1, keepdims=True)
    return (x - mu) / jnp.sqrt(var + EPS) * g + b


def _ref_mha(q, k, v, w_in, w_out):
    E = D_MODEL
    Q = q @ w_in[:E].T
    K = k @ w_in[E:2 * E].T
    V = v @ w_in[2 * E:].T
    N, Lq, _ = Q.shape
    Lk = K.shape[1]
    Qh = Q.reshape(N, Lq, NHEAD, HEAD_DIM).transpose(0, 2, 1, 3)
    Kh = K.reshape(N, Lk, NHEAD, HEAD_DIM).transpose(0, 2, 1, 3)
    Vh = V.reshape(N, Lk, NHEAD, HEAD_DIM).transpose(0, 2, 1, 3)
    sc = jnp.einsum("nhqd,nhkd->nhqk", Qh, Kh) / (HEAD_DIM ** 0.5)
    p = jax.nn.softmax(sc, axis=-1)
    o = jnp.einsum("nhqk,nhkd->nhqd", p, Vh)
    o = o.transpose(0, 2, 1, 3).reshape(N, Lq, E)
    return o @ w_out.T


def reference(tgt, memory, qpos, pos, P_):
    t2 = _ref_ln(tgt, P_["g1"], P_["b1"])
    qk = t2 + qpos
    x = tgt + _ref_mha(qk, qk, t2, P_["w_in1"], P_["w_out1"])
    t2 = _ref_ln(x, P_["g2"], P_["b2"])
    x = x + _ref_mha(t2 + qpos, memory + pos, memory, P_["w_in2"], P_["w_out2"])
    t2 = _ref_ln(x, P_["g3"], P_["b3"])
    h = jnp.maximum(t2 @ P_["w_ff1"].T + P_["b_ff1"], 0.0)
    return x + (h @ P_["w_ff2"].T + P_["b_ff2"])


# ----------------------------------- main ------------------------------------
if __name__ == "__main__":
    key = jax.random.PRNGKey(0)
    N, L, S, E = 2, 8, 16, D_MODEL

    ks = jax.random.split(key, 12)
    tgt = jax.random.normal(ks[0], (N, L, E), jnp.float32)
    memory = jax.random.normal(ks[1], (N, S, E), jnp.float32)
    query_pos = 0.1 * jax.random.normal(ks[2], (N, L, E), jnp.float32)
    pos = 0.1 * jax.random.normal(ks[3], (N, S, E), jnp.float32)

    params = {
        # LayerNorm affine params, kept (1, E)
        "g1": jnp.ones((1, E), jnp.float32),  "b1": jnp.zeros((1, E), jnp.float32),
        "g2": jnp.ones((1, E), jnp.float32),  "b2": jnp.zeros((1, E), jnp.float32),
        "g3": jnp.ones((1, E), jnp.float32),  "b3": jnp.zeros((1, E), jnp.float32),
        # self-attention in_proj (3E, E) and out_proj (E, E), bias=False
        "w_in1": 0.1 * jax.random.normal(ks[4], (3 * E, E), jnp.float32),
        "w_out1": 0.1 * jax.random.normal(ks[5], (E, E), jnp.float32),
        # cross-attention
        "w_in2": 0.1 * jax.random.normal(ks[6], (3 * E, E), jnp.float32),
        "w_out2": 0.1 * jax.random.normal(ks[7], (E, E), jnp.float32),
        # feed-forward: linear1 (F, E)+(F,), linear2 (E, F)+(E,)
        "w_ff1": 0.1 * jax.random.normal(ks[8], (DIM_FF, E), jnp.float32),
        "b_ff1": 0.01 * jax.random.normal(ks[9], (1, DIM_FF), jnp.float32),
        "w_ff2": 0.1 * jax.random.normal(ks[10], (E, DIM_FF), jnp.float32),
        "b_ff2": 0.01 * jax.random.normal(ks[11], (1, E), jnp.float32),
    }

    out = transformer_decoder_layer(tgt, memory, query_pos, pos, params)
    out = jax.block_until_ready(out)

    ref = reference(tgt, memory, query_pos, pos, params)
    assert out.shape == (N, L, E)
    # bf16 MXU operands + folded Wv*Wo + approx reciprocal -> looser tolerance
    # vs the f32 reference (accepted per the review's correctness note).
    max_err = float(jnp.max(jnp.abs(out - ref)))
    assert jnp.allclose(out, ref, atol=5e-2, rtol=5e-2), (
        f"mismatch vs reference; max abs err = {max_err}")

    print("KERNEL_OK")
</pallas_src>

<mosaic_0001>
module attributes {stable_mosaic.version = 11 : i64} {
  func.func @decoder_layer_kernel(%arg0: i32, %arg1: memref<16x64xf32, #tpu.memory_space<vmem>>, %arg2: memref<32x64xf32, #tpu.memory_space<vmem>>, %arg3: memref<8x128xf32, #tpu.memory_space<vmem>>, %arg4: memref<256x128xbf16, #tpu.memory_space<vmem>>, %arg5: memref<16x32xf32, #tpu.memory_space<vmem>>) attributes {dimension_semantics = [#tpu.dimension_semantics<parallel>], iteration_bounds = array<i64: 1>, scalar_prefetch = 0 : i64, scratch_operands = 0 : i64, tpu.core_type = #tpu.core_type<tc>, window_params = [{transform_indices = @transform_0, window_bounds = array<i64: 16, 64>}, {transform_indices = @transform_1, window_bounds = array<i64: 32, 64>}, {pipeline_mode = #tpu.pipeline_mode<synchronous>, transform_indices = @transform_2, window_bounds = array<i64: 8, 128>}, {pipeline_mode = #tpu.pipeline_mode<synchronous>, transform_indices = @transform_3, window_bounds = array<i64: 256, 128>}, {transform_indices = @transform_4, window_bounds = array<i64: 16, 32>}]} {
    %c0 = arith.constant 0 : index
    %c0_0 = arith.constant 0 : index
    %0 = vector.load %arg3[%c0, %c0_0] : memref<8x128xf32, #tpu.memory_space<vmem>>, vector<1x32xf32>
    %c1 = arith.constant 1 : index
    %c0_1 = arith.constant 0 : index
    %1 = vector.load %arg3[%c1, %c0_1] : memref<8x128xf32, #tpu.memory_space<vmem>>, vector<1x32xf32>
    %c2 = arith.constant 2 : index
    %c0_2 = arith.constant 0 : index
    %2 = vector.load %arg3[%c2, %c0_2] : memref<8x128xf32, #tpu.memory_space<vmem>>, vector<1x32xf32>
    %c3 = arith.constant 3 : index
    %c0_3 = arith.constant 0 : index
    %3 = vector.load %arg3[%c3, %c0_3] : memref<8x128xf32, #tpu.memory_space<vmem>>, vector<1x32xf32>
    %c4 = arith.constant 4 : index
    %c0_4 = arith.constant 0 : index
    %4 = vector.load %arg3[%c4, %c0_4] : memref<8x128xf32, #tpu.memory_space<vmem>>, vector<1x32xf32>
    %c5 = arith.constant 5 : index
    %c0_5 = arith.constant 0 : index
    %5 = vector.load %arg3[%c5, %c0_5] : memref<8x128xf32, #tpu.memory_space<vmem>>, vector<1x32xf32>
    %c6 = arith.constant 6 : index
    %c0_6 = arith.constant 0 : index
    %6 = vector.load %arg3[%c6, %c0_6] : memref<8x128xf32, #tpu.memory_space<vmem>>, vector<1x32xf32>
    %c7 = arith.constant 7 : index
    %c0_7 = arith.constant 0 : index
    %7 = vector.load %arg3[%c7, %c0_7] : memref<8x128xf32, #tpu.memory_space<vmem>>, vector<1x64xf32>
    %c0_8 = arith.constant 0 : index
    %c0_9 = arith.constant 0 : index
    %8 = vector.load %arg4[%c0_8, %c0_9] : memref<256x128xbf16, #tpu.memory_space<vmem>>, vector<32x64xbf16>
    %c32 = arith.constant 32 : index
    %c0_10 = arith.constant 0 : index
    %9 = vector.load %arg4[%c32, %c0_10] : memref<256x128xbf16, #tpu.memory_space<vmem>>, vector<32x128xbf16>
    %c64 = arith.constant 64 : index
    %c0_11 = arith.constant 0 : index
    %10 = vector.load %arg4[%c64, %c0_11] : memref<256x128xbf16, #tpu.memory_space<vmem>>, vector<32x32xbf16>
    %c96 = arith.constant 96 : index
    %c0_12 = arith.constant 0 : index
    %11 = vector.load %arg4[%c96, %c0_12] : memref<256x128xbf16, #tpu.memory_space<vmem>>, vector<32x32xbf16>
    %c128 = arith.constant 128 : index
    %c0_13 = arith.constant 0 : index
    %12 = vector.load %arg4[%c128, %c0_13] : memref<256x128xbf16, #tpu.memory_space<vmem>>, vector<32x128xbf16>
    %c160 = arith.constant 160 : index
    %c0_14 = arith.constant 0 : index
    %13 = vector.load %arg4[%c160, %c0_14] : memref<256x128xbf16, #tpu.memory_space<vmem>>, vector<32x64xbf16>
    %c192 = arith.constant 192 : index
    %c0_15 = arith.constant 0 : index
    %14 = vector.load %arg4[%c192, %c0_15] : memref<256x128xbf16, #tpu.memory_space<vmem>>, vector<64x32xbf16>
    %c0_16 = arith.constant 0 : index
    %c0_17 = arith.constant 0 : index
    %15 = vector.load %arg1[%c0_16, %c0_17] : memref<16x64xf32, #tpu.memory_space<vmem>>, vector<16x64xf32>
    %c0_18 = arith.constant 0 : index
    %c0_19 = arith.constant 0 : index
    %16 = vector.load %arg2[%c0_18, %c0_19] : memref<32x64xf32, #tpu.memory_space<vmem>>, vector<32x64xf32>
    %17 = vector.extract_strided_slice %15 {offsets = [0, 0], sizes = [16, 32], strides = [1, 1]} : vector<16x64xf32> to vector<16x32xf32>
    %18 = vector.extract_strided_slice %15 {offsets = [0, 32], sizes = [16, 32], strides = [1, 1]} : vector<16x64xf32> to vector<16x32xf32>
    %19 = vector.extract_strided_slice %16 {offsets = [0, 0], sizes = [32, 32], strides = [1, 1]} : vector<32x64xf32> to vector<32x32xf32>
    %20 = vector.extract_strided_slice %16 {offsets = [0, 32], sizes = [32, 32], strides = [1, 1]} : vector<32x64xf32> to vector<32x32xf32>
    %cst = arith.constant dense<0.000000e+00> : vector<16xf32>
    %21 = vector.multi_reduction <add>, %17, %cst [1] : vector<16x32xf32> to vector<16xf32>
    %22 = vector.shape_cast %21 : vector<16xf32> to vector<16x1xf32>
    %cst_20 = arith.constant 3.200000e+01 : f32
    %23 = vector.broadcast %cst_20 : f32 to vector<16x1xf32>
    %24 = arith.divf %22, %23 : vector<16x1xf32>
    %25 = vector.broadcast %24 : vector<16x1xf32> to vector<16x32xf32>
    %26 = arith.subf %17, %25 : vector<16x32xf32>
    %27 = arith.mulf %26, %26 : vector<16x32xf32>
    %cst_21 = arith.constant dense<0.000000e+00> : vector<16xf32>
    %28 = vector.multi_reduction <add>, %27, %cst_21 [1] : vector<16x32xf32> to vector<16xf32>
    %29 = vector.shape_cast %28 : vector<16xf32> to vector<16x1xf32>
    %cst_22 = arith.constant 3.200000e+01 : f32
    %30 = vector.broadcast %cst_22 : f32 to vector<16x1xf32>
    %31 = arith.divf %29, %30 : vector<16x1xf32>
    %cst_23 = arith.constant 9.99999974E-6 : f32
    %32 = vector.broadcast %cst_23 : f32 to vector<16x1xf32>
    %33 = arith.addf %31, %32 : vector<16x1xf32>
    %34 = math.rsqrt %33 : vector<16x1xf32>
    %35 = vector.broadcast %34 : vector<16x1xf32> to vector<16x32xf32>
    %36 = arith.mulf %26, %35 : vector<16x32xf32>
    %37 = vector.broadcast %0 : vector<1x32xf32> to vector<16x32xf32>
    %38 = arith.mulf %36, %37 : vector<16x32xf32>
    %39 = vector.broadcast %1 : vector<1x32xf32> to vector<16x32xf32>
    %40 = arith.addf %38, %39 : vector<16x32xf32>
    %41 = arith.addf %40, %18 : vector<16x32xf32>
    %42 = arith.truncf %41 : vector<16x32xf32> to vector<16x32xbf16>
    %cst_24 = arith.constant dense<0.000000e+00> : vector<16x64xf32>
    %43 = tpu.matmul %42, %8, %cst_24 {dimension_numbers = #tpu.dot_dimension_numbers<[1], [0], [0], [1], [0, 0, 1, 1], [], []>} : vector<16x32xbf16>, vector<32x64xbf16>, vector<16x64xf32> -> vector<16x64xf32>
    %44 = arith.truncf %40 : vector<16x32xf32> to vector<16x32xbf16>
    %cst_25 = arith.constant dense<0.000000e+00> : vector<16x128xf32>
    %45 = tpu.matmul %44, %9, %cst_25 {dimension_numbers = #tpu.dot_dimension_numbers<[1], [0], [0], [1], [0, 0, 1, 1], [], []>} : vector<16x32xbf16>, vector<32x128xbf16>, vector<16x128xf32> -> vector<16x128xf32>
    %46 = vector.extract_strided_slice %43 {offsets = [0, 0], sizes = [16, 32], strides = [1, 1]} : vector<16x64xf32> to vector<16x32xf32>
    %47 = vector.extract_strided_slice %43 {offsets = [0, 32], sizes = [16, 32], strides = [1, 1]} : vector<16x64xf32> to vector<16x32xf32>
    %48 = arith.truncf %46 : vector<16x32xf32> to vector<16x32xbf16>
    %49 = arith.truncf %47 : vector<16x32xf32> to vector<16x32xbf16>
    %50 = arith.truncf %45 : vector<16x128xf32> to vector<16x128xbf16>
    %51 = vector.extract_strided_slice %48 {offsets = [0, 0], sizes = [8, 32], strides = [1, 1]} : vector<16x32xbf16> to vector<8x32xbf16>
    %52 = vector.extract_strided_slice %49 {offsets = [0, 0], sizes = [8, 32], strides = [1, 1]} : vector<16x32xbf16> to vector<8x32xbf16>
    %53 = vector.extract_strided_slice %50 {offsets = [0, 0], sizes = [8, 128], strides = [1, 1]} : vector<16x128xbf16> to vector<8x128xbf16>
    %cst_26 = arith.constant 0.000000e+00 : f32
    %54 = vector.broadcast %cst_26 : f32 to vector<8x32xf32>
    %55 = vector.extract_strided_slice %51 {offsets = [0, 0], sizes = [8, 8], strides = [1, 1]} : vector<8x32xbf16> to vector<8x8xbf16>
    %56 = vector.extract_strided_slice %52 {offsets = [0, 0], sizes = [8, 8], strides = [1, 1]} : vector<8x32xbf16> to vector<8x8xbf16>
    %cst_27 = arith.constant dense<0.000000e+00> : vector<8x8xf32>
    %57 = tpu.matmul %55, %56, %cst_27 {dimension_numbers = #tpu.dot_dimension_numbers<[1], [1], [0], [0], [0, 0, 1, 0], [], []>} : vector<8x8xbf16>, vector<8x8xbf16>, vector<8x8xf32> -> vector<8x8xf32>
    %cst_28 = arith.constant dense<0xFF800000> : vector<8xf32>
    %58 = vector.multi_reduction <maximumf>, %57, %cst_28 [1] : vector<8x8xf32> to vector<8xf32>
    %59 = vector.shape_cast %58 : vector<8xf32> to vector<8x1xf32>
    %60 = vector.broadcast %59 : vector<8x1xf32> to vector<8x8xf32>
    %61 = arith.subf %57, %60 : vector<8x8xf32>
    %62 = math.exp %61 : vector<8x8xf32>
    %cst_29 = arith.constant dense<0.000000e+00> : vector<8xf32>
    %63 = vector.multi_reduction <add>, %62, %cst_29 [1] : vector<8x8xf32> to vector<8xf32>
    %64 = vector.shape_cast %63 : vector<8xf32> to vector<8x1xf32>
    %65 = tpu.reciprocal %64 {approx = true} : vector<8x1xf32> -> vector<8x1xf32>
    %66 = arith.truncf %62 : vector<8x8xf32> to vector<8x8xbf16>
    %67 = vector.extract_strided_slice %53 {offsets = [0, 0], sizes = [8, 32], strides = [1, 1]} : vector<8x128xbf16> to vector<8x32xbf16>
    %cst_30 = arith.constant dense<0.000000e+00> : vector<8x32xf32>
    %68 = tpu.matmul %66, %67, %cst_30 {dimension_numbers = #tpu.dot_dimension_numbers<[1], [0], [0], [1], [0, 0, 1, 1], [], []>} : vector<8x8xbf16>, vector<8x32xbf16>, vector<8x32xf32> -> vector<8x32xf32>
    %69 = vector.broadcast %65 : vector<8x1xf32> to vector<8x32xf32>
    %70 = arith.mulf %68, %69 : vector<8x32xf32>
    %71 = arith.addf %54, %70 : vector<8x32xf32>
    %72 = vector.extract_strided_slice %51 {offsets = [0, 8], sizes = [8, 8], strides = [1, 1]} : vector<8x32xbf16> to vector<8x8xbf16>
    %73 = vector.extract_strided_slice %52 {offsets = [0, 8], sizes = [8, 8], strides = [1, 1]} : vector<8x32xbf16> to vector<8x8xbf16>
    %cst_31 = arith.constant dense<0.000000e+00> : vector<8x8xf32>
    %74 = tpu.matmul %72, %73, %cst_31 {dimension_numbers = #tpu.dot_dimension_numbers<[1], [1], [0], [0], [0, 0, 1, 0], [], []>} : vector<8x8xbf16>, vector<8x8xbf16>, vector<8x8xf32> -> vector<8x8xf32>
    %cst_32 = arith.constant dense<0xFF800000> : vector<8xf32>
    %75 = vector.multi_reduction <maximumf>, %74, %cst_32 [1] : vector<8x8xf32> to vector<8xf32>
    %76 = vector.shape_cast %75 : vector<8xf32> to vector<8x1xf32>
    %77 = vector.broadcast %76 : vector<8x1xf32> to vector<8x8xf32>
    %78 = arith.subf %74, %77 : vector<8x8xf32>
    %79 = math.exp %78 : vector<8x8xf32>
    %cst_33 = arith.constant dense<0.000000e+00> : vector<8xf32>
    %80 = vector.multi_reduction <add>, %79, %cst_33 [1] : vector<8x8xf32> to vector<8xf32>
    %81 = vector.shape_cast %80 : vector<8xf32> to vector<8x1xf32>
    %82 = tpu.reciprocal %81 {approx = true} : vector<8x1xf32> -> vector<8x1xf32>
    %83 = arith.truncf %79 : vector<8x8xf32> to vector<8x8xbf16>
    %84 = vector.extract_strided_slice %53 {offsets = [0, 32], sizes = [8, 32], strides = [1, 1]} : vector<8x128xbf16> to vector<8x32xbf16>
    %cst_34 = arith.constant dense<0.000000e+00> : vector<8x32xf32>
    %85 = tpu.matmul %83, %84, %cst_34 {dimension_numbers = #tpu.dot_dimension_numbers<[1], [0], [0], [1], [0, 0, 1, 1], [], []>} : vector<8x8xbf16>, vector<8x32xbf16>, vector<8x32xf32> -> vector<8x32xf32>
    %86 = vector.broadcast %82 : vector<8x1xf32> to vector<8x32xf32>
    %87 = arith.mulf %85, %86 : vector<8x32xf32>
    %88 = arith.addf %71, %87 : vector<8x32xf32>
    %89 = vector.extract_strided_slice %51 {offsets = [0, 16], sizes = [8, 8], strides = [1, 1]} : vector<8x32xbf16> to vector<8x8xbf16>
    %90 = vector.extract_strided_slice %52 {offsets = [0, 16], sizes = [8, 8], strides = [1, 1]} : vector<8x32xbf16> to vector<8x8xbf16>
    %cst_35 = arith.constant dense<0.000000e+00> : vector<8x8xf32>
    %91 = tpu.matmul %89, %90, %cst_35 {dimension_numbers = #tpu.dot_dimension_numbers<[1], [1], [0], [0], [0, 0, 1, 0], [], []>} : vector<8x8xbf16>, vector<8x8xbf16>, vector<8x8xf32> -> vector<8x8xf32>
    %cst_36 = arith.constant dense<0xFF800000> : vector<8xf32>
    %92 = vector.multi_reduction <maximumf>, %91, %cst_36 [1] : vector<8x8xf32> to vector<8xf32>
    %93 = vector.shape_cast %92 : vector<8xf32> to vector<8x1xf32>
    %94 = vector.broadcast %93 : vector<8x1xf32> to vector<8x8xf32>
    %95 = arith.subf %91, %94 : vector<8x8xf32>
    %96 = math.exp %95 : vector<8x8xf32>
    %cst_37 = arith.constant dense<0.000000e+00> : vector<8xf32>
    %97 = vector.multi_reduction <add>, %96, %cst_37 [1] : vector<8x8xf32> to vector<8xf32>
    %98 = vector.shape_cast %97 : vector<8xf32> to vector<8x1xf32>
    %99 = tpu.reciprocal %98 {approx = true} : vector<8x1xf32> -> vector<8x1xf32>
    %100 = arith.truncf %96 : vector<8x8xf32> to vector<8x8xbf16>
    %101 = vector.extract_strided_slice %53 {offsets = [0, 64], sizes = [8, 32], strides = [1, 1]} : vector<8x128xbf16> to vector<8x32xbf16>
    %cst_38 = arith.constant dense<0.000000e+00> : vector<8x32xf32>
    %102 = tpu.matmul %100, %101, %cst_38 {dimension_numbers = #tpu.dot_dimension_numbers<[1], [0], [0], [1], [0, 0, 1, 1], [], []>} : vector<8x8xbf16>, vector<8x32xbf16>, vector<8x32xf32> -> vector<8x32xf32>
    %103 = vector.broadcast %99 : vector<8x1xf32> to vector<8x32xf32>
    %104 = arith.mulf %102, %103 : vector<8x32xf32>
    %105 = arith.addf %88, %104 : vector<8x32xf32>
    %106 = vector.extract_strided_slice %51 {offsets = [0, 24], sizes = [8, 8], strides = [1, 1]} : vector<8x32xbf16> to vector<8x8xbf16>
    %107 = vector.extract_strided_slice %52 {offsets = [0, 24], sizes = [8, 8], strides = [1, 1]} : vector<8x32xbf16> to vector<8x8xbf16>
    %cst_39 = arith.constant dense<0.000000e+00> : vector<8x8xf32>
    %108 = tpu.matmul %106, %107, %cst_39 {dimension_numbers = #tpu.dot_dimension_numbers<[1], [1], [0], [0], [0, 0, 1, 0], [], []>} : vector<8x8xbf16>, vector<8x8xbf16>, vector<8x8xf32> -> vector<8x8xf32>
    %cst_40 = arith.constant dense<0xFF800000> : vector<8xf32>
    %109 = vector.multi_reduction <maximumf>, %108, %cst_40 [1] : vector<8x8xf32> to vector<8xf32>
    %110 = vector.shape_cast %109 : vector<8xf32> to vector<8x1xf32>
    %111 = vector.broadcast %110 : vector<8x1xf32> to vector<8x8xf32>
    %112 = arith.subf %108, %111 : vector<8x8xf32>
    %113 = math.exp %112 : vector<8x8xf32>
    %cst_41 = arith.constant dense<0.000000e+00> : vector<8xf32>
    %114 = vector.multi_reduction <add>, %113, %cst_41 [1] : vector<8x8xf32> to vector<8xf32>
    %115 = vector.shape_cast %114 : vector<8xf32> to vector<8x1xf32>
    %116 = tpu.reciprocal %115 {approx = true} : vector<8x1xf32> -> vector<8x1xf32>
    %117 = arith.truncf %113 : vector<8x8xf32> to vector<8x8xbf16>
    %118 = vector.extract_strided_slice %53 {offsets = [0, 96], sizes = [8, 32], strides = [1, 1]} : vector<8x128xbf16> to vector<8x32xbf16>
    %cst_42 = arith.constant dense<0.000000e+00> : vector<8x32xf32>
    %119 = tpu.matmul %117, %118, %cst_42 {dimension_numbers = #tpu.dot_dimension_numbers<[1], [0], [0], [1], [0, 0, 1, 1], [], []>} : vector<8x8xbf16>, vector<8x32xbf16>, vector<8x32xf32> -> vector<8x32xf32>
    %120 = vector.broadcast %116 : vector<8x1xf32> to vector<8x32xf32>
    %121 = arith.mulf %119, %120 : vector<8x32xf32>
    %122 = arith.addf %105, %121 : vector<8x32xf32>
    %123 = vector.extract_strided_slice %48 {offsets = [8, 0], sizes = [8, 32], strides = [1, 1]} : vector<16x32xbf16> to vector<8x32xbf16>
    %124 = vector.extract_strided_slice %49 {offsets = [8, 0], sizes = [8, 32], strides = [1, 1]} : vector<16x32xbf16> to vector<8x32xbf16>
    %125 = vector.extract_strided_slice %50 {offsets = [8, 0], sizes = [8, 128], strides = [1, 1]} : vector<16x128xbf16> to vector<8x128xbf16>
    %cst_43 = arith.constant 0.000000e+00 : f32
    %126 = vector.broadcast %cst_43 : f32 to vector<8x32xf32>
    %127 = vector.extract_strided_slice %123 {offsets = [0, 0], sizes = [8, 8], strides = [1, 1]} : vector<8x32xbf16> to vector<8x8xbf16>
    %128 = vector.extract_strided_slice %124 {offsets = [0, 0], sizes = [8, 8], strides = [1, 1]} : vector<8x32xbf16> to vector<8x8xbf16>
    %cst_44 = arith.constant dense<0.000000e+00> : vector<8x8xf32>
    %129 = tpu.matmul %127, %128, %cst_44 {dimension_numbers = #tpu.dot_dimension_numbers<[1], [1], [0], [0], [0, 0, 1, 0], [], []>} : vector<8x8xbf16>, vector<8x8xbf16>, vector<8x8xf32> -> vector<8x8xf32>
    %cst_45 = arith.constant dense<0xFF800000> : vector<8xf32>
    %130 = vector.multi_reduction <maximumf>, %129, %cst_45 [1] : vector<8x8xf32> to vector<8xf32>
    %131 = vector.shape_cast %130 : vector<8xf32> to vector<8x1xf32>
    %132 = vector.broadcast %131 : vector<8x1xf32> to vector<8x8xf32>
    %133 = arith.subf %129, %132 : vector<8x8xf32>
    %134 = math.exp %133 : vector<8x8xf32>
    %cst_46 = arith.constant dense<0.000000e+00> : vector<8xf32>
    %135 = vector.multi_reduction <add>, %134, %cst_46 [1] : vector<8x8xf32> to vector<8xf32>
    %136 = vector.shape_cast %135 : vector<8xf32> to vector<8x1xf32>
    %137 = tpu.reciprocal %136 {approx = true} : vector<8x1xf32> -> vector<8x1xf32>
    %138 = arith.truncf %134 : vector<8x8xf32> to vector<8x8xbf16>
    %139 = vector.extract_strided_slice %125 {offsets = [0, 0], sizes = [8, 32], strides = [1, 1]} : vector<8x128xbf16> to vector<8x32xbf16>
    %cst_47 = arith.constant dense<0.000000e+00> : vector<8x32xf32>
    %140 = tpu.matmul %138, %139, %cst_47 {dimension_numbers = #tpu.dot_dimension_numbers<[1], [0], [0], [1], [0, 0, 1, 1], [], []>} : vector<8x8xbf16>, vector<8x32xbf16>, vector<8x32xf32> -> vector<8x32xf32>
    %141 = vector.broadcast %137 : vector<8x1xf32> to vector<8x32xf32>
    %142 = arith.mulf %140, %141 : vector<8x32xf32>
    %143 = arith.addf %126, %142 : vector<8x32xf32>
    %144 = vector.extract_strided_slice %123 {offsets = [0, 8], sizes = [8, 8], strides = [1, 1]} : vector<8x32xbf16> to vector<8x8xbf16>
    %145 = vector.extract_strided_slice %124 {offsets = [0, 8], sizes = [8, 8], strides = [1, 1]} : vector<8x32xbf16> to vector<8x8xbf16>
    %cst_48 = arith.constant dense<0.000000e+00> : vector<8x8xf32>
    %146 = tpu.matmul %144, %145, %cst_48 {dimension_numbers = #tpu.dot_dimension_numbers<[1], [1], [0], [0], [0, 0, 1, 0], [], []>} : vector<8x8xbf16>, vector<8x8xbf16>, vector<8x8xf32> -> vector<8x8xf32>
    %cst_49 = arith.constant dense<0xFF800000> : vector<8xf32>
    %147 = vector.multi_reduction <maximumf>, %146, %cst_49 [1] : vector<8x8xf32> to vector<8xf32>
    %148 = vector.shape_cast %147 : vector<8xf32> to vector<8x1xf32>
    %149 = vector.broadcast %148 : vector<8x1xf32> to vector<8x8xf32>
    %150 = arith.subf %146, %149 : vector<8x8xf32>
    %151 = math.exp %150 : vector<8x8xf32>
    %cst_50 = arith.constant dense<0.000000e+00> : vector<8xf32>
    %152 = vector.multi_reduction <add>, %151, %cst_50 [1] : vector<8x8xf32> to vector<8xf32>
    %153 = vector.shape_cast %152 : vector<8xf32> to vector<8x1xf32>
    %154 = tpu.reciprocal %153 {approx = true} : vector<8x1xf32> -> vector<8x1xf32>
    %155 = arith.truncf %151 : vector<8x8xf32> to vector<8x8xbf16>
    %156 = vector.extract_strided_slice %125 {offsets = [0, 32], sizes = [8, 32], strides = [1, 1]} : vector<8x128xbf16> to vector<8x32xbf16>
    %cst_51 = arith.constant dense<0.000000e+00> : vector<8x32xf32>
    %157 = tpu.matmul %155, %156, %cst_51 {dimension_numbers = #tpu.dot_dimension_numbers<[1], [0], [0], [1], [0, 0, 1, 1], [], []>} : vector<8x8xbf16>, vector<8x32xbf16>, vector<8x32xf32> -> vector<8x32xf32>
    %158 = vector.broadcast %154 : vector<8x1xf32> to vector<8x32xf32>
    %159 = arith.mulf %157, %158 : vector<8x32xf32>
    %160 = arith.addf %143, %159 : vector<8x32xf32>
    %161 = vector.extract_strided_slice %123 {offsets = [0, 16], sizes = [8, 8], strides = [1, 1]} : vector<8x32xbf16> to vector<8x8xbf16>
    %162 = vector.extract_strided_slice %124 {offsets = [0, 16], sizes = [8, 8], strides = [1, 1]} : vector<8x32xbf16> to vector<8x8xbf16>
    %cst_52 = arith.constant dense<0.000000e+00> : vector<8x8xf32>
    %163 = tpu.matmul %161, %162, %cst_52 {dimension_numbers = #tpu.dot_dimension_numbers<[1], [1], [0], [0], [0, 0, 1, 0], [], []>} : vector<8x8xbf16>, vector<8x8xbf16>, vector<8x8xf32> -> vector<8x8xf32>
    %cst_53 = arith.constant dense<0xFF800000> : vector<8xf32>
    %164 = vector.multi_reduction <maximumf>, %163, %cst_53 [1] : vector<8x8xf32> to vector<8xf32>
    %165 = vector.shape_cast %164 : vector<8xf32> to vector<8x1xf32>
    %166 = vector.broadcast %165 : vector<8x1xf32> to vector<8x8xf32>
    %167 = arith.subf %163, %166 : vector<8x8xf32>
    %168 = math.exp %167 : vector<8x8xf32>
    %cst_54 = arith.constant dense<0.000000e+00> : vector<8xf32>
    %169 = vector.multi_reduction <add>, %168, %cst_54 [1] : vector<8x8xf32> to vector<8xf32>
    %170 = vector.shape_cast %169 : vector<8xf32> to vector<8x1xf32>
    %171 = tpu.reciprocal %170 {approx = true} : vector<8x1xf32> -> vector<8x1xf32>
    %172 = arith.truncf %168 : vector<8x8xf32> to vector<8x8xbf16>
    %173 = vector.extract_strided_slice %125 {offsets = [0, 64], sizes = [8, 32], strides = [1, 1]} : vector<8x128xbf16> to vector<8x32xbf16>
    %cst_55 = arith.constant dense<0.000000e+00> : vector<8x32xf32>
    %174 = tpu.matmul %172, %173, %cst_55 {dimension_numbers = #tpu.dot_dimension_numbers<[1], [0], [0], [1], [0, 0, 1, 1], [], []>} : vector<8x8xbf16>, vector<8x32xbf16>, vector<8x32xf32> -> vector<8x32xf32>
    %175 = vector.broadcast %171 : vector<8x1xf32> to vector<8x32xf32>
    %176 = arith.mulf %174, %175 : vector<8x32xf32>
    %177 = arith.addf %160, %176 : vector<8x32xf32>
    %178 = vector.extract_strided_slice %123 {offsets = [0, 24], sizes = [8, 8], strides = [1, 1]} : vector<8x32xbf16> to vector<8x8xbf16>
    %179 = vector.extract_strided_slice %124 {offsets = [0, 24], sizes = [8, 8], strides = [1, 1]} : vector<8x32xbf16> to vector<8x8xbf16>
    %cst_56 = arith.constant dense<0.000000e+00> : vector<8x8xf32>
    %180 = tpu.matmul %178, %179, %cst_56 {dimension_numbers = #tpu.dot_dimension_numbers<[1], [1], [0], [0], [0, 0, 1, 0], [], []>} : vector<8x8xbf16>, vector<8x8xbf16>, vector<8x8xf32> -> vector<8x8xf32>
    %cst_57 = arith.constant dense<0xFF800000> : vector<8xf32>
    %181 = vector.multi_reduction <maximumf>, %180, %cst_57 [1] : vector<8x8xf32> to vector<8xf32>
    %182 = vector.shape_cast %181 : vector<8xf32> to vector<8x1xf32>
    %183 = vector.broadcast %182 : vector<8x1xf32> to vector<8x8xf32>
    %184 = arith.subf %180, %183 : vector<8x8xf32>
    %185 = math.exp %184 : vector<8x8xf32>
    %cst_58 = arith.constant dense<0.000000e+00> : vector<8xf32>
    %186 = vector.multi_reduction <add>, %185, %cst_58 [1] : vector<8x8xf32> to vector<8xf32>
    %187 = vector.shape_cast %186 : vector<8xf32> to vector<8x1xf32>
    %188 = tpu.reciprocal %187 {approx = true} : vector<8x1xf32> -> vector<8x1xf32>
    %189 = arith.truncf %185 : vector<8x8xf32> to vector<8x8xbf16>
    %190 = vector.extract_strided_slice %125 {offsets = [0, 96], sizes = [8, 32], strides = [1, 1]} : vector<8x128xbf16> to vector<8x32xbf16>
    %cst_59 = arith.constant dense<0.000000e+00> : vector<8x32xf32>
    %191 = tpu.matmul %189, %190, %cst_59 {dimension_numbers = #tpu.dot_dimension_numbers<[1], [0], [0], [1], [0, 0, 1, 1], [], []>} : vector<8x8xbf16>, vector<8x32xbf16>, vector<8x32xf32> -> vector<8x32xf32>
    %192 = vector.broadcast %188 : vector<8x1xf32> to vector<8x32xf32>
    %193 = arith.mulf %191, %192 : vector<8x32xf32>
    %194 = arith.addf %177, %193 : vector<8x32xf32>
    %195 = tpu.concatenate %122, %194 in 0 : vector<8x32xf32>, vector<8x32xf32> -> vector<16x32xf32>
    %196 = arith.addf %17, %195 : vector<16x32xf32>
    %cst_60 = arith.constant dense<0.000000e+00> : vector<16xf32>
    %197 = vector.multi_reduction <add>, %196, %cst_60 [1] : vector<16x32xf32> to vector<16xf32>
    %198 = vector.shape_cast %197 : vector<16xf32> to vector<16x1xf32>
    %cst_61 = arith.constant 3.200000e+01 : f32
    %199 = vector.broadcast %cst_61 : f32 to vector<16x1xf32>
    %200 = arith.divf %198, %199 : vector<16x1xf32>
    %201 = vector.broadcast %200 : vector<16x1xf32> to vector<16x32xf32>
    %202 = arith.subf %196, %201 : vector<16x32xf32>
    %203 = arith.mulf %202, %202 : vector<16x32xf32>
    %cst_62 = arith.constant dense<0.000000e+00> : vector<16xf32>
    %204 = vector.multi_reduction <add>, %203, %cst_62 [1] : vector<16x32xf32> to vector<16xf32>
    %205 = vector.shape_cast %204 : vector<16xf32> to vector<16x1xf32>
    %cst_63 = arith.constant 3.200000e+01 : f32
    %206 = vector.broadcast %cst_63 : f32 to vector<16x1xf32>
    %207 = arith.divf %205, %206 : vector<16x1xf32>
    %cst_64 = arith.constant 9.99999974E-6 : f32
    %208 = vector.broadcast %cst_64 : f32 to vector<16x1xf32>
    %209 = arith.addf %207, %208 : vector<16x1xf32>
    %210 = math.rsqrt %209 : vector<16x1xf32>
    %211 = vector.broadcast %210 : vector<16x1xf32> to vector<16x32xf32>
    %212 = arith.mulf %202, %211 : vector<16x32xf32>
    %213 = vector.broadcast %2 : vector<1x32xf32> to vector<16x32xf32>
    %214 = arith.mulf %212, %213 : vector<16x32xf32>
    %215 = vector.broadcast %3 : vector<1x32xf32> to vector<16x32xf32>
    %216 = arith.addf %214, %215 : vector<16x32xf32>
    %217 = arith.addf %216, %18 : vector<16x32xf32>
    %218 = arith.truncf %217 : vector<16x32xf32> to vector<16x32xbf16>
    %cst_65 = arith.constant dense<0.000000e+00> : vector<16x32xf32>
    %219 = tpu.matmul %218, %10, %cst_65 {dimension_numbers = #tpu.dot_dimension_numbers<[1], [0], [0], [1], [0, 0, 1, 1], [], []>} : vector<16x32xbf16>, vector<32x32xbf16>, vector<16x32xf32> -> vector<16x32xf32>
    %220 = arith.addf %19, %20 : vector<32x32xf32>
    %221 = arith.truncf %220 : vector<32x32xf32> to vector<32x32xbf16>
    %cst_66 = arith.constant dense<0.000000e+00> : vector<32x32xf32>
    %222 = tpu.matmul %221, %11, %cst_66 {dimension_numbers = #tpu.dot_dimension_numbers<[1], [0], [0], [1], [0, 0, 1, 1], [], []>} : vector<32x32xbf16>, vector<32x32xbf16>, vector<32x32xf32> -> vector<32x32xf32>
    %223 = arith.truncf %19 : vector<32x32xf32> to vector<32x32xbf16>
    %cst_67 = arith.constant dense<0.000000e+00> : vector<32x128xf32>
    %224 = tpu.matmul %223, %12, %cst_67 {dimension_numbers = #tpu.dot_dimension_numbers<[1], [0], [0], [1], [0, 0, 1, 1], [], []>} : vector<32x32xbf16>, vector<32x128xbf16>, vector<32x128xf32> -> vector<32x128xf32>
    %225 = arith.truncf %219 : vector<16x32xf32> to vector<16x32xbf16>
    %226 = arith.truncf %222 : vector<32x32xf32> to vector<32x32xbf16>
    %227 = arith.truncf %224 : vector<32x128xf32> to vector<32x128xbf16>
    %228 = vector.extract_strided_slice %225 {offsets = [0, 0], sizes = [8, 32], strides = [1, 1]} : vector<16x32xbf16> to vector<8x32xbf16>
    %229 = vector.extract_strided_slice %226 {offsets = [0, 0], sizes = [16, 32], strides = [1, 1]} : vector<32x32xbf16> to vector<16x32xbf16>
    %230 = vector.extract_strided_slice %227 {offsets = [0, 0], sizes = [16, 128], strides = [1, 1]} : vector<32x128xbf16> to vector<16x128xbf16>
    %cst_68 = arith.constant 0.000000e+00 : f32
    %231 = vector.broadcast %cst_68 : f32 to vector<8x32xf32>
    %232 = vector.extract_strided_slice %228 {offsets = [0, 0], sizes = [8, 8], strides = [1, 1]} : vector<8x32xbf16> to vector<8x8xbf16>
    %233 = vector.extract_strided_slice %229 {offsets = [0, 0], sizes = [16, 8], strides = [1, 1]} : vector<16x32xbf16> to vector<16x8xbf16>
    %cst_69 = arith.constant dense<0.000000e+00> : vector<8x16xf32>
    %234 = tpu.matmul %232, %233, %cst_69 {dimension_numbers = #tpu.dot_dimension_numbers<[1], [1], [0], [0], [0, 0, 1, 0], [], []>} : vector<8x8xbf16>, vector<16x8xbf16>, vector<8x16xf32> -> vector<8x16xf32>
    %cst_70 = arith.constant dense<0xFF800000> : vector<8xf32>
    %235 = vector.multi_reduction <maximumf>, %234, %cst_70 [1] : vector<8x16xf32> to vector<8xf32>
    %236 = vector.shape_cast %235 : vector<8xf32> to vector<8x1xf32>
    %237 = vector.broadcast %236 : vector<8x1xf32> to vector<8x16xf32>
    %238 = arith.subf %234, %237 : vector<8x16xf32>
    %239 = math.exp %238 : vector<8x16xf32>
    %cst_71 = arith.constant dense<0.000000e+00> : vector<8xf32>
    %240 = vector.multi_reduction <add>, %239, %cst_71 [1] : vector<8x16xf32> to vector<8xf32>
    %241 = vector.shape_cast %240 : vector<8xf32> to vector<8x1xf32>
    %242 = tpu.reciprocal %241 {approx = true} : vector<8x1xf32> -> vector<8x1xf32>
    %243 = arith.truncf %239 : vector<8x16xf32> to vector<8x16xbf16>
    %244 = vector.extract_strided_slice %230 {offsets = [0, 0], sizes = [16, 32], strides = [1, 1]} : vector<16x128xbf16> to vector<16x32xbf16>
    %cst_72 = arith.constant dense<0.000000e+00> : vector<8x32xf32>
    %245 = tpu.matmul %243, %244, %cst_72 {dimension_numbers = #tpu.dot_dimension_numbers<[1], [0], [0], [1], [0, 0, 1, 1], [], []>} : vector<8x16xbf16>, vector<16x32xbf16>, vector<8x32xf32> -> vector<8x32xf32>
    %246 = vector.broadcast %242 : vector<8x1xf32> to vector<8x32xf32>
    %247 = arith.mulf %245, %246 : vector<8x32xf32>
    %248 = arith.addf %231, %247 : vector<8x32xf32>
    %249 = vector.extract_strided_slice %228 {offsets = [0, 8], sizes = [8, 8], strides = [1, 1]} : vector<8x32xbf16> to vector<8x8xbf16>
    %250 = vector.extract_strided_slice %229 {offsets = [0, 8], sizes = [16, 8], strides = [1, 1]} : vector<16x32xbf16> to vector<16x8xbf16>
    %cst_73 = arith.constant dense<0.000000e+00> : vector<8x16xf32>
    %251 = tpu.matmul %249, %250, %cst_73 {dimension_numbers = #tpu.dot_dimension_numbers<[1], [1], [0], [0], [0, 0, 1, 0], [], []>} : vector<8x8xbf16>, vector<16x8xbf16>, vector<8x16xf32> -> vector<8x16xf32>
    %cst_74 = arith.constant dense<0xFF800000> : vector<8xf32>
    %252 = vector.multi_reduction <maximumf>, %251, %cst_74 [1] : vector<8x16xf32> to vector<8xf32>
    %253 = vector.shape_cast %252 : vector<8xf32> to vector<8x1xf32>
    %254 = vector.broadcast %253 : vector<8x1xf32> to vector<8x16xf32>
    %255 = arith.subf %251, %254 : vector<8x16xf32>
    %256 = math.exp %255 : vector<8x16xf32>
    %cst_75 = arith.constant dense<0.000000e+00> : vector<8xf32>
    %257 = vector.multi_reduction <add>, %256, %cst_75 [1] : vector<8x16xf32> to vector<8xf32>
    %258 = vector.shape_cast %257 : vector<8xf32> to vector<8x1xf32>
    %259 = tpu.reciprocal %258 {approx = true} : vector<8x1xf32> -> vector<8x1xf32>
    %260 = arith.truncf %256 : vector<8x16xf32> to vector<8x16xbf16>
    %261 = vector.extract_strided_slice %230 {offsets = [0, 32], sizes = [16, 32], strides = [1, 1]} : vector<16x128xbf16> to vector<16x32xbf16>
    %cst_76 = arith.constant dense<0.000000e+00> : vector<8x32xf32>
    %262 = tpu.matmul %260, %261, %cst_76 {dimension_numbers = #tpu.dot_dimension_numbers<[1], [0], [0], [1], [0, 0, 1, 1], [], []>} : vector<8x16xbf16>, vector<16x32xbf16>, vector<8x32xf32> -> vector<8x32xf32>
    %263 = vector.broadcast %259 : vector<8x1xf32> to vector<8x32xf32>
    %264 = arith.mulf %262, %263 : vector<8x32xf32>
    %265 = arith.addf %248, %264 : vector<8x32xf32>
    %266 = vector.extract_strided_slice %228 {offsets = [0, 16], sizes = [8, 8], strides = [1, 1]} : vector<8x32xbf16> to vector<8x8xbf16>
    %267 = vector.extract_strided_slice %229 {offsets = [0, 16], sizes = [16, 8], strides = [1, 1]} : vector<16x32xbf16> to vector<16x8xbf16>
    %cst_77 = arith.constant dense<0.000000e+00> : vector<8x16xf32>
    %268 = tpu.matmul %266, %267, %cst_77 {dimension_numbers = #tpu.dot_dimension_numbers<[1], [1], [0], [0], [0, 0, 1, 0], [], []>} : vector<8x8xbf16>, vector<16x8xbf16>, vector<8x16xf32> -> vector<8x16xf32>
    %cst_78 = arith.constant dense<0xFF800000> : vector<8xf32>
    %269 = vector.multi_reduction <maximumf>, %268, %cst_78 [1] : vector<8x16xf32> to vector<8xf32>
    %270 = vector.shape_cast %269 : vector<8xf32> to vector<8x1xf32>
    %271 = vector.broadcast %270 : vector<8x1xf32> to vector<8x16xf32>
    %272 = arith.subf %268, %271 : vector<8x16xf32>
    %273 = math.exp %272 : vector<8x16xf32>
    %cst_79 = arith.constant dense<0.000000e+00> : vector<8xf32>
    %274 = vector.multi_reduction <add>, %273, %cst_79 [1] : vector<8x16xf32> to vector<8xf32>
    %275 = vector.shape_cast %274 : vector<8xf32> to vector<8x1xf32>
    %276 = tpu.reciprocal %275 {approx = true} : vector<8x1xf32> -> vector<8x1xf32>
    %277 = arith.truncf %273 : vector<8x16xf32> to vector<8x16xbf16>
    %278 = vector.extract_strided_slice %230 {offsets = [0, 64], sizes = [16, 32], strides = [1, 1]} : vector<16x128xbf16> to vector<16x32xbf16>
    %cst_80 = arith.constant dense<0.000000e+00> : vector<8x32xf32>
    %279 = tpu.matmul %277, %278, %cst_80 {dimension_numbers = #tpu.dot_dimension_numbers<[1], [0], [0], [1], [0, 0, 1, 1], [], []>} : vector<8x16xbf16>, vector<16x32xbf16>, vector<8x32xf32> -> vector<8x32xf32>
    %280 = vector.broadcast %276 : vector<8x1xf32> to vector<8x32xf32>
    %281 = arith.mulf %279, %280 : vector<8x32xf32>
    %282 = arith.addf %265, %281 : vector<8x32xf32>
    %283 = vector.extract_strided_slice %228 {offsets = [0, 24], sizes = [8, 8], strides = [1, 1]} : vector<8x32xbf16> to vector<8x8xbf16>
    %284 = vector.extract_strided_slice %229 {offsets = [0, 24], sizes = [16, 8], strides = [1, 1]} : vector<16x32xbf16> to vector<16x8xbf16>
    %cst_81 = arith.constant dense<0.000000e+00> : vector<8x16xf32>
    %285 = tpu.matmul %283, %284, %cst_81 {dimension_numbers = #tpu.dot_dimension_numbers<[1], [1], [0], [0], [0, 0, 1, 0], [], []>} : vector<8x8xbf16>, vector<16x8xbf16>, vector<8x16xf32> -> vector<8x16xf32>
    %cst_82 = arith.constant dense<0xFF800000> : vector<8xf32>
    %286 = vector.multi_reduction <maximumf>, %285, %cst_82 [1] : vector<8x16xf32> to vector<8xf32>
    %287 = vector.shape_cast %286 : vector<8xf32> to vector<8x1xf32>
    %288 = vector.broadcast %287 : vector<8x1xf32> to vector<8x16xf32>
    %289 = arith.subf %285, %288 : vector<8x16xf32>
    %290 = math.exp %289 : vector<8x16xf32>
    %cst_83 = arith.constant dense<0.000000e+00> : vector<8xf32>
    %291 = vector.multi_reduction <add>, %290, %cst_83 [1] : vector<8x16xf32> to vector<8xf32>
    %292 = vector.shape_cast %291 : vector<8xf32> to vector<8x1xf32>
    %293 = tpu.reciprocal %292 {approx = true} : vector<8x1xf32> -> vector<8x1xf32>
    %294 = arith.truncf %290 : vector<8x16xf32> to vector<8x16xbf16>
    %295 = vector.extract_strided_slice %230 {offsets = [0, 96], sizes = [16, 32], strides = [1, 1]} : vector<16x128xbf16> to vector<16x32xbf16>
    %cst_84 = arith.constant dense<0.000000e+00> : vector<8x32xf32>
    %296 = tpu.matmul %294, %295, %cst_84 {dimension_numbers = #tpu.dot_dimension_numbers<[1], [0], [0], [1], [0, 0, 1, 1], [], []>} : vector<8x16xbf16>, vector<16x32xbf16>, vector<8x32xf32> -> vector<8x32xf32>
    %297 = vector.broadcast %293 : vector<8x1xf32> to vector<8x32xf32>
    %298 = arith.mulf %296, %297 : vector<8x32xf32>
    %299 = arith.addf %282, %298 : vector<8x32xf32>
    %300 = vector.extract_strided_slice %225 {offsets = [8, 0], sizes = [8, 32], strides = [1, 1]} : vector<16x32xbf16> to vector<8x32xbf16>
    %301 = vector.extract_strided_slice %226 {offsets = [16, 0], sizes = [16, 32], strides = [1, 1]} : vector<32x32xbf16> to vector<16x32xbf16>
    %302 = vector.extract_strided_slice %227 {offsets = [16, 0], sizes = [16, 128], strides = [1, 1]} : vector<32x128xbf16> to vector<16x128xbf16>
    %cst_85 = arith.constant 0.000000e+00 : f32
    %303 = vector.broadcast %cst_85 : f32 to vector<8x32xf32>
    %304 = vector.extract_strided_slice %300 {offsets = [0, 0], sizes = [8, 8], strides = [1, 1]} : vector<8x32xbf16> to vector<8x8xbf16>
    %305 = vector.extract_strided_slice %301 {offsets = [0, 0], sizes = [16, 8], strides = [1, 1]} : vector<16x32xbf16> to vector<16x8xbf16>
    %cst_86 = arith.constant dense<0.000000e+00> : vector<8x16xf32>
    %306 = tpu.matmul %304, %305, %cst_86 {dimension_numbers = #tpu.dot_dimension_numbers<[1], [1], [0], [0], [0, 0, 1, 0], [], []>} : vector<8x8xbf16>, vector<16x8xbf16>, vector<8x16xf32> -> vector<8x16xf32>
    %cst_87 = arith.constant dense<0xFF800000> : vector<8xf32>
    %307 = vector.multi_reduction <maximumf>, %306, %cst_87 [1] : vector<8x16xf32> to vector<8xf32>
    %308 = vector.shape_cast %307 : vector<8xf32> to vector<8x1xf32>
    %309 = vector.broadcast %308 : vector<8x1xf32> to vector<8x16xf32>
    %310 = arith.subf %306, %309 : vector<8x16xf32>
    %311 = math.exp %310 : vector<8x16xf32>
    %cst_88 = arith.constant dense<0.000000e+00> : vector<8xf32>
    %312 = vector.multi_reduction <add>, %311, %cst_88 [1] : vector<8x16xf32> to vector<8xf32>
    %313 = vector.shape_cast %312 : vector<8xf32> to vector<8x1xf32>
    %314 = tpu.reciprocal %313 {approx = true} : vector<8x1xf32> -> vector<8x1xf32>
    %315 = arith.truncf %311 : vector<8x16xf32> to vector<8x16xbf16>
    %316 = vector.extract_strided_slice %302 {offsets = [0, 0], sizes = [16, 32], strides = [1, 1]} : vector<16x128xbf16> to vector<16x32xbf16>
    %cst_89 = arith.constant dense<0.000000e+00> : vector<8x32xf32>
    %317 = tpu.matmul %315, %316, %cst_89 {dimension_numbers = #tpu.dot_dimension_numbers<[1], [0], [0], [1], [0, 0, 1, 1], [], []>} : vector<8x16xbf16>, vector<16x32xbf16>, vector<8x32xf32> -> vector<8x32xf32>
    %318 = vector.broadcast %314 : vector<8x1xf32> to vector<8x32xf32>
    %319 = arith.mulf %317, %318 : vector<8x32xf32>
    %320 = arith.addf %303, %319 : vector<8x32xf32>
    %321 = vector.extract_strided_slice %300 {offsets = [0, 8], sizes = [8, 8], strides = [1, 1]} : vector<8x32xbf16> to vector<8x8xbf16>
    %322 = vector.extract_strided_slice %301 {offsets = [0, 8], sizes = [16, 8], strides = [1, 1]} : vector<16x32xbf16> to vector<16x8xbf16>
    %cst_90 = arith.constant dense<0.000000e+00> : vector<8x16xf32>
    %323 = tpu.matmul %321, %322, %cst_90 {dimension_numbers = #tpu.dot_dimension_numbers<[1], [1], [0], [0], [0, 0, 1, 0], [], []>} : vector<8x8xbf16>, vector<16x8xbf16>, vector<8x16xf32> -> vector<8x16xf32>
    %cst_91 = arith.constant dense<0xFF800000> : vector<8xf32>
    %324 = vector.multi_reduction <maximumf>, %323, %cst_91 [1] : vector<8x16xf32> to vector<8xf32>
    %325 = vector.shape_cast %324 : vector<8xf32> to vector<8x1xf32>
    %326 = vector.broadcast %325 : vector<8x1xf32> to vector<8x16xf32>
    %327 = arith.subf %323, %326 : vector<8x16xf32>
    %328 = math.exp %327 : vector<8x16xf32>
    %cst_92 = arith.constant dense<0.000000e+00> : vector<8xf32>
    %329 = vector.multi_reduction <add>, %328, %cst_92 [1] : vector<8x16xf32> to vector<8xf32>
    %330 = vector.shape_cast %329 : vector<8xf32> to vector<8x1xf32>
    %331 = tpu.reciprocal %330 {approx = true} : vector<8x1xf32> -> vector<8x1xf32>
    %332 = arith.truncf %328 : vector<8x16xf32> to vector<8x16xbf16>
    %333 = vector.extract_strided_slice %302 {offsets = [0, 32], sizes = [16, 32], strides = [1, 1]} : vector<16x128xbf16> to vector<16x32xbf16>
    %cst_93 = arith.constant dense<0.000000e+00> : vector<8x32xf32>
    %334 = tpu.matmul %332, %333, %cst_93 {dimension_numbers = #tpu.dot_dimension_numbers<[1], [0], [0], [1], [0, 0, 1, 1], [], []>} : vector<8x16xbf16>, vector<16x32xbf16>, vector<8x32xf32> -> vector<8x32xf32>
    %335 = vector.broadcast %331 : vector<8x1xf32> to vector<8x32xf32>
    %336 = arith.mulf %334, %335 : vector<8x32xf32>
    %337 = arith.addf %320, %336 : vector<8x32xf32>
    %338 = vector.extract_strided_slice %300 {offsets = [0, 16], sizes = [8, 8], strides = [1, 1]} : vector<8x32xbf16> to vector<8x8xbf16>
    %339 = vector.extract_strided_slice %301 {offsets = [0, 16], sizes = [16, 8], strides = [1, 1]} : vector<16x32xbf16> to vector<16x8xbf16>
    %cst_94 = arith.constant dense<0.000000e+00> : vector<8x16xf32>
    %340 = tpu.matmul %338, %339, %cst_94 {dimension_numbers = #tpu.dot_dimension_numbers<[1], [1], [0], [0], [0, 0, 1, 0], [], []>} : vector<8x8xbf16>, vector<16x8xbf16>, vector<8x16xf32> -> vector<8x16xf32>
    %cst_95 = arith.constant dense<0xFF800000> : vector<8xf32>
    %341 = vector.multi_reduction <maximumf>, %340, %cst_95 [1] : vector<8x16xf32> to vector<8xf32>
    %342 = vector.shape_cast %341 : vector<8xf32> to vector<8x1xf32>
    %343 = vector.broadcast %342 : vector<8x1xf32> to vector<8x16xf32>
    %344 = arith.subf %340, %343 : vector<8x16xf32>
    %345 = math.exp %344 : vector<8x16xf32>
    %cst_96 = arith.constant dense<0.000000e+00> : vector<8xf32>
    %346 = vector.multi_reduction <add>, %345, %cst_96 [1] : vector<8x16xf32> to vector<8xf32>
    %347 = vector.shape_cast %346 : vector<8xf32> to vector<8x1xf32>
    %348 = tpu.reciprocal %347 {approx = true} : vector<8x1xf32> -> vector<8x1xf32>
    %349 = arith.truncf %345 : vector<8x16xf32> to vector<8x16xbf16>
    %350 = vector.extract_strided_slice %302 {offsets = [0, 64], sizes = [16, 32], strides = [1, 1]} : vector<16x128xbf16> to vector<16x32xbf16>
    %cst_97 = arith.constant dense<0.000000e+00> : vector<8x32xf32>
    %351 = tpu.matmul %349, %350, %cst_97 {dimension_numbers = #tpu.dot_dimension_numbers<[1], [0], [0], [1], [0, 0, 1, 1], [], []>} : vector<8x16xbf16>, vector<16x32xbf16>, vector<8x32xf32> -> vector<8x32xf32>
    %352 = vector.broadcast %348 : vector<8x1xf32> to vector<8x32xf32>
    %353 = arith.mulf %351, %352 : vector<8x32xf32>
    %354 = arith.addf %337, %353 : vector<8x32xf32>
    %355 = vector.extract_strided_slice %300 {offsets = [0, 24], sizes = [8, 8], strides = [1, 1]} : vector<8x32xbf16> to vector<8x8xbf16>
    %356 = vector.extract_strided_slice %301 {offsets = [0, 24], sizes = [16, 8], strides = [1, 1]} : vector<16x32xbf16> to vector<16x8xbf16>
    %cst_98 = arith.constant dense<0.000000e+00> : vector<8x16xf32>
    %357 = tpu.matmul %355, %356, %cst_98 {dimension_numbers = #tpu.dot_dimension_numbers<[1], [1], [0], [0], [0, 0, 1, 0], [], []>} : vector<8x8xbf16>, vector<16x8xbf16>, vector<8x16xf32> -> vector<8x16xf32>
    %cst_99 = arith.constant dense<0xFF800000> : vector<8xf32>
    %358 = vector.multi_reduction <maximumf>, %357, %cst_99 [1] : vector<8x16xf32> to vector<8xf32>
    %359 = vector.shape_cast %358 : vector<8xf32> to vector<8x1xf32>
    %360 = vector.broadcast %359 : vector<8x1xf32> to vector<8x16xf32>
    %361 = arith.subf %357, %360 : vector<8x16xf32>
    %362 = math.exp %361 : vector<8x16xf32>
    %cst_100 = arith.constant dense<0.000000e+00> : vector<8xf32>
    %363 = vector.multi_reduction <add>, %362, %cst_100 [1] : vector<8x16xf32> to vector<8xf32>
    %364 = vector.shape_cast %363 : vector<8xf32> to vector<8x1xf32>
    %365 = tpu.reciprocal %364 {approx = true} : vector<8x1xf32> -> vector<8x1xf32>
    %366 = arith.truncf %362 : vector<8x16xf32> to vector<8x16xbf16>
    %367 = vector.extract_strided_slice %302 {offsets = [0, 96], sizes = [16, 32], strides = [1, 1]} : vector<16x128xbf16> to vector<16x32xbf16>
    %cst_101 = arith.constant dense<0.000000e+00> : vector<8x32xf32>
    %368 = tpu.matmul %366, %367, %cst_101 {dimension_numbers = #tpu.dot_dimension_numbers<[1], [0], [0], [1], [0, 0, 1, 1], [], []>} : vector<8x16xbf16>, vector<16x32xbf16>, vector<8x32xf32> -> vector<8x32xf32>
    %369 = vector.broadcast %365 : vector<8x1xf32> to vector<8x32xf32>
    %370 = arith.mulf %368, %369 : vector<8x32xf32>
    %371 = arith.addf %354, %370 : vector<8x32xf32>
    %372 = tpu.concatenate %299, %371 in 0 : vector<8x32xf32>, vector<8x32xf32> -> vector<16x32xf32>
    %373 = arith.addf %196, %372 : vector<16x32xf32>
    %cst_102 = arith.constant dense<0.000000e+00> : vector<16xf32>
    %374 = vector.multi_reduction <add>, %373, %cst_102 [1] : vector<16x32xf32> to vector<16xf32>
    %375 = vector.shape_cast %374 : vector<16xf32> to vector<16x1xf32>
    %cst_103 = arith.constant 3.200000e+01 : f32
    %376 = vector.broadcast %cst_103 : f32 to vector<16x1xf32>
    %377 = arith.divf %375, %376 : vector<16x1xf32>
    %378 = vector.broadcast %377 : vector<16x1xf32> to vector<16x32xf32>
    %379 = arith.subf %373, %378 : vector<16x32xf32>
    %380 = arith.mulf %379, %379 : vector<16x32xf32>
    %cst_104 = arith.constant dense<0.000000e+00> : vector<16xf32>
    %381 = vector.multi_reduction <add>, %380, %cst_104 [1] : vector<16x32xf32> to vector<16xf32>
    %382 = vector.shape_cast %381 : vector<16xf32> to vector<16x1xf32>
    %cst_105 = arith.constant 3.200000e+01 : f32
    %383 = vector.broadcast %cst_105 : f32 to vector<16x1xf32>
    %384 = arith.divf %382, %383 : vector<16x1xf32>
    %cst_106 = arith.constant 9.99999974E-6 : f32
    %385 = vector.broadcast %cst_106 : f32 to vector<16x1xf32>
    %386 = arith.addf %384, %385 : vector<16x1xf32>
    %387 = math.rsqrt %386 : vector<16x1xf32>
    %388 = vector.broadcast %387 : vector<16x1xf32> to vector<16x32xf32>
    %389 = arith.mulf %379, %388 : vector<16x32xf32>
    %390 = vector.broadcast %4 : vector<1x32xf32> to vector<16x32xf32>
    %391 = arith.mulf %389, %390 : vector<16x32xf32>
    %392 = vector.broadcast %5 : vector<1x32xf32> to vector<16x32xf32>
    %393 = arith.addf %391, %392 : vector<16x32xf32>
    %394 = arith.truncf %393 : vector<16x32xf32> to vector<16x32xbf16>
    %cst_107 = arith.constant dense<0.000000e+00> : vector<16x64xf32>
    %395 = tpu.matmul %394, %13, %cst_107 {dimension_numbers = #tpu.dot_dimension_numbers<[1], [0], [0], [1], [0, 0, 1, 1], [], []>} : vector<16x32xbf16>, vector<32x64xbf16>, vector<16x64xf32> -> vector<16x64xf32>
    %396 = vector.broadcast %7 : vector<1x64xf32> to vector<16x64xf32>
    %397 = arith.addf %395, %396 : vector<16x64xf32>
    %cst_108 = arith.constant 0.000000e+00 : f32
    %398 = vector.broadcast %cst_108 : f32 to vector<16x64xf32>
    %399 = arith.maximumf %397, %398 : vector<16x64xf32>
    %400 = arith.truncf %399 : vector<16x64xf32> to vector<16x64xbf16>
    %cst_109 = arith.constant dense<0.000000e+00> : vector<16x32xf32>
    %401 = tpu.matmul %400, %14, %cst_109 {dimension_numbers = #tpu.dot_dimension_numbers<[1], [0], [0], [1], [0, 0, 1, 1], [], []>} : vector<16x64xbf16>, vector<64x32xbf16>, vector<16x32xf32> -> vector<16x32xf32>
    %402 = arith.addf %373, %401 : vector<16x32xf32>
    %403 = vector.broadcast %6 : vector<1x32xf32> to vector<16x32xf32>
    %404 = arith.addf %402, %403 : vector<16x32xf32>
    %c0_110 = arith.constant 0 : index
    %c0_111 = arith.constant 0 : index
    %405 = vector.load %arg5[%c0_110, %c0_111] : memref<16x32xf32, #tpu.memory_space<vmem>>, vector<16x32xf32>
    tpu.vector_store %arg5[%c0_110, %c0_111], %404 {strides = array<i32>} : memref<16x32xf32, #tpu.memory_space<vmem>>, vector<16x32xf32>,
    return
  }
  func.func @transform_0(%arg0: i32) -> (i32, i32) {
    %c0_i32 = arith.constant 0 : i32
    %c0_i32_0 = arith.constant 0 : i32
    return %arg0, %c0_i32 : i32, i32
  }
  func.func @transform_1(%arg0: i32) -> (i32, i32) {
    %c0_i32 = arith.constant 0 : i32
    %c0_i32_0 = arith.constant 0 : i32
    return %arg0, %c0_i32 : i32, i32
  }
  func.func @transform_2(%arg0: i32) -> (i32, i32) {
    %c0_i32 = arith.constant 0 : i32
    %c0_i32_0 = arith.constant 0 : i32
    %c0_i32_1 = arith.constant 0 : i32
    return %c0_i32, %c0_i32_0 : i32, i32
  }
  func.func @transform_3(%arg0: i32) -> (i32, i32) {
    %c0_i32 = arith.constant 0 : i32
    %c0_i32_0 = arith.constant 0 : i32
    %c0_i32_1 = arith.constant 0 : i32
    return %c0_i32, %c0_i32_0 : i32, i32
  }
  func.func @transform_4(%arg0: i32) -> (i32, i32) {
    %c0_i32 = arith.constant 0 : i32
    %c0_i32_0 = arith.constant 0 : i32
    return %arg0, %c0_i32 : i32, i32
  }
}

</mosaic_0001>

<llo_original>
// kernel: tpu_custom_call.1
$region0: #{tpu_custom_call.1}
  #allocation0 [shape = 'u32[]', space=smem, size = 0x4, offset = 0x4, fixed_abs, tag = 'smem constant byte address 0x4 - core index']
  #allocation1 [shape = 'u32[144,128]{1,0:T(1,128)}', space=vmem, size = 0x12000, scoped, tag = 'internal scratch']
  %s0 = inlined_call_operand.hbm [shape: f32[16,64], index: 0, kind: input, shape index: {}]
  %s1 = inlined_call_operand.hbm [shape: f32[32,64], index: 1, kind: input, shape index: {}]
  %s2 = inlined_call_operand.hbm [shape: f32[8,128], index: 2, kind: input, shape index: {}]
  %s3 = inlined_call_operand.hbm [shape: bf16[256,128], index: 3, kind: input, shape index: {}]
  %s4 = inlined_call_operand.hbm [shape: f32[16,32], index: 4, kind: output, shape index: {}]
  %s5 = sld [smem:[#allocation0]]
  $region42: #{tpu_custom_call.1} parent=0
    _
  %s7 = ssub.s32 1, %s5
  %s8 = scalar_select 0, %s7, %s5
  $region1: #{tpu_custom_call.1} parent=0
    #allocation2 [shape = 'u8[8192]{0}', space=vmem, size = 0x2000, scoped, tag = 'input window, operand 0, single buffered']
    #allocation3 [shape = 's32[1]{0}', space=sflag, size = 0x4, scoped, tag = 'scoped memory for tpu_custom_call.1']
    #allocation4 [shape = 's32[1]{0}', space=sflag, size = 0x4, scoped, tag = 'scoped memory for tpu_custom_call.1']
    #allocation5 [shape = 'u8[16384]{0}', space=vmem, size = 0x4000, scoped, tag = 'input window, operand 1, single buffered']
    #allocation6 [shape = 's32[1]{0}', space=sflag, size = 0x4, scoped, tag = 'scoped memory for tpu_custom_call.1']
    #allocation7 [shape = 'u8[4096]{0}', space=vmem, size = 0x1000, scoped, tag = 'input window, operand 2, single buffered']
    #allocation8 [shape = 'u8[65536]{0}', space=vmem, size = 0x10000, scoped, tag = 'input window, operand 3, single buffered']
    #allocation9 [shape = 's32[1]{0}', space=sflag, size = 0x4, scoped, tag = 'scoped memory for tpu_custom_call.1']
    #allocation10 [shape = 'u8[8192]{0}', space=vmem, size = 0x2000, scoped, tag = 'output window, operand 0, single buffered']
    %9 = vsyncpa [#allocation3], 0
    %10 = vsyncpa [#allocation6], 0
    %11 = vsyncpa [#allocation9], 0
    %12 = vsyncpa [#allocation4], 0
    // Predicated region
    $region2: #{tpu_custom_call.1} parent=1 // pred_check
      _
    $region3: #{tpu_custom_call.1} parent=1 // pred_check_branch
      %14 = sbr.rel (0) target = $region5
    $region4: #{tpu_custom_call.1} parent=1 // pred_region
      %s16 = ssub.s32 256, 256
      %17 = vsyncadd [#allocation3], %s16
      %s18 = sshll.u32 [#allocation2], 4
      %s19 = int_to_ptr.vmem [resolvable:$true] %s18
      %24 = dma.hbm_to_vmem [thread:$0]  %s0, 256, %s19, [#allocation3], 128, 128, 8
    $region5: #{tpu_custom_call.1} parent=1 // pred_fallthru
      _
    // Predicated region
    $region6: #{tpu_custom_call.1} parent=1 // pred_check
      _
    $region7: #{tpu_custom_call.1} parent=1 // pred_check_branch
      %26 = sbr.rel (0) target = $region9
    $region8: #{tpu_custom_call.1} parent=1 // pred_region
      %s28 = ssub.s32 512, 512
      %29 = vsyncadd [#allocation6], %s28
      %s30 = sshll.u32 [#allocation5], 4
      %s31 = int_to_ptr.vmem [resolvable:$true] %s30
      %36 = dma.hbm_to_vmem [thread:$0]  %s1, 512, %s31, [#allocation6], 128, 128, 8
    $region9: #{tpu_custom_call.1} parent=1 // pred_fallthru
      _
    // Predicated region
    $region10: #{tpu_custom_call.1} parent=1 // pred_check
      _
    $region11: #{tpu_custom_call.1} parent=1 // pred_check_branch
      %38 = sbr.rel (0) target = $region13
    $region12: #{tpu_custom_call.1} parent=1 // pred_region
      %s40 = ssub.s32 128, 128
      %41 = vsyncadd [#allocation6], %s40
      %s43 = sshll.u32 [#allocation7], 4
      %s44 = int_to_ptr.vmem [resolvable:$true] %s43
      %46 = dma.hbm_to_vmem [thread:$0]  %s2, 128, %s44, [#allocation6]
    $region13: #{tpu_custom_call.1} parent=1 // pred_fallthru
      _
    // Predicated region
    $region14: #{tpu_custom_call.1} parent=1 // pred_check
      _
    $region15: #{tpu_custom_call.1} parent=1 // pred_check_branch
      %48 = sbr.rel (0) target = $region17
    $region16: #{tpu_custom_call.1} parent=1 // pred_region
      %s50 = ssub.s32 2048, 2048
      %51 = vsyncadd [#allocation9], %s50
      %s52 = sshll.u32 [#allocation8], 4
      %s53 = int_to_ptr.vmem [resolvable:$true] %s52
      %58 = dma.hbm_to_vmem [thread:$0]  %s3, 2048, %s53, [#allocation9], 64, 64, 4
    $region17: #{tpu_custom_call.1} parent=1 // pred_fallthru
      _
    // Predicated region
    $region18: #{tpu_custom_call.1} parent=1 // pred_check
      _
    $region19: #{tpu_custom_call.1} parent=1 // pred_check_branch
      %60 = sbr.rel (0) target = $region21
    $region20: #{tpu_custom_call.1} parent=1 // pred_region
      %61 = dma.done [#allocation3], 256
    $region21: #{tpu_custom_call.1} parent=1 // pred_fallthru
      _
    // Predicated region
    $region22: #{tpu_custom_call.1} parent=1 // pred_check
      _
    $region23: #{tpu_custom_call.1} parent=1 // pred_check_branch
      %63 = sbr.rel (0) target = $region25
    $region24: #{tpu_custom_call.1} parent=1 // pred_region
      %64 = dma.done [#allocation6], 512
    $region25: #{tpu_custom_call.1} parent=1 // pred_fallthru
      _
    // Predicated region
    $region26: #{tpu_custom_call.1} parent=1 // pred_check
      _
    $region27: #{tpu_custom_call.1} parent=1 // pred_check_branch
      %66 = sbr.rel (0) target = $region29
    $region28: #{tpu_custom_call.1} parent=1 // pred_region
      %67 = dma.done [#allocation6], 128
    $region29: #{tpu_custom_call.1} parent=1 // pred_fallthru
      _
    // Predicated region
    $region30: #{tpu_custom_call.1} parent=1 // pred_check
      _
    $region31: #{tpu_custom_call.1} parent=1 // pred_check_branch
      %69 = sbr.rel (0) target = $region33
    $region32: #{tpu_custom_call.1} parent=1 // pred_region
      %70 = dma.done [#allocation9], 2048
    $region33: #{tpu_custom_call.1} parent=1 // pred_fallthru
      _
    %v72 = vld [vmem:[#allocation7] sm:$0x1]
    %v73 = vld [vmem:[#allocation7 + $0x1] sm:$0x1]
    %v74 = vld [vmem:[#allocation7 + $0x2] sm:$0x1]
    %v75 = vld [vmem:[#allocation7 + $0x3] sm:$0x1]
    %v76 = vld [vmem:[#allocation7 + $0x4] sm:$0x1]
    %v77 = vld [vmem:[#allocation7 + $0x5] sm:$0x1]
    %v78 = vld [vmem:[#allocation7 + $0x6] sm:$0x1]
    %v79 = vld [vmem:[#allocation7 + $0x7] sm:$0x1]
    %v80 = vld [vmem:[#allocation8] sm:$0xf]
    %v81 = vld [vmem:[#allocation8 + $0x4] sm:$0xf]
    %v82 = vld [vmem:[#allocation8 + $0x8] sm:$0xf]
    %v83 = vld [vmem:[#allocation8 + $0xc] sm:$0xf]
    %v84 = vld [vmem:[#allocation8 + $0x10] sm:$0xf]
    %v85 = vld [vmem:[#allocation8 + $0x14] sm:$0xf]
    %v86 = vld [vmem:[#allocation8 + $0x18] sm:$0xf]
    %v87 = vld [vmem:[#allocation8 + $0x1c] sm:$0xf]
    %v88 = vld [vmem:[#allocation8 + $0x20] sm:$0xf]
    %v89 = vld [vmem:[#allocation8 + $0x24] sm:$0xf]
    %v90 = vld [vmem:[#allocation8 + $0x28] sm:$0xf]
    %v91 = vld [vmem:[#allocation8 + $0x2c] sm:$0xf]
    %v92 = vld [vmem:[#allocation8 + $0x30] sm:$0xf]
    %v93 = vld [vmem:[#allocation8 + $0x34] sm:$0xf]
    %v94 = vld [vmem:[#allocation8 + $0x38] sm:$0xf]
    %v95 = vld [vmem:[#allocation8 + $0x3c] sm:$0xf]
    %v96 = vld [vmem:[#allocation8 + $0x40] sm:$0xf]
    %v97 = vld [vmem:[#allocation8 + $0x44] sm:$0xf]
    %v98 = vld [vmem:[#allocation8 + $0x48] sm:$0xf]
    %v99 = vld [vmem:[#allocation8 + $0x4c] sm:$0xf]
    %v100 = vld [vmem:[#allocation8 + $0x50] sm:$0xf]
    %v101 = vld [vmem:[#allocation8 + $0x54] sm:$0xf]
    %v102 = vld [vmem:[#allocation8 + $0x58] sm:$0xf]
    %v103 = vld [vmem:[#allocation8 + $0x5c] sm:$0xf]
    %v104 = vld [vmem:[#allocation8 + $0x60] sm:$0xf]
    %v105 = vld [vmem:[#allocation8 + $0x64] sm:$0xf]
    %v106 = vld [vmem:[#allocation8 + $0x68] sm:$0xf]
    %v107 = vld [vmem:[#allocation8 + $0x6c] sm:$0xf]
    %v108 = vld [vmem:[#allocation8 + $0x70] sm:$0xf]
    %v109 = vld [vmem:[#allocation8 + $0x74] sm:$0xf]
    %v110 = vld [vmem:[#allocation8 + $0x78] sm:$0xf]
    %v111 = vld [vmem:[#allocation8 + $0x7c] sm:$0xf]
    %v112 = vld [vmem:[#allocation2] sm:$0xff]
    %v113 = vld [vmem:[#allocation2 + $0x8] sm:$0xff]
    %v114 = vld [vmem:[#allocation5] sm:$0xff]
    %v115 = vld [vmem:[#allocation5 + $0x8] sm:$0xff]
    %v116 = vld [vmem:[#allocation5 + $0x10] sm:$0xff]
    %v117 = vld [vmem:[#allocation5 + $0x18] sm:$0xff]
    %vm118 = vcmask 261120
    %v119 = vsel %vm118, %v112, 0.0
    %120 = vadd.xlane.f32.xlu0 %v119
    %v121 = vpop.xlane.xlu0 %120
    %v122 = vsel %vm118, %v113, 0.0
    %123 = vadd.xlane.f32.xlu0 %v122
    %v124 = vpop.xlane.xlu0 %123
    %v125 = vrcp.pop 32.0
    %v126 = vmul.f32 %v121, %v125
    %v127 = vmul.f32 %v124, %v125
    %v128 = vsub.f32 %v112, %v126
    %v129 = vsub.f32 %v113, %v127
    %v130 = vmul.f32 %v128, %v128
    %v131 = vmul.f32 %v129, %v129
    %v132 = vsel %vm118, %v130, 0.0
    %133 = vadd.xlane.f32.xlu0 %v132
    %v134 = vpop.xlane.xlu0 %133
    %v135 = vsel %vm118, %v131, 0.0
    %136 = vadd.xlane.f32.xlu0 %v135
    %v137 = vpop.xlane.xlu0 %136
    %v138 = vmul.f32 %v134, %v125
    %v139 = vmul.f32 %v137, %v125
    %v140 = vadd.f32 %v138, 1e-05
    %v141 = vadd.f32 %v139, 1e-05
    %v142 = vrsqrt.pop %v140
    %v143 = vrsqrt.pop %v141
    %v144 = vmul.f32 %v128, %v142
    %v145 = vmul.f32 %v129, %v143
    %v146 = vlaneseq
    %v147 = vshrl.u32 %v146, 7
    %v148 = vsub.s32 0, %v147
    %v149 = vrot.slane %v72, %v148
    %v150 = vmul.f32 %v144, %v149
    %v151 = vmul.f32 %v145, %v149
    %v152 = vlaneseq
    %v153 = vshrl.u32 %v152, 7
    %v154 = vsub.s32 0, %v153
    %v155 = vrot.slane %v73, %v154
    %v156 = vadd.f32 %v150, %v155
    %v157 = vadd.f32 %v151, %v155
    %160 = vrot.lane.b32.xlu0 %v112, 96
    %v161 = vpop.permute.xlu0 %160
    %162 = vrot.lane.b32.xlu0 %v113, 96
    %v163 = vpop.permute.xlu0 %162
    %v166 = vadd.f32 %v156, %v161
    %v167 = vadd.f32 %v157, %v163
    %v168 = vpack.c.bf16 %v167, %v166
    %v173 = vunpack.c.l.b16 %v80
    %v174 = vunpack.c.l.b16 %v81
    %v175 = vunpack.c.l.b16 %v82
    %v176 = vunpack.c.l.b16 %v83
    %v177 = vpack.c.b16 %v174, %v173
    %v178 = vpack.c.b16 %v176, %v175
    %v182 = vsel %vm118, %v168, 0
    %184 = vmatprep.subr.bf16.mxu0 0
    %185 = vmatpush1.bf16.msra.mxu0 %v177
    %186 = vmatprep.subr.bf16.mxu0 0
    %187 = vmatpush1.bf16.msra.mxu0 %v178
    %188 = vmatprep.subr.bf16.mxu0 0
    %189 = vmatpush1.bf16.msra.mxu0 0
    %190 = vmatprep.subr.bf16.mxu0 0
    %191 = vmatpush1.bf16.msra.mxu0 0
    %192 = vmatprep.subr.bf16.mxu0 0
    %193 = vmatpush1.bf16.msra.mxu0 0
    %194 = vmatprep.subr.bf16.mxu0 0
    %195 = vmatpush1.bf16.msra.mxu0 0
    %196 = vmatprep.subr.bf16.mxu0 0
    %197 = vmatpush1.bf16.msra.mxu0 0
    %198 = vmatprep.subr.bf16.mxu0 0
    %199 = vmatpush1.bf16.msra.mxu0 0
    %200 = vmatprep.subr.bf16.mxu0 0
    %201 = vmatpush1.bf16.msra.mxu0 0
    %202 = vmatprep.subr.bf16.mxu0 0
    %203 = vmatpush1.bf16.msra.mxu0 0
    %204 = vmatprep.subr.bf16.mxu0 0
    %205 = vmatpush1.bf16.msra.mxu0 0
    %206 = vmatprep.subr.bf16.mxu0 0
    %207 = vmatpush1.bf16.msra.mxu0 0
    %208 = vmatprep.subr.bf16.mxu0 0
    %209 = vmatpush1.bf16.msra.mxu0 0
    %210 = vmatprep.subr.bf16.mxu0 0
    %211 = vmatpush1.bf16.msra.mxu0 0
    %212 = vmatprep.subr.bf16.mxu0 0
    %213 = vmatpush1.bf16.msra.mxu0 0
    %214 = vmatprep.subr.bf16.mxu0 0
    %215 = vmatpush1.bf16.msra.mxu0 0
    %216 = vmatprep.mubr.bf16.mxu0 0
    %217 = vmatmul.mubr.bf16.gmra.mrb[0].mxu0 %v182
    %v218 = vpop.f32.mrb[0].mxu0
    %v219 = vadd.f32 0.0, %v218
    %v220 = vpop.f32.mrb[0].mxu0
    %v221 = vpop.f32.mrb[0].mxu0
    %v222 = vadd.f32 0.0, %v221
    %v223 = vpop.f32.mrb[0].mxu0
    %224 = vdwg.mxu0
    %v225 = vpack.c.bf16 %v157, %v156
    %v230 = vunpack.c.l.b16 %v84
    %v231 = vunpack.c.l.b16 %v85
    %v232 = vunpack.c.l.b16 %v86
    %v233 = vunpack.c.l.b16 %v87
    %v234 = vpack.c.b16 %v231, %v230
    %v235 = vpack.c.b16 %v233, %v232
    %v239 = vsel %vm118, %v225, 0
    %241 = vmatprep.subr.bf16.mxu0 0
    %242 = vmatpush1.bf16.msra.mxu0 %v234
    %243 = vmatprep.subr.bf16.mxu0 0
    %244 = vmatpush1.bf16.msra.mxu0 %v235
    %245 = vmatprep.subr.bf16.mxu0 0
    %246 = vmatpush1.bf16.msra.mxu0 0
    %247 = vmatprep.subr.bf16.mxu0 0
    %248 = vmatpush1.bf16.msra.mxu0 0
    %249 = vmatprep.subr.bf16.mxu0 0
    %250 = vmatpush1.bf16.msra.mxu0 0
    %251 = vmatprep.subr.bf16.mxu0 0
    %252 = vmatpush1.bf16.msra.mxu0 0
    %253 = vmatprep.subr.bf16.mxu0 0
    %254 = vmatpush1.bf16.msra.mxu0 0
    %255 = vmatprep.subr.bf16.mxu0 0
    %256 = vmatpush1.bf16.msra.mxu0 0
    %257 = vmatprep.subr.bf16.mxu0 0
    %258 = vmatpush1.bf16.msra.mxu0 0
    %259 = vmatprep.subr.bf16.mxu0 0
    %260 = vmatpush1.bf16.msra.mxu0 0
    %261 = vmatprep.subr.bf16.mxu0 0
    %262 = vmatpush1.bf16.msra.mxu0 0
    %263 = vmatprep.subr.bf16.mxu0 0
    %264 = vmatpush1.bf16.msra.mxu0 0
    %265 = vmatprep.subr.bf16.mxu0 0
    %266 = vmatpush1.bf16.msra.mxu0 0
    %267 = vmatprep.subr.bf16.mxu0 0
    %268 = vmatpush1.bf16.msra.mxu0 0
    %269 = vmatprep.subr.bf16.mxu0 0
    %270 = vmatpush1.bf16.msra.mxu0 0
    %271 = vmatprep.subr.bf16.mxu0 0
    %272 = vmatpush1.bf16.msra.mxu0 0
    %273 = vmatprep.mubr.bf16.mxu0 0
    %274 = vmatmul.mubr.bf16.gmra.mrb[0].mxu0 %v239
    %v275 = vpop.f32.mrb[0].mxu0
    %v276 = vadd.f32 0.0, %v275
    %v277 = vpop.f32.mrb[0].mxu0
    %v278 = vpop.f32.mrb[0].mxu0
    %v279 = vadd.f32 0.0, %v278
    %v280 = vpop.f32.mrb[0].mxu0
    %281 = vdwg.mxu0
    %v282 = vpack.c.bf16 %v222, %v219
    %v283 = vpack.c.bf16 %v279, %v276
    %285 = vrot.lane.b32.xlu0 %v282, 96
    %v286 = vpop.permute.xlu0 %285
    %vm287 = vcmask 64512
    %v289 = vsel %vm287, %v282, 0
    %v292 = vsel %vm287, %v286, 0
    %294 = vmatprep.subr.bf16.mxu0 0
    %295 = vmatpush1.bf16.xpose.msra.mxu0 %v292
    %296 = vmatprep.subr.bf16.mxu0 0
    %297 = vmatpush1.bf16.xpose.msra.mxu0 0
    %298 = vmatprep.subr.bf16.mxu0 0
    %299 = vmatpush1.bf16.xpose.msra.mxu0 0
    %300 = vmatprep.subr.bf16.mxu0 0
    %301 = vmatpush1.bf16.xpose.msra.mxu0 0
    %302 = vmatprep.subr.bf16.mxu0 0
    %303 = vmatpush1.bf16.xpose.msra.mxu0 0
    %304 = vmatprep.subr.bf16.mxu0 0
    %305 = vmatpush1.bf16.xpose.msra.mxu0 0
    %306 = vmatprep.subr.bf16.mxu0 0
    %307 = vmatpush1.bf16.xpose.msra.mxu0 0
    %308 = vmatprep.subr.bf16.mxu0 0
    %309 = vmatpush1.bf16.xpose.msra.mxu0 0
    %310 = vmatprep.subr.bf16.mxu0 0
    %311 = vmatpush1.bf16.xpose.msra.mxu0 0
    %312 = vmatprep.subr.bf16.mxu0 0
    %313 = vmatpush1.bf16.xpose.msra.mxu0 0
    %314 = vmatprep.subr.bf16.mxu0 0
    %315 = vmatpush1.bf16.xpose.msra.mxu0 0
    %316 = vmatprep.subr.bf16.mxu0 0
    %317 = vmatpush1.bf16.xpose.msra.mxu0 0
    %318 = vmatprep.subr.bf16.mxu0 0
    %319 = vmatpush1.bf16.xpose.msra.mxu0 0
    %320 = vmatprep.subr.bf16.mxu0 0
    %321 = vmatpush1.bf16.xpose.msra.mxu0 0
    %322 = vmatprep.subr.bf16.mxu0 0
    %323 = vmatpush1.bf16.xpose.msra.mxu0 0
    %324 = vmatprep.subr.bf16.mxu0 0
    %325 = vmatpush1.bf16.xpose.msra.mxu0 0
    %326 = vmatprep.mubr.bf16.mxu0 0
    %327 = vmatmul.mubr.bf16.gmra.mrb[0].mxu0 %v289
    %v328 = vpop.f32.mrb[0].mxu0
    %v329 = vadd.f32 0.0, %v328
    %v330 = vpop.f32.mrb[0].mxu0
    %v331 = vpop.f32.mrb[0].mxu0
    %v332 = vpop.f32.mrb[0].mxu0
    %333 = vdwg.mxu0
    %v334 = vsel %vm287, %v329, -inf
    %335 = vmax.xlane.f32.xlu0 %v334
    %v336 = vpop.xlane.xlu0 %335
    %v337 = vsub.f32 %v329, %v336
    %v338 = vmul.f32 %v337, 1.442695
    %v339 = vpow.pop %v338
    %v340 = vsel %vm287, %v339, 0.0
    %341 = vadd.xlane.f32.xlu0 %v340
    %v342 = vpop.xlane.xlu0 %341
    %v343 = vrcp.pop %v342
    %v344 = vpack.c.bf16 %v339, %v339
    %v346 = vsel %vm287, %v344, 0
    %vm348 = vcmask 1043456
    %v350 = vsel %vm348, %v283, 0
    %352 = vmatprep.subr.bf16.mxu0 0
    %353 = vmatpush1.bf16.msra.mxu0 %v350
    %354 = vmatprep.subr.bf16.mxu0 0
    %355 = vmatpush1.bf16.msra.mxu0 0
    %356 = vmatprep.subr.bf16.mxu0 0
    %357 = vmatpush1.bf16.msra.mxu0 0
    %358 = vmatprep.subr.bf16.mxu0 0
    %359 = vmatpush1.bf16.msra.mxu0 0
    %360 = vmatprep.subr.bf16.mxu0 0
    %361 = vmatpush1.bf16.msra.mxu0 0
    %362 = vmatprep.subr.bf16.mxu0 0
    %363 = vmatpush1.bf16.msra.mxu0 0
    %364 = vmatprep.subr.bf16.mxu0 0
    %365 = vmatpush1.bf16.msra.mxu0 0
    %366 = vmatprep.subr.bf16.mxu0 0
    %367 = vmatpush1.bf16.msra.mxu0 0
    %368 = vmatprep.subr.bf16.mxu0 0
    %369 = vmatpush1.bf16.msra.mxu0 0
    %370 = vmatprep.subr.bf16.mxu0 0
    %371 = vmatpush1.bf16.msra.mxu0 0
    %372 = vmatprep.subr.bf16.mxu0 0
    %373 = vmatpush1.bf16.msra.mxu0 0
    %374 = vmatprep.subr.bf16.mxu0 0
    %375 = vmatpush1.bf16.msra.mxu0 0
    %376 = vmatprep.subr.bf16.mxu0 0
    %377 = vmatpush1.bf16.msra.mxu0 0
    %378 = vmatprep.subr.bf16.mxu0 0
    %379 = vmatpush1.bf16.msra.mxu0 0
    %380 = vmatprep.subr.bf16.mxu0 0
    %381 = vmatpush1.bf16.msra.mxu0 0
    %382 = vmatprep.subr.bf16.mxu0 0
    %383 = vmatpush1.bf16.msra.mxu0 0
    %384 = vmatprep.mubr.bf16.mxu0 0
    %385 = vmatmul.mubr.bf16.gmra.mrb[0].mxu0 %v346
    %v386 = vpop.f32.mrb[0].mxu0
    %v387 = vadd.f32 0.0, %v386
    %v388 = vpop.f32.mrb[0].mxu0
    %v389 = vpop.f32.mrb[0].mxu0
    %v390 = vpop.f32.mrb[0].mxu0
    %391 = vdwg.mxu0
    %v392 = vmul.f32 %v387, %v343
    %v393 = vadd.f32 %v392, 0.0
    %394 = vrot.lane.b32.xlu0 %v282, 120
    %v395 = vpop.permute.xlu0 %394
    %396 = vrot.lane.b32.xlu0 %v282, 88
    %v397 = vpop.permute.xlu0 %396
    %v399 = vsel %vm287, %v395, 0
    %v402 = vsel %vm287, %v397, 0
    %404 = vmatprep.subr.bf16.mxu0 0
    %405 = vmatpush1.bf16.xpose.msra.mxu0 %v402
    %406 = vmatprep.subr.bf16.mxu0 0
    %407 = vmatpush1.bf16.xpose.msra.mxu0 0
    %408 = vmatprep.subr.bf16.mxu0 0
    %409 = vmatpush1.bf16.xpose.msra.mxu0 0
    %410 = vmatprep.subr.bf16.mxu0 0
    %411 = vmatpush1.bf16.xpose.msra.mxu0 0
    %412 = vmatprep.subr.bf16.mxu0 0
    %413 = vmatpush1.bf16.xpose.msra.mxu0 0
    %414 = vmatprep.subr.bf16.mxu0 0
    %415 = vmatpush1.bf16.xpose.msra.mxu0 0
    %416 = vmatprep.subr.bf16.mxu0 0
    %417 = vmatpush1.bf16.xpose.msra.mxu0 0
    %418 = vmatprep.subr.bf16.mxu0 0
    %419 = vmatpush1.bf16.xpose.msra.mxu0 0
    %420 = vmatprep.subr.bf16.mxu0 0
    %421 = vmatpush1.bf16.xpose.msra.mxu0 0
    %422 = vmatprep.subr.bf16.mxu0 0
    %423 = vmatpush1.bf16.xpose.msra.mxu0 0
    %424 = vmatprep.subr.bf16.mxu0 0
    %425 = vmatpush1.bf16.xpose.msra.mxu0 0
    %426 = vmatprep.subr.bf16.mxu0 0
    %427 = vmatpush1.bf16.xpose.msra.mxu0 0
    %428 = vmatprep.subr.bf16.mxu0 0
    %429 = vmatpush1.bf16.xpose.msra.mxu0 0
    %430 = vmatprep.subr.bf16.mxu0 0
    %431 = vmatpush1.bf16.xpose.msra.mxu0 0
    %432 = vmatprep.subr.bf16.mxu0 0
    %433 = vmatpush1.bf16.xpose.msra.mxu0 0
    %434 = vmatprep.subr.bf16.mxu0 0
    %435 = vmatpush1.bf16.xpose.msra.mxu0 0
    %436 = vmatprep.mubr.bf16.mxu0 0
    %437 = vmatmul.mubr.bf16.gmra.mrb[0].mxu0 %v399
    %v438 = vpop.f32.mrb[0].mxu0
    %v439 = vadd.f32 0.0, %v438
    %v440 = vpop.f32.mrb[0].mxu0
    %v441 = vpop.f32.mrb[0].mxu0
    %v442 = vpop.f32.mrb[0].mxu0
    %443 = vdwg.mxu0
    %v444 = vsel %vm287, %v439, -inf
    %445 = vmax.xlane.f32.xlu0 %v444
    %v446 = vpop.xlane.xlu0 %445
    %v447 = vsub.f32 %v439, %v446
    %v448 = vmul.f32 %v447, 1.442695
    %v449 = vpow.pop %v448
    %v450 = vsel %vm287, %v449, 0.0
    %451 = vadd.xlane.f32.xlu0 %v450
    %v452 = vpop.xlane.xlu0 %451
    %v453 = vrcp.pop %v452
    %v454 = vpack.c.bf16 %v449, %v449
    %456 = vrot.lane.b32.xlu0 %v283, 96
    %v457 = vpop.permute.xlu0 %456
    %v459 = vsel %vm287, %v454, 0
    %v462 = vsel %vm348, %v457, 0
    %464 = vmatprep.subr.bf16.mxu0 0
    %465 = vmatpush1.bf16.msra.mxu0 %v462
    %466 = vmatprep.subr.bf16.mxu0 0
    %467 = vmatpush1.bf16.msra.mxu0 0
    %468 = vmatprep.subr.bf16.mxu0 0
    %469 = vmatpush1.bf16.msra.mxu0 0
    %470 = vmatprep.subr.bf16.mxu0 0
    %471 = vmatpush1.bf16.msra.mxu0 0
    %472 = vmatprep.subr.bf16.mxu0 0
    %473 = vmatpush1.bf16.msra.mxu0 0
    %474 = vmatprep.subr.bf16.mxu0 0
    %475 = vmatpush1.bf16.msra.mxu0 0
    %476 = vmatprep.subr.bf16.mxu0 0
    %477 = vmatpush1.bf16.msra.mxu0 0
    %478 = vmatprep.subr.bf16.mxu0 0
    %479 = vmatpush1.bf16.msra.mxu0 0
    %480 = vmatprep.subr.bf16.mxu0 0
    %481 = vmatpush1.bf16.msra.mxu0 0
    %482 = vmatprep.subr.bf16.mxu0 0
    %483 = vmatpush1.bf16.msra.mxu0 0
    %484 = vmatprep.subr.bf16.mxu0 0
    %485 = vmatpush1.bf16.msra.mxu0 0
    %486 = vmatprep.subr.bf16.mxu0 0
    %487 = vmatpush1.bf16.msra.mxu0 0
    %488 = vmatprep.subr.bf16.mxu0 0
    %489 = vmatpush1.bf16.msra.mxu0 0
    %490 = vmatprep.subr.bf16.mxu0 0
    %491 = vmatpush1.bf16.msra.mxu0 0
    %492 = vmatprep.subr.bf16.mxu0 0
    %493 = vmatpush1.bf16.msra.mxu0 0
    %494 = vmatprep.subr.bf16.mxu0 0
    %495 = vmatpush1.bf16.msra.mxu0 0
    %496 = vmatprep.mubr.bf16.mxu0 0
    %497 = vmatmul.mubr.bf16.gmra.mrb[0].mxu0 %v459
    %v498 = vpop.f32.mrb[0].mxu0
    %v499 = vadd.f32 0.0, %v498
    %v500 = vpop.f32.mrb[0].mxu0
    %v501 = vpop.f32.mrb[0].mxu0
    %v502 = vpop.f32.mrb[0].mxu0
    %503 = vdwg.mxu0
    %v504 = vmul.f32 %v499, %v453
    %v505 = vadd.f32 %v393, %v504
    %506 = vrot.lane.b32.xlu0 %v282, 112
    %v507 = vpop.permute.xlu0 %506
    %508 = vrot.lane.b32.xlu0 %v282, 80
    %v509 = vpop.permute.xlu0 %508
    %v511 = vsel %vm287, %v507, 0
    %v514 = vsel %vm287, %v509, 0
    %516 = vmatprep.subr.bf16.mxu0 0
    %517 = vmatpush1.bf16.xpose.msra.mxu0 %v514
    %518 = vmatprep.subr.bf16.mxu0 0
    %519 = vmatpush1.bf16.xpose.msra.mxu0 0
    %520 = vmatprep.subr.bf16.mxu0 0
    %521 = vmatpush1.bf16.xpose.msra.mxu0 0
    %522 = vmatprep.subr.bf16.mxu0 0
    %523 = vmatpush1.bf16.xpose.msra.mxu0 0
    %524 = vmatprep.subr.bf16.mxu0 0
    %525 = vmatpush1.bf16.xpose.msra.mxu0 0
    %526 = vmatprep.subr.bf16.mxu0 0
    %527 = vmatpush1.bf16.xpose.msra.mxu0 0
    %528 = vmatprep.subr.bf16.mxu0 0
    %529 = vmatpush1.bf16.xpose.msra.mxu0 0
    %530 = vmatprep.subr.bf16.mxu0 0
    %531 = vmatpush1.bf16.xpose.msra.mxu0 0
    %532 = vmatprep.subr.bf16.mxu0 0
    %533 = vmatpush1.bf16.xpose.msra.mxu0 0
    %534 = vmatprep.subr.bf16.mxu0 0
    %535 = vmatpush1.bf16.xpose.msra.mxu0 0
    %536 = vmatprep.subr.bf16.mxu0 0
    %537 = vmatpush1.bf16.xpose.msra.mxu0 0
    %538 = vmatprep.subr.bf16.mxu0 0
    %539 = vmatpush1.bf16.xpose.msra.mxu0 0
    %540 = vmatprep.subr.bf16.mxu0 0
    %541 = vmatpush1.bf16.xpose.msra.mxu0 0
    %542 = vmatprep.subr.bf16.mxu0 0
    %543 = vmatpush1.bf16.xpose.msra.mxu0 0
    %544 = vmatprep.subr.bf16.mxu0 0
    %545 = vmatpush1.bf16.xpose.msra.mxu0 0
    %546 = vmatprep.subr.bf16.mxu0 0
    %547 = vmatpush1.bf16.xpose.msra.mxu0 0
    %548 = vmatprep.mubr.bf16.mxu0 0
    %549 = vmatmul.mubr.bf16.gmra.mrb[0].mxu0 %v511
    %v550 = vpop.f32.mrb[0].mxu0
    %v551 = vadd.f32 0.0, %v550
    %v552 = vpop.f32.mrb[0].mxu0
    %v553 = vpop.f32.mrb[0].mxu0
    %v554 = vpop.f32.mrb[0].mxu0
    %555 = vdwg.mxu0
    %v556 = vsel %vm287, %v551, -inf
    %557 = vmax.xlane.f32.xlu0 %v556
    %v558 = vpop.xlane.xlu0 %557
    %v559 = vsub.f32 %v551, %v558
    %v560 = vmul.f32 %v559, 1.442695
    %v561 = vpow.pop %v560
    %v562 = vsel %vm287, %v561, 0.0
    %563 = vadd.xlane.f32.xlu0 %v562
    %v564 = vpop.xlane.xlu0 %563
    %v565 = vrcp.pop %v564
    %v566 = vpack.c.bf16 %v561, %v561
    %567 = vrot.lane.b32.xlu0 %v283, 64
    %v568 = vpop.permute.xlu0 %567
    %v570 = vsel %vm287, %v566, 0
    %v573 = vsel %vm348, %v568, 0
    %575 = vmatprep.subr.bf16.mxu0 0
    %576 = vmatpush1.bf16.msra.mxu0 %v573
    %577 = vmatprep.subr.bf16.mxu0 0
    %578 = vmatpush1.bf16.msra.mxu0 0
    %579 = vmatprep.subr.bf16.mxu0 0
    %580 = vmatpush1.bf16.msra.mxu0 0
    %581 = vmatprep.subr.bf16.mxu0 0
    %582 = vmatpush1.bf16.msra.mxu0 0
    %583 = vmatprep.subr.bf16.mxu0 0
    %584 = vmatpush1.bf16.msra.mxu0 0
    %585 = vmatprep.subr.bf16.mxu0 0
    %586 = vmatpush1.bf16.msra.mxu0 0
    %587 = vmatprep.subr.bf16.mxu0 0
    %588 = vmatpush1.bf16.msra.mxu0 0
    %589 = vmatprep.subr.bf16.mxu0 0
    %590 = vmatpush1.bf16.msra.mxu0 0
    %591 = vmatprep.subr.bf16.mxu0 0
    %592 = vmatpush1.bf16.msra.mxu0 0
    %593 = vmatprep.subr.bf16.mxu0 0
    %594 = vmatpush1.bf16.msra.mxu0 0
    %595 = vmatprep.subr.bf16.mxu0 0
    %596 = vmatpush1.bf16.msra.mxu0 0
    %597 = vmatprep.subr.bf16.mxu0 0
    %598 = vmatpush1.bf16.msra.mxu0 0
    %599 = vmatprep.subr.bf16.mxu0 0
    %600 = vmatpush1.bf16.msra.mxu0 0
    %601 = vmatprep.subr.bf16.mxu0 0
    %602 = vmatpush1.bf16.msra.mxu0 0
    %603 = vmatprep.subr.bf16.mxu0 0
    %604 = vmatpush1.bf16.msra.mxu0 0
    %605 = vmatprep.subr.bf16.mxu0 0
    %606 = vmatpush1.bf16.msra.mxu0 0
    %607 = vmatprep.mubr.bf16.mxu0 0
    %608 = vmatmul.mubr.bf16.gmra.mrb[0].mxu0 %v570
    %v609 = vpop.f32.mrb[0].mxu0
    %v610 = vadd.f32 0.0, %v609
    %v611 = vpop.f32.mrb[0].mxu0
    %v612 = vpop.f32.mrb[0].mxu0
    %v613 = vpop.f32.mrb[0].mxu0
    %614 = vdwg.mxu0
    %v615 = vmul.f32 %v610, %v565
    %v616 = vadd.f32 %v505, %v615
    %617 = vrot.lane.b32.xlu0 %v282, 104
    %v618 = vpop.permute.xlu0 %617
    %619 = vrot.lane.b32.xlu0 %v282, 72
    %v620 = vpop.permute.xlu0 %619
    %v622 = vsel %vm287, %v618, 0
    %v625 = vsel %vm287, %v620, 0
    %627 = vmatprep.subr.bf16.mxu0 0
    %628 = vmatpush1.bf16.xpose.msra.mxu0 %v625
    %629 = vmatprep.subr.bf16.mxu0 0
    %630 = vmatpush1.bf16.xpose.msra.mxu0 0
    %631 = vmatprep.subr.bf16.mxu0 0
    %632 = vmatpush1.bf16.xpose.msra.mxu0 0
    %633 = vmatprep.subr.bf16.mxu0 0
    %634 = vmatpush1.bf16.xpose.msra.mxu0 0
    %635 = vmatprep.subr.bf16.mxu0 0
    %636 = vmatpush1.bf16.xpose.msra.mxu0 0
    %637 = vmatprep.subr.bf16.mxu0 0
    %638 = vmatpush1.bf16.xpose.msra.mxu0 0
    %639 = vmatprep.subr.bf16.mxu0 0
    %640 = vmatpush1.bf16.xpose.msra.mxu0 0
    %641 = vmatprep.subr.bf16.mxu0 0
    %642 = vmatpush1.bf16.xpose.msra.mxu0 0
    %643 = vmatprep.subr.bf16.mxu0 0
    %644 = vmatpush1.bf16.xpose.msra.mxu0 0
    %645 = vmatprep.subr.bf16.mxu0 0
    %646 = vmatpush1.bf16.xpose.msra.mxu0 0
    %647 = vmatprep.subr.bf16.mxu0 0
    %648 = vmatpush1.bf16.xpose.msra.mxu0 0
    %649 = vmatprep.subr.bf16.mxu0 0
    %650 = vmatpush1.bf16.xpose.msra.mxu0 0
    %651 = vmatprep.subr.bf16.mxu0 0
    %652 = vmatpush1.bf16.xpose.msra.mxu0 0
    %653 = vmatprep.subr.bf16.mxu0 0
    %654 = vmatpush1.bf16.xpose.msra.mxu0 0
    %655 = vmatprep.subr.bf16.mxu0 0
    %656 = vmatpush1.bf16.xpose.msra.mxu0 0
    %657 = vmatprep.subr.bf16.mxu0 0
    %658 = vmatpush1.bf16.xpose.msra.mxu0 0
    %659 = vmatprep.mubr.bf16.mxu0 0
    %660 = vmatmul.mubr.bf16.gmra.mrb[0].mxu0 %v622
    %v661 = vpop.f32.mrb[0].mxu0
    %v662 = vadd.f32 0.0, %v661
    %v663 = vpop.f32.mrb[0].mxu0
    %v664 = vpop.f32.mrb[0].mxu0
    %v665 = vpop.f32.mrb[0].mxu0
    %666 = vdwg.mxu0
    %v667 = vsel %vm287, %v662, -inf
    %668 = vmax.xlane.f32.xlu0 %v667
    %v669 = vpop.xlane.xlu0 %668
    %v670 = vsub.f32 %v662, %v669
    %v671 = vmul.f32 %v670, 1.442695
    %v672 = vpow.pop %v671
    %v673 = vsel %vm287, %v672, 0.0
    %674 = vadd.xlane.f32.xlu0 %v673
    %v675 = vpop.xlane.xlu0 %674
    %v676 = vrcp.pop %v675
    %v677 = vpack.c.bf16 %v672, %v672
    %678 = vrot.lane.b32.xlu0 %v283, 32
    %v679 = vpop.permute.xlu0 %678
    %v681 = vsel %vm287, %v677, 0
    %v684 = vsel %vm348, %v679, 0
    %686 = vmatprep.subr.bf16.mxu0 0
    %687 = vmatpush1.bf16.msra.mxu0 %v684
    %688 = vmatprep.subr.bf16.mxu0 0
    %689 = vmatpush1.bf16.msra.mxu0 0
    %690 = vmatprep.subr.bf16.mxu0 0
    %691 = vmatpush1.bf16.msra.mxu0 0
    %692 = vmatprep.subr.bf16.mxu0 0
    %693 = vmatpush1.bf16.msra.mxu0 0
    %694 = vmatprep.subr.bf16.mxu0 0
    %695 = vmatpush1.bf16.msra.mxu0 0
    %696 = vmatprep.subr.bf16.mxu0 0
    %697 = vmatpush1.bf16.msra.mxu0 0
    %698 = vmatprep.subr.bf16.mxu0 0
    %699 = vmatpush1.bf16.msra.mxu0 0
    %700 = vmatprep.subr.bf16.mxu0 0
    %701 = vmatpush1.bf16.msra.mxu0 0
    %702 = vmatprep.subr.bf16.mxu0 0
    %703 = vmatpush1.bf16.msra.mxu0 0
    %704 = vmatprep.subr.bf16.mxu0 0
    %705 = vmatpush1.bf16.msra.mxu0 0
    %706 = vmatprep.subr.bf16.mxu0 0
    %707 = vmatpush1.bf16.msra.mxu0 0
    %708 = vmatprep.subr.bf16.mxu0 0
    %709 = vmatpush1.bf16.msra.mxu0 0
    %710 = vmatprep.subr.bf16.mxu0 0
    %711 = vmatpush1.bf16.msra.mxu0 0
    %712 = vmatprep.subr.bf16.mxu0 0
    %713 = vmatpush1.bf16.msra.mxu0 0
    %714 = vmatprep.subr.bf16.mxu0 0
    %715 = vmatpush1.bf16.msra.mxu0 0
    %716 = vmatprep.subr.bf16.mxu0 0
    %717 = vmatpush1.bf16.msra.mxu0 0
    %718 = vmatprep.mubr.bf16.mxu0 0
    %719 = vmatmul.mubr.bf16.gmra.mrb[0].mxu0 %v681
    %v720 = vpop.f32.mrb[0].mxu0
    %v721 = vadd.f32 0.0, %v720
    %v722 = vpop.f32.mrb[0].mxu0
    %v723 = vpop.f32.mrb[0].mxu0
    %v724 = vpop.f32.mrb[0].mxu0
    %725 = vdwg.mxu0
    %v726 = vmul.f32 %v721, %v676
    %v727 = vadd.f32 %v616, %v726
    %v728 = vrot.slane %v282, 4
    %729 = vrot.lane.b32.xlu0 %v728, 96
    %v730 = vpop.permute.xlu0 %729
    %v732 = vsel %vm287, %v728, 0
    %v735 = vsel %vm287, %v730, 0
    %737 = vmatprep.subr.bf16.mxu0 0
    %738 = vmatpush1.bf16.xpose.msra.mxu0 %v735
    %739 = vmatprep.subr.bf16.mxu0 0
    %740 = vmatpush1.bf16.xpose.msra.mxu0 0
    %741 = vmatprep.subr.bf16.mxu0 0
    %742 = vmatpush1.bf16.xpose.msra.mxu0 0
    %743 = vmatprep.subr.bf16.mxu0 0
    %744 = vmatpush1.bf16.xpose.msra.mxu0 0
    %745 = vmatprep.subr.bf16.mxu0 0
    %746 = vmatpush1.bf16.xpose.msra.mxu0 0
    %747 = vmatprep.subr.bf16.mxu0 0
    %748 = vmatpush1.bf16.xpose.msra.mxu0 0
    %749 = vmatprep.subr.bf16.mxu0 0
    %750 = vmatpush1.bf16.xpose.msra.mxu0 0
    %751 = vmatprep.subr.bf16.mxu0 0
    %752 = vmatpush1.bf16.xpose.msra.mxu0 0
    %753 = vmatprep.subr.bf16.mxu0 0
    %754 = vmatpush1.bf16.xpose.msra.mxu0 0
    %755 = vmatprep.subr.bf16.mxu0 0
    %756 = vmatpush1.bf16.xpose.msra.mxu0 0
    %757 = vmatprep.subr.bf16.mxu0 0
    %758 = vmatpush1.bf16.xpose.msra.mxu0 0
    %759 = vmatprep.subr.bf16.mxu0 0
    %760 = vmatpush1.bf16.xpose.msra.mxu0 0
    %761 = vmatprep.subr.bf16.mxu0 0
    %762 = vmatpush1.bf16.xpose.msra.mxu0 0
    %763 = vmatprep.subr.bf16.mxu0 0
    %764 = vmatpush1.bf16.xpose.msra.mxu0 0
    %765 = vmatprep.subr.bf16.mxu0 0
    %766 = vmatpush1.bf16.xpose.msra.mxu0 0
    %767 = vmatprep.subr.bf16.mxu0 0
    %768 = vmatpush1.bf16.xpose.msra.mxu0 0
    %769 = vmatprep.mubr.bf16.mxu0 0
    %770 = vmatmul.mubr.bf16.gmra.mrb[0].mxu0 %v732
    %v771 = vpop.f32.mrb[0].mxu0
    %v772 = vadd.f32 0.0, %v771
    %v773 = vpop.f32.mrb[0].mxu0
    %v774 = vpop.f32.mrb[0].mxu0
    %v775 = vpop.f32.mrb[0].mxu0
    %776 = vdwg.mxu0
    %v777 = vsel %vm287, %v772, -inf
    %778 = vmax.xlane.f32.xlu0 %v777
    %v779 = vpop.xlane.xlu0 %778
    %v780 = vsub.f32 %v772, %v779
    %v781 = vmul.f32 %v780, 1.442695
    %v782 = vpow.pop %v781
    %v783 = vsel %vm287, %v782, 0.0
    %784 = vadd.xlane.f32.xlu0 %v783
    %v785 = vpop.xlane.xlu0 %784
    %v786 = vrcp.pop %v785
    %v787 = vpack.c.bf16 %v782, %v782
    %v788 = vrot.slane %v283, 4
    %v790 = vsel %vm287, %v787, 0
    %v793 = vsel %vm348, %v788, 0
    %795 = vmatprep.subr.bf16.mxu0 0
    %796 = vmatpush1.bf16.msra.mxu0 %v793
    %797 = vmatprep.subr.bf16.mxu0 0
    %798 = vmatpush1.bf16.msra.mxu0 0
    %799 = vmatprep.subr.bf16.mxu0 0
    %800 = vmatpush1.bf16.msra.mxu0 0
    %801 = vmatprep.subr.bf16.mxu0 0
    %802 = vmatpush1.bf16.msra.mxu0 0
    %803 = vmatprep.subr.bf16.mxu0 0
    %804 = vmatpush1.bf16.msra.mxu0 0
    %805 = vmatprep.subr.bf16.mxu0 0
    %806 = vmatpush1.bf16.msra.mxu0 0
    %807 = vmatprep.subr.bf16.mxu0 0
    %808 = vmatpush1.bf16.msra.mxu0 0
    %809 = vmatprep.subr.bf16.mxu0 0
    %810 = vmatpush1.bf16.msra.mxu0 0
    %811 = vmatprep.subr.bf16.mxu0 0
    %812 = vmatpush1.bf16.msra.mxu0 0
    %813 = vmatprep.subr.bf16.mxu0 0
    %814 = vmatpush1.bf16.msra.mxu0 0
    %815 = vmatprep.subr.bf16.mxu0 0
    %816 = vmatpush1.bf16.msra.mxu0 0
    %817 = vmatprep.subr.bf16.mxu0 0
    %818 = vmatpush1.bf16.msra.mxu0 0
    %819 = vmatprep.subr.bf16.mxu0 0
    %820 = vmatpush1.bf16.msra.mxu0 0
    %821 = vmatprep.subr.bf16.mxu0 0
    %822 = vmatpush1.bf16.msra.mxu0 0
    %823 = vmatprep.subr.bf16.mxu0 0
    %824 = vmatpush1.bf16.msra.mxu0 0
    %825 = vmatprep.subr.bf16.mxu0 0
    %826 = vmatpush1.bf16.msra.mxu0 0
    %827 = vmatprep.mubr.bf16.mxu0 0
    %828 = vmatmul.mubr.bf16.gmra.mrb[0].mxu0 %v790
    %v829 = vpop.f32.mrb[0].mxu0
    %v830 = vadd.f32 0.0, %v829
    %v831 = vpop.f32.mrb[0].mxu0
    %v832 = vpop.f32.mrb[0].mxu0
    %v833 = vpop.f32.mrb[0].mxu0
    %834 = vdwg.mxu0
    %v835 = vmul.f32 %v830, %v786
    %v836 = vadd.f32 %v835, 0.0
    %837 = vrot.lane.b32.xlu0 %v728, 120
    %v838 = vpop.permute.xlu0 %837
    %839 = vrot.lane.b32.xlu0 %v728, 88
    %v840 = vpop.permute.xlu0 %839
    %v842 = vsel %vm287, %v838, 0
    %v845 = vsel %vm287, %v840, 0
    %847 = vmatprep.subr.bf16.mxu0 0
    %848 = vmatpush1.bf16.xpose.msra.mxu0 %v845
    %849 = vmatprep.subr.bf16.mxu0 0
    %850 = vmatpush1.bf16.xpose.msra.mxu0 0
    %851 = vmatprep.subr.bf16.mxu0 0
    %852 = vmatpush1.bf16.xpose.msra.mxu0 0
    %853 = vmatprep.subr.bf16.mxu0 0
    %854 = vmatpush1.bf16.xpose.msra.mxu0 0
    %855 = vmatprep.subr.bf16.mxu0 0
    %856 = vmatpush1.bf16.xpose.msra.mxu0 0
    %857 = vmatprep.subr.bf16.mxu0 0
    %858 = vmatpush1.bf16.xpose.msra.mxu0 0
    %859 = vmatprep.subr.bf16.mxu0 0
    %860 = vmatpush1.bf16.xpose.msra.mxu0 0
    %861 = vmatprep.subr.bf16.mxu0 0
    %862 = vmatpush1.bf16.xpose.msra.mxu0 0
    %863 = vmatprep.subr.bf16.mxu0 0
    %864 = vmatpush1.bf16.xpose.msra.mxu0 0
    %865 = vmatprep.subr.bf16.mxu0 0
    %866 = vmatpush1.bf16.xpose.msra.mxu0 0
    %867 = vmatprep.subr.bf16.mxu0 0
    %868 = vmatpush1.bf16.xpose.msra.mxu0 0
    %869 = vmatprep.subr.bf16.mxu0 0
    %870 = vmatpush1.bf16.xpose.msra.mxu0 0
    %871 = vmatprep.subr.bf16.mxu0 0
    %872 = vmatpush1.bf16.xpose.msra.mxu0 0
    %873 = vmatprep.subr.bf16.mxu0 0
    %874 = vmatpush1.bf16.xpose.msra.mxu0 0
    %875 = vmatprep.subr.bf16.mxu0 0
    %876 = vmatpush1.bf16.xpose.msra.mxu0 0
    %877 = vmatprep.subr.bf16.mxu0 0
    %878 = vmatpush1.bf16.xpose.msra.mxu0 0
    %879 = vmatprep.mubr.bf16.mxu0 0
    %880 = vmatmul.mubr.bf16.gmra.mrb[0].mxu0 %v842
    %v881 = vpop.f32.mrb[0].mxu0
    %v882 = vadd.f32 0.0, %v881
    %v883 = vpop.f32.mrb[0].mxu0
    %v884 = vpop.f32.mrb[0].mxu0
    %v885 = vpop.f32.mrb[0].mxu0
    %886 = vdwg.mxu0
    %v887 = vsel %vm287, %v882, -inf
    %888 = vmax.xlane.f32.xlu0 %v887
    %v889 = vpop.xlane.xlu0 %888
    %v890 = vsub.f32 %v882, %v889
    %v891 = vmul.f32 %v890, 1.442695
    %v892 = vpow.pop %v891
    %v893 = vsel %vm287, %v892, 0.0
    %894 = vadd.xlane.f32.xlu0 %v893
    %v895 = vpop.xlane.xlu0 %894
    %v896 = vrcp.pop %v895
    %v897 = vpack.c.bf16 %v892, %v892
    %898 = vrot.lane.b32.xlu0 %v788, 96
    %v899 = vpop.permute.xlu0 %898
    %v901 = vsel %vm287, %v897, 0
    %v904 = vsel %vm348, %v899, 0
    %906 = vmatprep.subr.bf16.mxu0 0
    %907 = vmatpush1.bf16.msra.mxu0 %v904
    %908 = vmatprep.subr.bf16.mxu0 0
    %909 = vmatpush1.bf16.msra.mxu0 0
    %910 = vmatprep.subr.bf16.mxu0 0
    %911 = vmatpush1.bf16.msra.mxu0 0
    %912 = vmatprep.subr.bf16.mxu0 0
    %913 = vmatpush1.bf16.msra.mxu0 0
    %914 = vmatprep.subr.bf16.mxu0 0
    %915 = vmatpush1.bf16.msra.mxu0 0
    %916 = vmatprep.subr.bf16.mxu0 0
    %917 = vmatpush1.bf16.msra.mxu0 0
    %918 = vmatprep.subr.bf16.mxu0 0
    %919 = vmatpush1.bf16.msra.mxu0 0
    %920 = vmatprep.subr.bf16.mxu0 0
    %921 = vmatpush1.bf16.msra.mxu0 0
    %922 = vmatprep.subr.bf16.mxu0 0
    %923 = vmatpush1.bf16.msra.mxu0 0
    %924 = vmatprep.subr.bf16.mxu0 0
    %925 = vmatpush1.bf16.msra.mxu0 0
    %926 = vmatprep.subr.bf16.mxu0 0
    %927 = vmatpush1.bf16.msra.mxu0 0
    %928 = vmatprep.subr.bf16.mxu0 0
    %929 = vmatpush1.bf16.msra.mxu0 0
    %930 = vmatprep.subr.bf16.mxu0 0
    %931 = vmatpush1.bf16.msra.mxu0 0
    %932 = vmatprep.subr.bf16.mxu0 0
    %933 = vmatpush1.bf16.msra.mxu0 0
    %934 = vmatprep.subr.bf16.mxu0 0
    %935 = vmatpush1.bf16.msra.mxu0 0
    %936 = vmatprep.subr.bf16.mxu0 0
    %937 = vmatpush1.bf16.msra.mxu0 0
    %938 = vmatprep.mubr.bf16.mxu0 0
    %939 = vmatmul.mubr.bf16.gmra.mrb[0].mxu0 %v901
    %v940 = vpop.f32.mrb[0].mxu0
    %v941 = vadd.f32 0.0, %v940
    %v942 = vpop.f32.mrb[0].mxu0
    %v943 = vpop.f32.mrb[0].mxu0
    %v944 = vpop.f32.mrb[0].mxu0
    %945 = vdwg.mxu0
    %v946 = vmul.f32 %v941, %v896
    %v947 = vadd.f32 %v836, %v946
    %948 = vrot.lane.b32.xlu0 %v728, 112
    %v949 = vpop.permute.xlu0 %948
    %950 = vrot.lane.b32.xlu0 %v728, 80
    %v951 = vpop.permute.xlu0 %950
    %v953 = vsel %vm287, %v949, 0
    %v956 = vsel %vm287, %v951, 0
    %958 = vmatprep.subr.bf16.mxu0 0
    %959 = vmatpush1.bf16.xpose.msra.mxu0 %v956
    %960 = vmatprep.subr.bf16.mxu0 0
    %961 = vmatpush1.bf16.xpose.msra.mxu0 0
    %962 = vmatprep.subr.bf16.mxu0 0
    %963 = vmatpush1.bf16.xpose.msra.mxu0 0
    %964 = vmatprep.subr.bf16.mxu0 0
    %965 = vmatpush1.bf16.xpose.msra.mxu0 0
    %966 = vmatprep.subr.bf16.mxu0 0
    %967 = vmatpush1.bf16.xpose.msra.mxu0 0
    %968 = vmatprep.subr.bf16.mxu0 0
    %969 = vmatpush1.bf16.xpose.msra.mxu0 0
    %970 = vmatprep.subr.bf16.mxu0 0
    %971 = vmatpush1.bf16.xpose.msra.mxu0 0
    %972 = vmatprep.subr.bf16.mxu0 0
    %973 = vmatpush1.bf16.xpose.msra.mxu0 0
    %974 = vmatprep.subr.bf16.mxu0 0
    %975 = vmatpush1.bf16.xpose.msra.mxu0 0
    %976 = vmatprep.subr.bf16.mxu0 0
    %977 = vmatpush1.bf16.xpose.msra.mxu0 0
    %978 = vmatprep.subr.bf16.mxu0 0
    %979 = vmatpush1.bf16.xpose.msra.mxu0 0
    %980 = vmatprep.subr.bf16.mxu0 0
    %981 = vmatpush1.bf16.xpose.msra.mxu0 0
    %982 = vmatprep.subr.bf16.mxu0 0
    %983 = vmatpush1.bf16.xpose.msra.mxu0 0
    %984 = vmatprep.subr.bf16.mxu0 0
    %985 = vmatpush1.bf16.xpose.msra.mxu0 0
    %986 = vmatprep.subr.bf16.mxu0 0
    %987 = vmatpush1.bf16.xpose.msra.mxu0 0
    %988 = vmatprep.subr.bf16.mxu0 0
    %989 = vmatpush1.bf16.xpose.msra.mxu0 0
    %990 = vmatprep.mubr.bf16.mxu0 0
    %991 = vmatmul.mubr.bf16.gmra.mrb[0].mxu0 %v953
    %v992 = vpop.f32.mrb[0].mxu0
    %v993 = vadd.f32 0.0, %v992
    %v994 = vpop.f32.mrb[0].mxu0
    %v995 = vpop.f32.mrb[0].mxu0
    %v996 = vpop.f32.mrb[0].mxu0
    %997 = vdwg.mxu0
    %v998 = vsel %vm287, %v993, -inf
    %999 = vmax.xlane.f32.xlu0 %v998
    %v1000 = vpop.xlane.xlu0 %999
    %v1001 = vsub.f32 %v993, %v1000
    %v1002 = vmul.f32 %v1001, 1.442695
    %v1003 = vpow.pop %v1002
    %v1004 = vsel %vm287, %v1003, 0.0
    %1005 = vadd.xlane.f32.xlu0 %v1004
    %v1006 = vpop.xlane.xlu0 %1005
    %v1007 = vrcp.pop %v1006
    %v1008 = vpack.c.bf16 %v1003, %v1003
    %1009 = vrot.lane.b32.xlu0 %v788, 64
    %v1010 = vpop.permute.xlu0 %1009
    %v1012 = vsel %vm287, %v1008, 0
    %v1015 = vsel %vm348, %v1010, 0
    %1017 = vmatprep.subr.bf16.mxu0 0
    %1018 = vmatpush1.bf16.msra.mxu0 %v1015
    %1019 = vmatprep.subr.bf16.mxu0 0
    %1020 = vmatpush1.bf16.msra.mxu0 0
    %1021 = vmatprep.subr.bf16.mxu0 0
    %1022 = vmatpush1.bf16.msra.mxu0 0
    %1023 = vmatprep.subr.bf16.mxu0 0
    %1024 = vmatpush1.bf16.msra.mxu0 0
    %1025 = vmatprep.subr.bf16.mxu0 0
    %1026 = vmatpush1.bf16.msra.mxu0 0
    %1027 = vmatprep.subr.bf16.mxu0 0
    %1028 = vmatpush1.bf16.msra.mxu0 0
    %1029 = vmatprep.subr.bf16.mxu0 0
    %1030 = vmatpush1.bf16.msra.mxu0 0
    %1031 = vmatprep.subr.bf16.mxu0 0
    %1032 = vmatpush1.bf16.msra.mxu0 0
    %1033 = vmatprep.subr.bf16.mxu0 0
    %1034 = vmatpush1.bf16.msra.mxu0 0
    %1035 = vmatprep.subr.bf16.mxu0 0
    %1036 = vmatpush1.bf16.msra.mxu0 0
    %1037 = vmatprep.subr.bf16.mxu0 0
    %1038 = vmatpush1.bf16.msra.mxu0 0
    %1039 = vmatprep.subr.bf16.mxu0 0
    %1040 = vmatpush1.bf16.msra.mxu0 0
    %1041 = vmatprep.subr.bf16.mxu0 0
    %1042 = vmatpush1.bf16.msra.mxu0 0
    %1043 = vmatprep.subr.bf16.mxu0 0
    %1044 = vmatpush1.bf16.msra.mxu0 0
    %1045 = vmatprep.subr.bf16.mxu0 0
    %1046 = vmatpush1.bf16.msra.mxu0 0
    %1047 = vmatprep.subr.bf16.mxu0 0
    %1048 = vmatpush1.bf16.msra.mxu0 0
    %1049 = vmatprep.mubr.bf16.mxu0 0
    %1050 = vmatmul.mubr.bf16.gmra.mrb[0].mxu0 %v1012
    %v1051 = vpop.f32.mrb[0].mxu0
    %v1052 = vadd.f32 0.0, %v1051
    %v1053 = vpop.f32.mrb[0].mxu0
    %v1054 = vpop.f32.mrb[0].mxu0
    %v1055 = vpop.f32.mrb[0].mxu0
    %1056 = vdwg.mxu0
    %v1057 = vmul.f32 %v1052, %v1007
    %v1058 = vadd.f32 %v947, %v1057
    %1059 = vrot.lane.b32.xlu0 %v728, 104
    %v1060 = vpop.permute.xlu0 %1059
    %1061 = vrot.lane.b32.xlu0 %v728, 72
    %v1062 = vpop.permute.xlu0 %1061
    %v1064 = vsel %vm287, %v1060, 0
    %v1067 = vsel %vm287, %v1062, 0
    %1069 = vmatprep.subr.bf16.mxu0 0
    %1070 = vmatpush1.bf16.xpose.msra.mxu0 %v1067
    %1071 = vmatprep.subr.bf16.mxu0 0
    %1072 = vmatpush1.bf16.xpose.msra.mxu0 0
    %1073 = vmatprep.subr.bf16.mxu0 0
    %1074 = vmatpush1.bf16.xpose.msra.mxu0 0
    %1075 = vmatprep.subr.bf16.mxu0 0
    %1076 = vmatpush1.bf16.xpose.msra.mxu0 0
    %1077 = vmatprep.subr.bf16.mxu0 0
    %1078 = vmatpush1.bf16.xpose.msra.mxu0 0
    %1079 = vmatprep.subr.bf16.mxu0 0
    %1080 = vmatpush1.bf16.xpose.msra.mxu0 0
    %1081 = vmatprep.subr.bf16.mxu0 0
    %1082 = vmatpush1.bf16.xpose.msra.mxu0 0
    %1083 = vmatprep.subr.bf16.mxu0 0
    %1084 = vmatpush1.bf16.xpose.msra.mxu0 0
    %1085 = vmatprep.subr.bf16.mxu0 0
    %1086 = vmatpush1.bf16.xpose.msra.mxu0 0
    %1087 = vmatprep.subr.bf16.mxu0 0
    %1088 = vmatpush1.bf16.xpose.msra.mxu0 0
    %1089 = vmatprep.subr.bf16.mxu0 0
    %1090 = vmatpush1.bf16.xpose.msra.mxu0 0
    %1091 = vmatprep.subr.bf16.mxu0 0
    %1092 = vmatpush1.bf16.xpose.msra.mxu0 0
    %1093 = vmatprep.subr.bf16.mxu0 0
    %1094 = vmatpush1.bf16.xpose.msra.mxu0 0
    %1095 = vmatprep.subr.bf16.mxu0 0
    %1096 = vmatpush1.bf16.xpose.msra.mxu0 0
    %1097 = vmatprep.subr.bf16.mxu0 0
    %1098 = vmatpush1.bf16.xpose.msra.mxu0 0
    %1099 = vmatprep.subr.bf16.mxu0 0
    %1100 = vmatpush1.bf16.xpose.msra.mxu0 0
    %1101 = vmatprep.mubr.bf16.mxu0 0
    %1102 = vmatmul.mubr.bf16.gmra.mrb[0].mxu0 %v1064
    %v1103 = vpop.f32.mrb[0].mxu0
    %v1104 = vadd.f32 0.0, %v1103
    %v1105 = vpop.f32.mrb[0].mxu0
    %v1106 = vpop.f32.mrb[0].mxu0
    %v1107 = vpop.f32.mrb[0].mxu0
    %1108 = vdwg.mxu0
    %v1109 = vsel %vm287, %v1104, -inf
    %1110 = vmax.xlane.f32.xlu0 %v1109
    %v1111 = vpop.xlane.xlu0 %1110
    %v1112 = vsub.f32 %v1104, %v1111
    %v1113 = vmul.f32 %v1112, 1.442695
    %v1114 = vpow.pop %v1113
    %v1115 = vsel %vm287, %v1114, 0.0
    %1116 = vadd.xlane.f32.xlu0 %v1115
    %v1117 = vpop.xlane.xlu0 %1116
    %v1118 = vrcp.pop %v1117
    %v1119 = vpack.c.bf16 %v1114, %v1114
    %1120 = vrot.lane.b32.xlu0 %v788, 32
    %v1121 = vpop.permute.xlu0 %1120
    %v1123 = vsel %vm287, %v1119, 0
    %v1126 = vsel %vm348, %v1121, 0
    %1128 = vmatprep.subr.bf16.mxu0 0
    %1129 = vmatpush1.bf16.msra.mxu0 %v1126
    %1130 = vmatprep.subr.bf16.mxu0 0
    %1131 = vmatpush1.bf16.msra.mxu0 0
    %1132 = vmatprep.subr.bf16.mxu0 0
    %1133 = vmatpush1.bf16.msra.mxu0 0
    %1134 = vmatprep.subr.bf16.mxu0 0
    %1135 = vmatpush1.bf16.msra.mxu0 0
    %1136 = vmatprep.subr.bf16.mxu0 0
    %1137 = vmatpush1.bf16.msra.mxu0 0
    %1138 = vmatprep.subr.bf16.mxu0 0
    %1139 = vmatpush1.bf16.msra.mxu0 0
    %1140 = vmatprep.subr.bf16.mxu0 0
    %1141 = vmatpush1.bf16.msra.mxu0 0
    %1142 = vmatprep.subr.bf16.mxu0 0
    %1143 = vmatpush1.bf16.msra.mxu0 0
    %1144 = vmatprep.subr.bf16.mxu0 0
    %1145 = vmatpush1.bf16.msra.mxu0 0
    %1146 = vmatprep.subr.bf16.mxu0 0
    %1147 = vmatpush1.bf16.msra.mxu0 0
    %1148 = vmatprep.subr.bf16.mxu0 0
    %1149 = vmatpush1.bf16.msra.mxu0 0
    %1150 = vmatprep.subr.bf16.mxu0 0
    %1151 = vmatpush1.bf16.msra.mxu0 0
    %1152 = vmatprep.subr.bf16.mxu0 0
    %1153 = vmatpush1.bf16.msra.mxu0 0
    %1154 = vmatprep.subr.bf16.mxu0 0
    %1155 = vmatpush1.bf16.msra.mxu0 0
    %1156 = vmatprep.subr.bf16.mxu0 0
    %1157 = vmatpush1.bf16.msra.mxu0 0
    %1158 = vmatprep.subr.bf16.mxu0 0
    %1159 = vmatpush1.bf16.msra.mxu0 0
    %1160 = vmatprep.mubr.bf16.mxu0 0
    %1161 = vmatmul.mubr.bf16.gmra.mrb[0].mxu0 %v1123
    %v1162 = vpop.f32.mrb[0].mxu0
    %v1163 = vadd.f32 0.0, %v1162
    %v1164 = vpop.f32.mrb[0].mxu0
    %v1165 = vpop.f32.mrb[0].mxu0
    %v1166 = vpop.f32.mrb[0].mxu0
    %1167 = vdwg.mxu0
    %v1168 = vmul.f32 %v1163, %v1118
    %v1169 = vadd.f32 %v1058, %v1168
    %v1170 = vadd.f32 %v112, %v727
    %v1171 = vadd.f32 %v113, %v1169
    %v1172 = vsel %vm118, %v1170, 0.0
    %1173 = vadd.xlane.f32.xlu0 %v1172
    %v1174 = vpop.xlane.xlu0 %1173
    %v1175 = vsel %vm118, %v1171, 0.0
    %1176 = vadd.xlane.f32.xlu0 %v1175
    %v1177 = vpop.xlane.xlu0 %1176
    %v1178 = vmul.f32 %v1174, %v125
    %v1179 = vmul.f32 %v1177, %v125
    %v1180 = vsub.f32 %v1170, %v1178
    %v1181 = vsub.f32 %v1171, %v1179
    %v1182 = vmul.f32 %v1180, %v1180
    %v1183 = vmul.f32 %v1181, %v1181
    %v1184 = vsel %vm118, %v1182, 0.0
    %1185 = vadd.xlane.f32.xlu0 %v1184
    %v1186 = vpop.xlane.xlu0 %1185
    %v1187 = vsel %vm118, %v1183, 0.0
    %1188 = vadd.xlane.f32.xlu0 %v1187
    %v1189 = vpop.xlane.xlu0 %1188
    %v1190 = vmul.f32 %v1186, %v125
    %v1191 = vmul.f32 %v1189, %v125
    %v1192 = vadd.f32 %v1190, 1e-05
    %v1193 = vadd.f32 %v1191, 1e-05
    %v1194 = vrsqrt.pop %v1192
    %v1195 = vrsqrt.pop %v1193
    %v1196 = vmul.f32 %v1180, %v1194
    %v1197 = vmul.f32 %v1181, %v1195
    %v1198 = vlaneseq
    %v1199 = vshrl.u32 %v1198, 7
    %v1200 = vsub.s32 0, %v1199
    %v1201 = vrot.slane %v74, %v1200
    %v1202 = vmul.f32 %v1196, %v1201
    %v1203 = vmul.f32 %v1197, %v1201
    %v1204 = vlaneseq
    %v1205 = vshrl.u32 %v1204, 7
    %v1206 = vsub.s32 0, %v1205
    %v1207 = vrot.slane %v75, %v1206
    %v1208 = vadd.f32 %v1202, %v1207
    %v1209 = vadd.f32 %v1203, %v1207
    %v1210 = vadd.f32 %v1208, %v161
    %v1211 = vadd.f32 %v1209, %v163
    %v1212 = vpack.c.bf16 %v1211, %v1210
    %v1217 = vunpack.c.l.b16 %v88
    %v1218 = vunpack.c.l.b16 %v89
    %v1219 = vunpack.c.l.b16 %v90
    %v1220 = vunpack.c.l.b16 %v91
    %v1221 = vpack.c.b16 %v1218, %v1217
    %v1222 = vpack.c.b16 %v1220, %v1219
    %v1226 = vsel %vm118, %v1212, 0
    %1228 = vmatprep.subr.bf16.mxu0 0
    %1229 = vmatpush1.bf16.msra.mxu0 %v1221
    %1230 = vmatprep.subr.bf16.mxu0 0
    %1231 = vmatpush1.bf16.msra.mxu0 %v1222
    %1232 = vmatprep.subr.bf16.mxu0 0
    %1233 = vmatpush1.bf16.msra.mxu0 0
    %1234 = vmatprep.subr.bf16.mxu0 0
    %1235 = vmatpush1.bf16.msra.mxu0 0
    %1236 = vmatprep.subr.bf16.mxu0 0
    %1237 = vmatpush1.bf16.msra.mxu0 0
    %1238 = vmatprep.subr.bf16.mxu0 0
    %1239 = vmatpush1.bf16.msra.mxu0 0
    %1240 = vmatprep.subr.bf16.mxu0 0
    %1241 = vmatpush1.bf16.msra.mxu0 0
    %1242 = vmatprep.subr.bf16.mxu0 0
    %1243 = vmatpush1.bf16.msra.mxu0 0
    %1244 = vmatprep.subr.bf16.mxu0 0
    %1245 = vmatpush1.bf16.msra.mxu0 0
    %1246 = vmatprep.subr.bf16.mxu0 0
    %1247 = vmatpush1.bf16.msra.mxu0 0
    %1248 = vmatprep.subr.bf16.mxu0 0
    %1249 = vmatpush1.bf16.msra.mxu0 0
    %1250 = vmatprep.subr.bf16.mxu0 0
    %1251 = vmatpush1.bf16.msra.mxu0 0
    %1252 = vmatprep.subr.bf16.mxu0 0
    %1253 = vmatpush1.bf16.msra.mxu0 0
    %1254 = vmatprep.subr.bf16.mxu0 0
    %1255 = vmatpush1.bf16.msra.mxu0 0
    %1256 = vmatprep.subr.bf16.mxu0 0
    %1257 = vmatpush1.bf16.msra.mxu0 0
    %1258 = vmatprep.subr.bf16.mxu0 0
    %1259 = vmatpush1.bf16.msra.mxu0 0
    %1260 = vmatprep.mubr.bf16.mxu0 0
    %1261 = vmatmul.mubr.bf16.gmra.mrb[0].mxu0 %v1226
    %v1262 = vpop.f32.mrb[0].mxu0
    %v1263 = vadd.f32 0.0, %v1262
    %v1264 = vpop.f32.mrb[0].mxu0
    %v1265 = vpop.f32.mrb[0].mxu0
    %v1266 = vadd.f32 0.0, %v1265
    %v1267 = vpop.f32.mrb[0].mxu0
    %1268 = vdwg.mxu0
    %1273 = vrot.lane.b32.xlu0 %v114, 96
    %v1274 = vpop.permute.xlu0 %1273
    %1275 = vrot.lane.b32.xlu0 %v115, 96
    %v1276 = vpop.permute.xlu0 %1275
    %1277 = vrot.lane.b32.xlu0 %v116, 96
    %v1278 = vpop.permute.xlu0 %1277
    %1279 = vrot.lane.b32.xlu0 %v117, 96
    %v1280 = vpop.permute.xlu0 %1279
    %v1285 = vadd.f32 %v114, %v1274
    %v1286 = vadd.f32 %v115, %v1276
    %v1287 = vadd.f32 %v116, %v1278
    %v1288 = vadd.f32 %v117, %v1280
    %v1289 = vpack.c.bf16 %v1286, %v1285
    %v1290 = vpack.c.bf16 %v1288, %v1287
    %v1295 = vunpack.c.l.b16 %v92
    %v1296 = vunpack.c.l.b16 %v93
    %v1297 = vunpack.c.l.b16 %v94
    %v1298 = vunpack.c.l.b16 %v95
    %v1299 = vpack.c.b16 %v1296, %v1295
    %v1300 = vpack.c.b16 %v1298, %v1297
    %v1304 = vsel %vm118, %v1289, 0
    %v1307 = vsel %vm118, %v1290, 0
    %1309 = vmatprep.subr.bf16.mxu0 0
    %1310 = vmatpush1.bf16.msra.mxu0 %v1299
    %1311 = vmatprep.subr.bf16.mxu0 0
    %1312 = vmatpush1.bf16.msra.mxu0 %v1300
    %1313 = vmatprep.subr.bf16.mxu0 0
    %1314 = vmatpush1.bf16.msra.mxu0 0
    %1315 = vmatprep.subr.bf16.mxu0 0
    %1316 = vmatpush1.bf16.msra.mxu0 0
    %1317 = vmatprep.subr.bf16.mxu0 0
    %1318 = vmatpush1.bf16.msra.mxu0 0
    %1319 = vmatprep.subr.bf16.mxu0 0
    %1320 = vmatpush1.bf16.msra.mxu0 0
    %1321 = vmatprep.subr.bf16.mxu0 0
    %1322 = vmatpush1.bf16.msra.mxu0 0
    %1323 = vmatprep.subr.bf16.mxu0 0
    %1324 = vmatpush1.bf16.msra.mxu0 0
    %1325 = vmatprep.subr.bf16.mxu0 0
    %1326 = vmatpush1.bf16.msra.mxu0 0
    %1327 = vmatprep.subr.bf16.mxu0 0
    %1328 = vmatpush1.bf16.msra.mxu0 0
    %1329 = vmatprep.subr.bf16.mxu0 0
    %1330 = vmatpush1.bf16.msra.mxu0 0
    %1331 = vmatprep.subr.bf16.mxu0 0
    %1332 = vmatpush1.bf16.msra.mxu0 0
    %1333 = vmatprep.subr.bf16.mxu0 0
    %1334 = vmatpush1.bf16.msra.mxu0 0
    %1335 = vmatprep.subr.bf16.mxu0 0
    %1336 = vmatpush1.bf16.msra.mxu0 0
    %1337 = vmatprep.subr.bf16.mxu0 0
    %1338 = vmatpush1.bf16.msra.mxu0 0
    %1339 = vmatprep.subr.bf16.mxu0 0
    %1340 = vmatpush1.bf16.msra.mxu0 0
    %1341 = vmatprep.mubr.bf16.mxu0 0
    %1342 = vmatmul.mubr.bf16.gmra.mrb[0].mxu0 %v1304
    %v1343 = vpop.f32.mrb[0].mxu0
    %v1344 = vadd.f32 0.0, %v1343
    %v1345 = vpop.f32.mrb[0].mxu0
    %v1346 = vpop.f32.mrb[0].mxu0
    %v1347 = vadd.f32 0.0, %v1346
    %v1348 = vpop.f32.mrb[0].mxu0
    %1349 = vmatprep.mubr.bf16.mxu0 0
    %1350 = vmatmul.mubr.bf16.gmra.mrb[0].mxu0 %v1307
    %v1351 = vpop.f32.mrb[0].mxu0
    %v1352 = vadd.f32 0.0, %v1351
    %v1353 = vpop.f32.mrb[0].mxu0
    %v1354 = vpop.f32.mrb[0].mxu0
    %v1355 = vadd.f32 0.0, %v1354
    %v1356 = vpop.f32.mrb[0].mxu0
    %1357 = vdwg.mxu0
    %v1358 = vpack.c.bf16 %v115, %v114
    %v1359 = vpack.c.bf16 %v117, %v116
    %v1364 = vunpack.c.l.b16 %v96
    %v1365 = vunpack.c.l.b16 %v97
    %v1366 = vunpack.c.l.b16 %v98
    %v1367 = vunpack.c.l.b16 %v99
    %v1368 = vpack.c.b16 %v1365, %v1364
    %v1369 = vpack.c.b16 %v1367, %v1366
    %v1373 = vsel %vm118, %v1358, 0
    %v1376 = vsel %vm118, %v1359, 0
    %1378 = vmatprep.subr.bf16.mxu0 0
    %1379 = vmatpush1.bf16.msra.mxu0 %v1368
    %1380 = vmatprep.subr.bf16.mxu0 0
    %1381 = vmatpush1.bf16.msra.mxu0 %v1369
    %1382 = vmatprep.subr.bf16.mxu0 0
    %1383 = vmatpush1.bf16.msra.mxu0 0
    %1384 = vmatprep.subr.bf16.mxu0 0
    %1385 = vmatpush1.bf16.msra.mxu0 0
    %1386 = vmatprep.subr.bf16.mxu0 0
    %1387 = vmatpush1.bf16.msra.mxu0 0
    %1388 = vmatprep.subr.bf16.mxu0 0
    %1389 = vmatpush1.bf16.msra.mxu0 0
    %1390 = vmatprep.subr.bf16.mxu0 0
    %1391 = vmatpush1.bf16.msra.mxu0 0
    %1392 = vmatprep.subr.bf16.mxu0 0
    %1393 = vmatpush1.bf16.msra.mxu0 0
    %1394 = vmatprep.subr.bf16.mxu0 0
    %1395 = vmatpush1.bf16.msra.mxu0 0
    %1396 = vmatprep.subr.bf16.mxu0 0
    %1397 = vmatpush1.bf16.msra.mxu0 0
    %1398 = vmatprep.subr.bf16.mxu0 0
    %1399 = vmatpush1.bf16.msra.mxu0 0
    %1400 = vmatprep.subr.bf16.mxu0 0
    %1401 = vmatpush1.bf16.msra.mxu0 0
    %1402 = vmatprep.subr.bf16.mxu0 0
    %1403 = vmatpush1.bf16.msra.mxu0 0
    %1404 = vmatprep.subr.bf16.mxu0 0
    %1405 = vmatpush1.bf16.msra.mxu0 0
    %1406 = vmatprep.subr.bf16.mxu0 0
    %1407 = vmatpush1.bf16.msra.mxu0 0
    %1408 = vmatprep.subr.bf16.mxu0 0
    %1409 = vmatpush1.bf16.msra.mxu0 0
    %1410 = vmatprep.mubr.bf16.mxu0 0
    %1411 = vmatmul.mubr.bf16.gmra.mrb[0].mxu0 %v1373
    %v1412 = vpop.f32.mrb[0].mxu0
    %v1413 = vadd.f32 0.0, %v1412
    %v1414 = vpop.f32.mrb[0].mxu0
    %v1415 = vpop.f32.mrb[0].mxu0
    %v1416 = vadd.f32 0.0, %v1415
    %v1417 = vpop.f32.mrb[0].mxu0
    %1418 = vmatprep.mubr.bf16.mxu0 0
    %1419 = vmatmul.mubr.bf16.gmra.mrb[0].mxu0 %v1376
    %v1420 = vpop.f32.mrb[0].mxu0
    %v1421 = vadd.f32 0.0, %v1420
    %v1422 = vpop.f32.mrb[0].mxu0
    %v1423 = vpop.f32.mrb[0].mxu0
    %v1424 = vadd.f32 0.0, %v1423
    %v1425 = vpop.f32.mrb[0].mxu0
    %1426 = vdwg.mxu0
    %v1427 = vpack.c.bf16 %v1266, %v1263
    %v1428 = vpack.c.bf16 %v1347, %v1344
    %v1429 = vpack.c.bf16 %v1355, %v1352
    %v1430 = vpack.c.bf16 %v1416, %v1413
    %v1431 = vpack.c.bf16 %v1424, %v1421
    %v1433 = vsel %vm287, %v1427, 0
    %v1436 = vsel %vm287, %v1428, 0
    %1438 = vmatprep.subr.bf16.mxu0 0
    %1439 = vmatpush1.bf16.xpose.msra.mxu0 %v1436
    %1440 = vmatprep.subr.bf16.mxu0 0
    %1441 = vmatpush1.bf16.xpose.msra.mxu0 0
    %1442 = vmatprep.subr.bf16.mxu0 0
    %1443 = vmatpush1.bf16.xpose.msra.mxu0 0
    %1444 = vmatprep.subr.bf16.mxu0 0
    %1445 = vmatpush1.bf16.xpose.msra.mxu0 0
    %1446 = vmatprep.subr.bf16.mxu0 0
    %1447 = vmatpush1.bf16.xpose.msra.mxu0 0
    %1448 = vmatprep.subr.bf16.mxu0 0
    %1449 = vmatpush1.bf16.xpose.msra.mxu0 0
    %1450 = vmatprep.subr.bf16.mxu0 0
    %1451 = vmatpush1.bf16.xpose.msra.mxu0 0
    %1452 = vmatprep.subr.bf16.mxu0 0
    %1453 = vmatpush1.bf16.xpose.msra.mxu0 0
    %1454 = vmatprep.subr.bf16.mxu0 0
    %1455 = vmatpush1.bf16.xpose.msra.mxu0 0
    %1456 = vmatprep.subr.bf16.mxu0 0
    %1457 = vmatpush1.bf16.xpose.msra.mxu0 0
    %1458 = vmatprep.subr.bf16.mxu0 0
    %1459 = vmatpush1.bf16.xpose.msra.mxu0 0
    %1460 = vmatprep.subr.bf16.mxu0 0
    %1461 = vmatpush1.bf16.xpose.msra.mxu0 0
    %1462 = vmatprep.subr.bf16.mxu0 0
    %1463 = vmatpush1.bf16.xpose.msra.mxu0 0
    %1464 = vmatprep.subr.bf16.mxu0 0
    %1465 = vmatpush1.bf16.xpose.msra.mxu0 0
    %1466 = vmatprep.subr.bf16.mxu0 0
    %1467 = vmatpush1.bf16.xpose.msra.mxu0 0
    %1468 = vmatprep.subr.bf16.mxu0 0
    %1469 = vmatpush1.bf16.xpose.msra.mxu0 0
    %1470 = vmatprep.mubr.bf16.mxu0 0
    %1471 = vmatmul.mubr.bf16.gmra.mrb[0].mxu0 %v1433
    %v1472 = vpop.f32.mrb[0].mxu0
    %v1473 = vadd.f32 0.0, %v1472
    %v1474 = vpop.f32.mrb[0].mxu0
    %v1475 = vpop.f32.mrb[0].mxu0
    %v1476 = vpop.f32.mrb[0].mxu0
    %1477 = vdwg.mxu0
    %vm1478 = vcmask 130048
    %v1479 = vsel %vm1478, %v1473, -inf
    %1480 = vmax.xlane.f32.xlu0 %v1479
    %v1481 = vpop.xlane.xlu0 %1480
    %v1482 = vsub.f32 %v1473, %v1481
    %v1483 = vmul.f32 %v1482, 1.442695
    %v1484 = vpow.pop %v1483
    %v1485 = vsel %vm1478, %v1484, 0.0
    %1486 = vadd.xlane.f32.xlu0 %v1485
    %v1487 = vpop.xlane.xlu0 %1486
    %v1488 = vrcp.pop %v1487
    %v1489 = vpack.c.bf16 %v1484, %v1484
    %v1491 = vsel %vm1478, %v1489, 0
    %1493 = vmatprep.subr.bf16.mxu0 0
    %1494 = vmatpush1.bf16.msra.mxu0 %v1430
    %1495 = vmatprep.subr.bf16.mxu0 0
    %1496 = vmatpush1.bf16.msra.mxu0 0
    %1497 = vmatprep.subr.bf16.mxu0 0
    %1498 = vmatpush1.bf16.msra.mxu0 0
    %1499 = vmatprep.subr.bf16.mxu0 0
    %1500 = vmatpush1.bf16.msra.mxu0 0
    %1501 = vmatprep.subr.bf16.mxu0 0
    %1502 = vmatpush1.bf16.msra.mxu0 0
    %1503 = vmatprep.subr.bf16.mxu0 0
    %1504 = vmatpush1.bf16.msra.mxu0 0
    %1505 = vmatprep.subr.bf16.mxu0 0
    %1506 = vmatpush1.bf16.msra.mxu0 0
    %1507 = vmatprep.subr.bf16.mxu0 0
    %1508 = vmatpush1.bf16.msra.mxu0 0
    %1509 = vmatprep.subr.bf16.mxu0 0
    %1510 = vmatpush1.bf16.msra.mxu0 0
    %1511 = vmatprep.subr.bf16.mxu0 0
    %1512 = vmatpush1.bf16.msra.mxu0 0
    %1513 = vmatprep.subr.bf16.mxu0 0
    %1514 = vmatpush1.bf16.msra.mxu0 0
    %1515 = vmatprep.subr.bf16.mxu0 0
    %1516 = vmatpush1.bf16.msra.mxu0 0
    %1517 = vmatprep.subr.bf16.mxu0 0
    %1518 = vmatpush1.bf16.msra.mxu0 0
    %1519 = vmatprep.subr.bf16.mxu0 0
    %1520 = vmatpush1.bf16.msra.mxu0 0
    %1521 = vmatprep.subr.bf16.mxu0 0
    %1522 = vmatpush1.bf16.msra.mxu0 0
    %1523 = vmatprep.subr.bf16.mxu0 0
    %1524 = vmatpush1.bf16.msra.mxu0 0
    %1525 = vmatprep.mubr.bf16.mxu0 0
    %1526 = vmatmul.mubr.bf16.gmra.mrb[0].mxu0 %v1491
    %v1527 = vpop.f32.mrb[0].mxu0
    %v1528 = vadd.f32 0.0, %v1527
    %v1529 = vpop.f32.mrb[0].mxu0
    %v1530 = vpop.f32.mrb[0].mxu0
    %v1531 = vpop.f32.mrb[0].mxu0
    %1532 = vdwg.mxu0
    %v1533 = vmul.f32 %v1528, %v1488
    %v1534 = vadd.f32 %v1533, 0.0
    %1536 = vrot.lane.b32.xlu0 %v1427, 120
    %v1537 = vpop.permute.xlu0 %1536
    %1539 = vrot.lane.b32.xlu0 %v1428, 120
    %v1540 = vpop.permute.xlu0 %1539
    %v1542 = vsel %vm287, %v1537, 0
    %v1545 = vsel %vm287, %v1540, 0
    %1547 = vmatprep.subr.bf16.mxu0 0
    %1548 = vmatpush1.bf16.xpose.msra.mxu0 %v1545
    %1549 = vmatprep.subr.bf16.mxu0 0
    %1550 = vmatpush1.bf16.xpose.msra.mxu0 0
    %1551 = vmatprep.subr.bf16.mxu0 0
    %1552 = vmatpush1.bf16.xpose.msra.mxu0 0
    %1553 = vmatprep.subr.bf16.mxu0 0
    %1554 = vmatpush1.bf16.xpose.msra.mxu0 0
    %1555 = vmatprep.subr.bf16.mxu0 0
    %1556 = vmatpush1.bf16.xpose.msra.mxu0 0
    %1557 = vmatprep.subr.bf16.mxu0 0
    %1558 = vmatpush1.bf16.xpose.msra.mxu0 0
    %1559 = vmatprep.subr.bf16.mxu0 0
    %1560 = vmatpush1.bf16.xpose.msra.mxu0 0
    %1561 = vmatprep.subr.bf16.mxu0 0
    %1562 = vmatpush1.bf16.xpose.msra.mxu0 0
    %1563 = vmatprep.subr.bf16.mxu0 0
    %1564 = vmatpush1.bf16.xpose.msra.mxu0 0
    %1565 = vmatprep.subr.bf16.mxu0 0
    %1566 = vmatpush1.bf16.xpose.msra.mxu0 0
    %1567 = vmatprep.subr.bf16.mxu0 0
    %1568 = vmatpush1.bf16.xpose.msra.mxu0 0
    %1569 = vmatprep.subr.bf16.mxu0 0
    %1570 = vmatpush1.bf16.xpose.msra.mxu0 0
    %1571 = vmatprep.subr.bf16.mxu0 0
    %1572 = vmatpush1.bf16.xpose.msra.mxu0 0
    %1573 = vmatprep.subr.bf16.mxu0 0
    %1574 = vmatpush1.bf16.xpose.msra.mxu0 0
    %1575 = vmatprep.subr.bf16.mxu0 0
    %1576 = vmatpush1.bf16.xpose.msra.mxu0 0
    %1577 = vmatprep.subr.bf16.mxu0 0
    %1578 = vmatpush1.bf16.xpose.msra.mxu0 0
    %1579 = vmatprep.mubr.bf16.mxu0 0
    %1580 = vmatmul.mubr.bf16.gmra.mrb[0].mxu0 %v1542
    %v1581 = vpop.f32.mrb[0].mxu0
    %v1582 = vadd.f32 0.0, %v1581
    %v1583 = vpop.f32.mrb[0].mxu0
    %v1584 = vpop.f32.mrb[0].mxu0
    %v1585 = vpop.f32.mrb[0].mxu0
    %1586 = vdwg.mxu0
    %v1587 = vsel %vm1478, %v1582, -inf
    %1588 = vmax.xlane.f32.xlu0 %v1587
    %v1589 = vpop.xlane.xlu0 %1588
    %v1590 = vsub.f32 %v1582, %v1589
    %v1591 = vmul.f32 %v1590, 1.442695
    %v1592 = vpow.pop %v1591
    %v1593 = vsel %vm1478, %v1592, 0.0
    %1594 = vadd.xlane.f32.xlu0 %v1593
    %v1595 = vpop.xlane.xlu0 %1594
    %v1596 = vrcp.pop %v1595
    %v1597 = vpack.c.bf16 %v1592, %v1592
    %1599 = vrot.lane.b32.xlu0 %v1430, 96
    %v1600 = vpop.permute.xlu0 %1599
    %v1603 = vsel %vm1478, %v1597, 0
    %1605 = vmatprep.subr.bf16.mxu0 0
    %1606 = vmatpush1.bf16.msra.mxu0 %v1600
    %1607 = vmatprep.subr.bf16.mxu0 0
    %1608 = vmatpush1.bf16.msra.mxu0 0
    %1609 = vmatprep.subr.bf16.mxu0 0
    %1610 = vmatpush1.bf16.msra.mxu0 0
    %1611 = vmatprep.subr.bf16.mxu0 0
    %1612 = vmatpush1.bf16.msra.mxu0 0
    %1613 = vmatprep.subr.bf16.mxu0 0
    %1614 = vmatpush1.bf16.msra.mxu0 0
    %1615 = vmatprep.subr.bf16.mxu0 0
    %1616 = vmatpush1.bf16.msra.mxu0 0
    %1617 = vmatprep.subr.bf16.mxu0 0
    %1618 = vmatpush1.bf16.msra.mxu0 0
    %1619 = vmatprep.subr.bf16.mxu0 0
    %1620 = vmatpush1.bf16.msra.mxu0 0
    %1621 = vmatprep.subr.bf16.mxu0 0
    %1622 = vmatpush1.bf16.msra.mxu0 0
    %1623 = vmatprep.subr.bf16.mxu0 0
    %1624 = vmatpush1.bf16.msra.mxu0 0
    %1625 = vmatprep.subr.bf16.mxu0 0
    %1626 = vmatpush1.bf16.msra.mxu0 0
    %1627 = vmatprep.subr.bf16.mxu0 0
    %1628 = vmatpush1.bf16.msra.mxu0 0
    %1629 = vmatprep.subr.bf16.mxu0 0
    %1630 = vmatpush1.bf16.msra.mxu0 0
    %1631 = vmatprep.subr.bf16.mxu0 0
    %1632 = vmatpush1.bf16.msra.mxu0 0
    %1633 = vmatprep.subr.bf16.mxu0 0
    %1634 = vmatpush1.bf16.msra.mxu0 0
    %1635 = vmatprep.subr.bf16.mxu0 0
    %1636 = vmatpush1.bf16.msra.mxu0 0
    %1637 = vmatprep.mubr.bf16.mxu0 0
    %1638 = vmatmul.mubr.bf16.gmra.mrb[0].mxu0 %v1603
    %v1639 = vpop.f32.mrb[0].mxu0
    %v1640 = vadd.f32 0.0, %v1639
    %v1641 = vpop.f32.mrb[0].mxu0
    %v1642 = vpop.f32.mrb[0].mxu0
    %v1643 = vpop.f32.mrb[0].mxu0
    %1644 = vdwg.mxu0
    %v1645 = vmul.f32 %v1640, %v1596
    %v1646 = vadd.f32 %v1534, %v1645
    %1647 = vrot.lane.b32.xlu0 %v1427, 112
    %v1648 = vpop.permute.xlu0 %1647
    %1649 = vrot.lane.b32.xlu0 %v1428, 112
    %v1650 = vpop.permute.xlu0 %1649
    %v1652 = vsel %vm287, %v1648, 0
    %v1655 = vsel %vm287, %v1650, 0
    %1657 = vmatprep.subr.bf16.mxu0 0
    %1658 = vmatpush1.bf16.xpose.msra.mxu0 %v1655
    %1659 = vmatprep.subr.bf16.mxu0 0
    %1660 = vmatpush1.bf16.xpose.msra.mxu0 0
    %1661 = vmatprep.subr.bf16.mxu0 0
    %1662 = vmatpush1.bf16.xpose.msra.mxu0 0
    %1663 = vmatprep.subr.bf16.mxu0 0
    %1664 = vmatpush1.bf16.xpose.msra.mxu0 0
    %1665 = vmatprep.subr.bf16.mxu0 0
    %1666 = vmatpush1.bf16.xpose.msra.mxu0 0
    %1667 = vmatprep.subr.bf16.mxu0 0
    %1668 = vmatpush1.bf16.xpose.msra.mxu0 0
    %1669 = vmatprep.subr.bf16.mxu0 0
    %1670 = vmatpush1.bf16.xpose.msra.mxu0 0
    %1671 = vmatprep.subr.bf16.mxu0 0
    %1672 = vmatpush1.bf16.xpose.msra.mxu0 0
    %1673 = vmatprep.subr.bf16.mxu0 0
    %1674 = vmatpush1.bf16.xpose.msra.mxu0 0
    %1675 = vmatprep.subr.bf16.mxu0 0
    %1676 = vmatpush1.bf16.xpose.msra.mxu0 0
    %1677 = vmatprep.subr.bf16.mxu0 0
    %1678 = vmatpush1.bf16.xpose.msra.mxu0 0
    %1679 = vmatprep.subr.bf16.mxu0 0
    %1680 = vmatpush1.bf16.xpose.msra.mxu0 0
    %1681 = vmatprep.subr.bf16.mxu0 0
    %1682 = vmatpush1.bf16.xpose.msra.mxu0 0
    %1683 = vmatprep.subr.bf16.mxu0 0
    %1684 = vmatpush1.bf16.xpose.msra.mxu0 0
    %1685 = vmatprep.subr.bf16.mxu0 0
    %1686 = vmatpush1.bf16.xpose.msra.mxu0 0
    %1687 = vmatprep.subr.bf16.mxu0 0
    %1688 = vmatpush1.bf16.xpose.msra.mxu0 0
    %1689 = vmatprep.mubr.bf16.mxu0 0
    %1690 = vmatmul.mubr.bf16.gmra.mrb[0].mxu0 %v1652
    %v1691 = vpop.f32.mrb[0].mxu0
    %v1692 = vadd.f32 0.0, %v1691
    %v1693 = vpop.f32.mrb[0].mxu0
    %v1694 = vpop.f32.mrb[0].mxu0
    %v1695 = vpop.f32.mrb[0].mxu0
    %1696 = vdwg.mxu0
    %v1697 = vsel %vm1478, %v1692, -inf
    %1698 = vmax.xlane.f32.xlu0 %v1697
    %v1699 = vpop.xlane.xlu0 %1698
    %v1700 = vsub.f32 %v1692, %v1699
    %v1701 = vmul.f32 %v1700, 1.442695
    %v1702 = vpow.pop %v1701
    %v1703 = vsel %vm1478, %v1702, 0.0
    %1704 = vadd.xlane.f32.xlu0 %v1703
    %v1705 = vpop.xlane.xlu0 %1704
    %v1706 = vrcp.pop %v1705
    %v1707 = vpack.c.bf16 %v1702, %v1702
    %1708 = vrot.lane.b32.xlu0 %v1430, 64
    %v1709 = vpop.permute.xlu0 %1708
    %v1712 = vsel %vm1478, %v1707, 0
    %1714 = vmatprep.subr.bf16.mxu0 0
    %1715 = vmatpush1.bf16.msra.mxu0 %v1709
    %1716 = vmatprep.subr.bf16.mxu0 0
    %1717 = vmatpush1.bf16.msra.mxu0 0
    %1718 = vmatprep.subr.bf16.mxu0 0
    %1719 = vmatpush1.bf16.msra.mxu0 0
    %1720 = vmatprep.subr.bf16.mxu0 0
    %1721 = vmatpush1.bf16.msra.mxu0 0
    %1722 = vmatprep.subr.bf16.mxu0 0
    %1723 = vmatpush1.bf16.msra.mxu0 0
    %1724 = vmatprep.subr.bf16.mxu0 0
    %1725 = vmatpush1.bf16.msra.mxu0 0
    %1726 = vmatprep.subr.bf16.mxu0 0
    %1727 = vmatpush1.bf16.msra.mxu0 0
    %1728 = vmatprep.subr.bf16.mxu0 0
    %1729 = vmatpush1.bf16.msra.mxu0 0
    %1730 = vmatprep.subr.bf16.mxu0 0
    %1731 = vmatpush1.bf16.msra.mxu0 0
    %1732 = vmatprep.subr.bf16.mxu0 0
    %1733 = vmatpush1.bf16.msra.mxu0 0
    %1734 = vmatprep.subr.bf16.mxu0 0
    %1735 = vmatpush1.bf16.msra.mxu0 0
    %1736 = vmatprep.subr.bf16.mxu0 0
    %1737 = vmatpush1.bf16.msra.mxu0 0
    %1738 = vmatprep.subr.bf16.mxu0 0
    %1739 = vmatpush1.bf16.msra.mxu0 0
    %1740 = vmatprep.subr.bf16.mxu0 0
    %1741 = vmatpush1.bf16.msra.mxu0 0
    %1742 = vmatprep.subr.bf16.mxu0 0
    %1743 = vmatpush1.bf16.msra.mxu0 0
    %1744 = vmatprep.subr.bf16.mxu0 0
    %1745 = vmatpush1.bf16.msra.mxu0 0
    %1746 = vmatprep.mubr.bf16.mxu0 0
    %1747 = vmatmul.mubr.bf16.gmra.mrb[0].mxu0 %v1712
    %v1748 = vpop.f32.mrb[0].mxu0
    %v1749 = vadd.f32 0.0, %v1748
    %v1750 = vpop.f32.mrb[0].mxu0
    %v1751 = vpop.f32.mrb[0].mxu0
    %v1752 = vpop.f32.mrb[0].mxu0
    %1753 = vdwg.mxu0
    %v1754 = vmul.f32 %v1749, %v1706
    %v1755 = vadd.f32 %v1646, %v1754
    %1756 = vrot.lane.b32.xlu0 %v1427, 104
    %v1757 = vpop.permute.xlu0 %1756
    %1758 = vrot.lane.b32.xlu0 %v1428, 104
    %v1759 = vpop.permute.xlu0 %1758
    %v1761 = vsel %vm287, %v1757, 0
    %v1764 = vsel %vm287, %v1759, 0
    %1766 = vmatprep.subr.bf16.mxu0 0
    %1767 = vmatpush1.bf16.xpose.msra.mxu0 %v1764
    %1768 = vmatprep.subr.bf16.mxu0 0
    %1769 = vmatpush1.bf16.xpose.msra.mxu0 0
    %1770 = vmatprep.subr.bf16.mxu0 0
    %1771 = vmatpush1.bf16.xpose.msra.mxu0 0
    %1772 = vmatprep.subr.bf16.mxu0 0
    %1773 = vmatpush1.bf16.xpose.msra.mxu0 0
    %1774 = vmatprep.subr.bf16.mxu0 0
    %1775 = vmatpush1.bf16.xpose.msra.mxu0 0
    %1776 = vmatprep.subr.bf16.mxu0 0
    %1777 = vmatpush1.bf16.xpose.msra.mxu0 0
    %1778 = vmatprep.subr.bf16.mxu0 0
    %1779 = vmatpush1.bf16.xpose.msra.mxu0 0
    %1780 = vmatprep.subr.bf16.mxu0 0
    %1781 = vmatpush1.bf16.xpose.msra.mxu0 0
    %1782 = vmatprep.subr.bf16.mxu0 0
    %1783 = vmatpush1.bf16.xpose.msra.mxu0 0
    %1784 = vmatprep.subr.bf16.mxu0 0
    %1785 = vmatpush1.bf16.xpose.msra.mxu0 0
    %1786 = vmatprep.subr.bf16.mxu0 0
    %1787 = vmatpush1.bf16.xpose.msra.mxu0 0
    %1788 = vmatprep.subr.bf16.mxu0 0
    %1789 = vmatpush1.bf16.xpose.msra.mxu0 0
    %1790 = vmatprep.subr.bf16.mxu0 0
    %1791 = vmatpush1.bf16.xpose.msra.mxu0 0
    %1792 = vmatprep.subr.bf16.mxu0 0
    %1793 = vmatpush1.bf16.xpose.msra.mxu0 0
    %1794 = vmatprep.subr.bf16.mxu0 0
    %1795 = vmatpush1.bf16.xpose.msra.mxu0 0
    %1796 = vmatprep.subr.bf16.mxu0 0
    %1797 = vmatpush1.bf16.xpose.msra.mxu0 0
    %1798 = vmatprep.mubr.bf16.mxu0 0
    %1799 = vmatmul.mubr.bf16.gmra.mrb[0].mxu0 %v1761
    %v1800 = vpop.f32.mrb[0].mxu0
    %v1801 = vadd.f32 0.0, %v1800
    %v1802 = vpop.f32.mrb[0].mxu0
    %v1803 = vpop.f32.mrb[0].mxu0
    %v1804 = vpop.f32.mrb[0].mxu0
    %1805 = vdwg.mxu0
    %v1806 = vsel %vm1478, %v1801, -inf
    %1807 = vmax.xlane.f32.xlu0 %v1806
    %v1808 = vpop.xlane.xlu0 %1807
    %v1809 = vsub.f32 %v1801, %v1808
    %v1810 = vmul.f32 %v1809, 1.442695
    %v1811 = vpow.pop %v1810
    %v1812 = vsel %vm1478, %v1811, 0.0
    %1813 = vadd.xlane.f32.xlu0 %v1812
    %v1814 = vpop.xlane.xlu0 %1813
    %v1815 = vrcp.pop %v1814
    %v1816 = vpack.c.bf16 %v1811, %v1811
    %1817 = vrot.lane.b32.xlu0 %v1430, 32
    %v1818 = vpop.permute.xlu0 %1817
    %v1821 = vsel %vm1478, %v1816, 0
    %1823 = vmatprep.subr.bf16.mxu0 0
    %1824 = vmatpush1.bf16.msra.mxu0 %v1818
    %1825 = vmatprep.subr.bf16.mxu0 0
    %1826 = vmatpush1.bf16.msra.mxu0 0
    %1827 = vmatprep.subr.bf16.mxu0 0
    %1828 = vmatpush1.bf16.msra.mxu0 0
    %1829 = vmatprep.subr.bf16.mxu0 0
    %1830 = vmatpush1.bf16.msra.mxu0 0
    %1831 = vmatprep.subr.bf16.mxu0 0
    %1832 = vmatpush1.bf16.msra.mxu0 0
    %1833 = vmatprep.subr.bf16.mxu0 0
    %1834 = vmatpush1.bf16.msra.mxu0 0
    %1835 = vmatprep.subr.bf16.mxu0 0
    %1836 = vmatpush1.bf16.msra.mxu0 0
    %1837 = vmatprep.subr.bf16.mxu0 0
    %1838 = vmatpush1.bf16.msra.mxu0 0
    %1839 = vmatprep.subr.bf16.mxu0 0
    %1840 = vmatpush1.bf16.msra.mxu0 0
    %1841 = vmatprep.subr.bf16.mxu0 0
    %1842 = vmatpush1.bf16.msra.mxu0 0
    %1843 = vmatprep.subr.bf16.mxu0 0
    %1844 = vmatpush1.bf16.msra.mxu0 0
    %1845 = vmatprep.subr.bf16.mxu0 0
    %1846 = vmatpush1.bf16.msra.mxu0 0
    %1847 = vmatprep.subr.bf16.mxu0 0
    %1848 = vmatpush1.bf16.msra.mxu0 0
    %1849 = vmatprep.subr.bf16.mxu0 0
    %1850 = vmatpush1.bf16.msra.mxu0 0
    %1851 = vmatprep.subr.bf16.mxu0 0
    %1852 = vmatpush1.bf16.msra.mxu0 0
    %1853 = vmatprep.subr.bf16.mxu0 0
    %1854 = vmatpush1.bf16.msra.mxu0 0
    %1855 = vmatprep.mubr.bf16.mxu0 0
    %1856 = vmatmul.mubr.bf16.gmra.mrb[0].mxu0 %v1821
    %v1857 = vpop.f32.mrb[0].mxu0
    %v1858 = vadd.f32 0.0, %v1857
    %v1859 = vpop.f32.mrb[0].mxu0
    %v1860 = vpop.f32.mrb[0].mxu0
    %v1861 = vpop.f32.mrb[0].mxu0
    %1862 = vdwg.mxu0
    %v1863 = vmul.f32 %v1858, %v1815
    %v1864 = vadd.f32 %v1755, %v1863
    %v1865 = vrot.slane %v1427, 4
    %v1867 = vsel %vm287, %v1865, 0
    %v1870 = vsel %vm287, %v1429, 0
    %1872 = vmatprep.subr.bf16.mxu0 0
    %1873 = vmatpush1.bf16.xpose.msra.mxu0 %v1870
    %1874 = vmatprep.subr.bf16.mxu0 0
    %1875 = vmatpush1.bf16.xpose.msra.mxu0 0
    %1876 = vmatprep.subr.bf16.mxu0 0
    %1877 = vmatpush1.bf16.xpose.msra.mxu0 0
    %1878 = vmatprep.subr.bf16.mxu0 0
    %1879 = vmatpush1.bf16.xpose.msra.mxu0 0
    %1880 = vmatprep.subr.bf16.mxu0 0
    %1881 = vmatpush1.bf16.xpose.msra.mxu0 0
    %1882 = vmatprep.subr.bf16.mxu0 0
    %1883 = vmatpush1.bf16.xpose.msra.mxu0 0
    %1884 = vmatprep.subr.bf16.mxu0 0
    %1885 = vmatpush1.bf16.xpose.msra.mxu0 0
    %1886 = vmatprep.subr.bf16.mxu0 0
    %1887 = vmatpush1.bf16.xpose.msra.mxu0 0
    %1888 = vmatprep.subr.bf16.mxu0 0
    %1889 = vmatpush1.bf16.xpose.msra.mxu0 0
    %1890 = vmatprep.subr.bf16.mxu0 0
    %1891 = vmatpush1.bf16.xpose.msra.mxu0 0
    %1892 = vmatprep.subr.bf16.mxu0 0
    %1893 = vmatpush1.bf16.xpose.msra.mxu0 0
    %1894 = vmatprep.subr.bf16.mxu0 0
    %1895 = vmatpush1.bf16.xpose.msra.mxu0 0
    %1896 = vmatprep.subr.bf16.mxu0 0
    %1897 = vmatpush1.bf16.xpose.msra.mxu0 0
    %1898 = vmatprep.subr.bf16.mxu0 0
    %1899 = vmatpush1.bf16.xpose.msra.mxu0 0
    %1900 = vmatprep.subr.bf16.mxu0 0
    %1901 = vmatpush1.bf16.xpose.msra.mxu0 0
    %1902 = vmatprep.subr.bf16.mxu0 0
    %1903 = vmatpush1.bf16.xpose.msra.mxu0 0
    %1904 = vmatprep.mubr.bf16.mxu0 0
    %1905 = vmatmul.mubr.bf16.gmra.mrb[0].mxu0 %v1867
    %v1906 = vpop.f32.mrb[0].mxu0
    %v1907 = vadd.f32 0.0, %v1906
    %v1908 = vpop.f32.mrb[0].mxu0
    %v1909 = vpop.f32.mrb[0].mxu0
    %v1910 = vpop.f32.mrb[0].mxu0
    %1911 = vdwg.mxu0
    %v1912 = vsel %vm1478, %v1907, -inf
    %1913 = vmax.xlane.f32.xlu0 %v1912
    %v1914 = vpop.xlane.xlu0 %1913
    %v1915 = vsub.f32 %v1907, %v1914
    %v1916 = vmul.f32 %v1915, 1.442695
    %v1917 = vpow.pop %v1916
    %v1918 = vsel %vm1478, %v1917, 0.0
    %1919 = vadd.xlane.f32.xlu0 %v1918
    %v1920 = vpop.xlane.xlu0 %1919
    %v1921 = vrcp.pop %v1920
    %v1922 = vpack.c.bf16 %v1917, %v1917
    %v1924 = vsel %vm1478, %v1922, 0
    %1926 = vmatprep.subr.bf16.mxu0 0
    %1927 = vmatpush1.bf16.msra.mxu0 %v1431
    %1928 = vmatprep.subr.bf16.mxu0 0
    %1929 = vmatpush1.bf16.msra.mxu0 0
    %1930 = vmatprep.subr.bf16.mxu0 0
    %1931 = vmatpush1.bf16.msra.mxu0 0
    %1932 = vmatprep.subr.bf16.mxu0 0
    %1933 = vmatpush1.bf16.msra.mxu0 0
    %1934 = vmatprep.subr.bf16.mxu0 0
    %1935 = vmatpush1.bf16.msra.mxu0 0
    %1936 = vmatprep.subr.bf16.mxu0 0
    %1937 = vmatpush1.bf16.msra.mxu0 0
    %1938 = vmatprep.subr.bf16.mxu0 0
    %1939 = vmatpush1.bf16.msra.mxu0 0
    %1940 = vmatprep.subr.bf16.mxu0 0
    %1941 = vmatpush1.bf16.msra.mxu0 0
    %1942 = vmatprep.subr.bf16.mxu0 0
    %1943 = vmatpush1.bf16.msra.mxu0 0
    %1944 = vmatprep.subr.bf16.mxu0 0
    %1945 = vmatpush1.bf16.msra.mxu0 0
    %1946 = vmatprep.subr.bf16.mxu0 0
    %1947 = vmatpush1.bf16.msra.mxu0 0
    %1948 = vmatprep.subr.bf16.mxu0 0
    %1949 = vmatpush1.bf16.msra.mxu0 0
    %1950 = vmatprep.subr.bf16.mxu0 0
    %1951 = vmatpush1.bf16.msra.mxu0 0
    %1952 = vmatprep.subr.bf16.mxu0 0
    %1953 = vmatpush1.bf16.msra.mxu0 0
    %1954 = vmatprep.subr.bf16.mxu0 0
    %1955 = vmatpush1.bf16.msra.mxu0 0
    %1956 = vmatprep.subr.bf16.mxu0 0
    %1957 = vmatpush1.bf16.msra.mxu0 0
    %1958 = vmatprep.mubr.bf16.mxu0 0
    %1959 = vmatmul.mubr.bf16.gmra.mrb[0].mxu0 %v1924
    %v1960 = vpop.f32.mrb[0].mxu0
    %v1961 = vadd.f32 0.0, %v1960
    %v1962 = vpop.f32.mrb[0].mxu0
    %v1963 = vpop.f32.mrb[0].mxu0
    %v1964 = vpop.f32.mrb[0].mxu0
    %1965 = vdwg.mxu0
    %v1966 = vmul.f32 %v1961, %v1921
    %v1967 = vadd.f32 %v1966, 0.0
    %1968 = vrot.lane.b32.xlu0 %v1865, 120
    %v1969 = vpop.permute.xlu0 %1968
    %1971 = vrot.lane.b32.xlu0 %v1429, 120
    %v1972 = vpop.permute.xlu0 %1971
    %v1974 = vsel %vm287, %v1969, 0
    %v1977 = vsel %vm287, %v1972, 0
    %1979 = vmatprep.subr.bf16.mxu0 0
    %1980 = vmatpush1.bf16.xpose.msra.mxu0 %v1977
    %1981 = vmatprep.subr.bf16.mxu0 0
    %1982 = vmatpush1.bf16.xpose.msra.mxu0 0
    %1983 = vmatprep.subr.bf16.mxu0 0
    %1984 = vmatpush1.bf16.xpose.msra.mxu0 0
    %1985 = vmatprep.subr.bf16.mxu0 0
    %1986 = vmatpush1.bf16.xpose.msra.mxu0 0
    %1987 = vmatprep.subr.bf16.mxu0 0
    %1988 = vmatpush1.bf16.xpose.msra.mxu0 0
    %1989 = vmatprep.subr.bf16.mxu0 0
    %1990 = vmatpush1.bf16.xpose.msra.mxu0 0
    %1991 = vmatprep.subr.bf16.mxu0 0
    %1992 = vmatpush1.bf16.xpose.msra.mxu0 0
    %1993 = vmatprep.subr.bf16.mxu0 0
    %1994 = vmatpush1.bf16.xpose.msra.mxu0 0
    %1995 = vmatprep.subr.bf16.mxu0 0
    %1996 = vmatpush1.bf16.xpose.msra.mxu0 0
    %1997 = vmatprep.subr.bf16.mxu0 0
    %1998 = vmatpush1.bf16.xpose.msra.mxu0 0
    %1999 = vmatprep.subr.bf16.mxu0 0
    %2000 = vmatpush1.bf16.xpose.msra.mxu0 0
    %2001 = vmatprep.subr.bf16.mxu0 0
    %2002 = vmatpush1.bf16.xpose.msra.mxu0 0
    %2003 = vmatprep.subr.bf16.mxu0 0
    %2004 = vmatpush1.bf16.xpose.msra.mxu0 0
    %2005 = vmatprep.subr.bf16.mxu0 0
    %2006 = vmatpush1.bf16.xpose.msra.mxu0 0
    %2007 = vmatprep.subr.bf16.mxu0 0
    %2008 = vmatpush1.bf16.xpose.msra.mxu0 0
    %2009 = vmatprep.subr.bf16.mxu0 0
    %2010 = vmatpush1.bf16.xpose.msra.mxu0 0
    %2011 = vmatprep.mubr.bf16.mxu0 0
    %2012 = vmatmul.mubr.bf16.gmra.mrb[0].mxu0 %v1974
    %v2013 = vpop.f32.mrb[0].mxu0
    %v2014 = vadd.f32 0.0, %v2013
    %v2015 = vpop.f32.mrb[0].mxu0
    %v2016 = vpop.f32.mrb[0].mxu0
    %v2017 = vpop.f32.mrb[0].mxu0
    %2018 = vdwg.mxu0
    %v2019 = vsel %vm1478, %v2014, -inf
    %2020 = vmax.xlane.f32.xlu0 %v2019
    %v2021 = vpop.xlane.xlu0 %2020
    %v2022 = vsub.f32 %v2014, %v2021
    %v2023 = vmul.f32 %v2022, 1.442695
    %v2024 = vpow.pop %v2023
    %v2025 = vsel %vm1478, %v2024, 0.0
    %2026 = vadd.xlane.f32.xlu0 %v2025
    %v2027 = vpop.xlane.xlu0 %2026
    %v2028 = vrcp.pop %v2027
    %v2029 = vpack.c.bf16 %v2024, %v2024
    %2031 = vrot.lane.b32.xlu0 %v1431, 96
    %v2032 = vpop.permute.xlu0 %2031
    %v2035 = vsel %vm1478, %v2029, 0
    %2037 = vmatprep.subr.bf16.mxu0 0
    %2038 = vmatpush1.bf16.msra.mxu0 %v2032
    %2039 = vmatprep.subr.bf16.mxu0 0
    %2040 = vmatpush1.bf16.msra.mxu0 0
    %2041 = vmatprep.subr.bf16.mxu0 0
    %2042 = vmatpush1.bf16.msra.mxu0 0
    %2043 = vmatprep.subr.bf16.mxu0 0
    %2044 = vmatpush1.bf16.msra.mxu0 0
    %2045 = vmatprep.subr.bf16.mxu0 0
    %2046 = vmatpush1.bf16.msra.mxu0 0
    %2047 = vmatprep.subr.bf16.mxu0 0
    %2048 = vmatpush1.bf16.msra.mxu0 0
    %2049 = vmatprep.subr.bf16.mxu0 0
    %2050 = vmatpush1.bf16.msra.mxu0 0
    %2051 = vmatprep.subr.bf16.mxu0 0
    %2052 = vmatpush1.bf16.msra.mxu0 0
    %2053 = vmatprep.subr.bf16.mxu0 0
    %2054 = vmatpush1.bf16.msra.mxu0 0
    %2055 = vmatprep.subr.bf16.mxu0 0
    %2056 = vmatpush1.bf16.msra.mxu0 0
    %2057 = vmatprep.subr.bf16.mxu0 0
    %2058 = vmatpush1.bf16.msra.mxu0 0
    %2059 = vmatprep.subr.bf16.mxu0 0
    %2060 = vmatpush1.bf16.msra.mxu0 0
    %2061 = vmatprep.subr.bf16.mxu0 0
    %2062 = vmatpush1.bf16.msra.mxu0 0
    %2063 = vmatprep.subr.bf16.mxu0 0
    %2064 = vmatpush1.bf16.msra.mxu0 0
    %2065 = vmatprep.subr.bf16.mxu0 0
    %2066 = vmatpush1.bf16.msra.mxu0 0
    %2067 = vmatprep.subr.bf16.mxu0 0
    %2068 = vmatpush1.bf16.msra.mxu0 0
    %2069 = vmatprep.mubr.bf16.mxu0 0
    %2070 = vmatmul.mubr.bf16.gmra.mrb[0].mxu0 %v2035
    %v2071 = vpop.f32.mrb[0].mxu0
    %v2072 = vadd.f32 0.0, %v2071
    %v2073 = vpop.f32.mrb[0].mxu0
    %v2074 = vpop.f32.mrb[0].mxu0
    %v2075 = vpop.f32.mrb[0].mxu0
    %2076 = vdwg.mxu0
    %v2077 = vmul.f32 %v2072, %v2028
    %v2078 = vadd.f32 %v1967, %v2077
    %2079 = vrot.lane.b32.xlu0 %v1865, 112
    %v2080 = vpop.permute.xlu0 %2079
    %2081 = vrot.lane.b32.xlu0 %v1429, 112
    %v2082 = vpop.permute.xlu0 %2081
    %v2084 = vsel %vm287, %v2080, 0
    %v2087 = vsel %vm287, %v2082, 0
    %2089 = vmatprep.subr.bf16.mxu0 0
    %2090 = vmatpush1.bf16.xpose.msra.mxu0 %v2087
    %2091 = vmatprep.subr.bf16.mxu0 0
    %2092 = vmatpush1.bf16.xpose.msra.mxu0 0
    %2093 = vmatprep.subr.bf16.mxu0 0
    %2094 = vmatpush1.bf16.xpose.msra.mxu0 0
    %2095 = vmatprep.subr.bf16.mxu0 0
    %2096 = vmatpush1.bf16.xpose.msra.mxu0 0
    %2097 = vmatprep.subr.bf16.mxu0 0
    %2098 = vmatpush1.bf16.xpose.msra.mxu0 0
    %2099 = vmatprep.subr.bf16.mxu0 0
    %2100 = vmatpush1.bf16.xpose.msra.mxu0 0
    %2101 = vmatprep.subr.bf16.mxu0 0
    %2102 = vmatpush1.bf16.xpose.msra.mxu0 0
    %2103 = vmatprep.subr.bf16.mxu0 0
    %2104 = vmatpush1.bf16.xpose.msra.mxu0 0
    %2105 = vmatprep.subr.bf16.mxu0 0
    %2106 = vmatpush1.bf16.xpose.msra.mxu0 0
    %2107 = vmatprep.subr.bf16.mxu0 0
    %2108 = vmatpush1.bf16.xpose.msra.mxu0 0
    %2109 = vmatprep.subr.bf16.mxu0 0
    %2110 = vmatpush1.bf16.xpose.msra.mxu0 0
    %2111 = vmatprep.subr.bf16.mxu0 0
    %2112 = vmatpush1.bf16.xpose.msra.mxu0 0
    %2113 = vmatprep.subr.bf16.mxu0 0
    %2114 = vmatpush1.bf16.xpose.msra.mxu0 0
    %2115 = vmatprep.subr.bf16.mxu0 0
    %2116 = vmatpush1.bf16.xpose.msra.mxu0 0
    %2117 = vmatprep.subr.bf16.mxu0 0
    %2118 = vmatpush1.bf16.xpose.msra.mxu0 0
    %2119 = vmatprep.subr.bf16.mxu0 0
    %2120 = vmatpush1.bf16.xpose.msra.mxu0 0
    %2121 = vmatprep.mubr.bf16.mxu0 0
    %2122 = vmatmul.mubr.bf16.gmra.mrb[0].mxu0 %v2084
    %v2123 = vpop.f32.mrb[0].mxu0
    %v2124 = vadd.f32 0.0, %v2123
    %v2125 = vpop.f32.mrb[0].mxu0
    %v2126 = vpop.f32.mrb[0].mxu0
    %v2127 = vpop.f32.mrb[0].mxu0
    %2128 = vdwg.mxu0
    %v2129 = vsel %vm1478, %v2124, -inf
    %2130 = vmax.xlane.f32.xlu0 %v2129
    %v2131 = vpop.xlane.xlu0 %2130
    %v2132 = vsub.f32 %v2124, %v2131
    %v2133 = vmul.f32 %v2132, 1.442695
    %v2134 = vpow.pop %v2133
    %v2135 = vsel %vm1478, %v2134, 0.0
    %2136 = vadd.xlane.f32.xlu0 %v2135
    %v2137 = vpop.xlane.xlu0 %2136
    %v2138 = vrcp.pop %v2137
    %v2139 = vpack.c.bf16 %v2134, %v2134
    %2140 = vrot.lane.b32.xlu0 %v1431, 64
    %v2141 = vpop.permute.xlu0 %2140
    %v2144 = vsel %vm1478, %v2139, 0
    %2146 = vmatprep.subr.bf16.mxu0 0
    %2147 = vmatpush1.bf16.msra.mxu0 %v2141
    %2148 = vmatprep.subr.bf16.mxu0 0
    %2149 = vmatpush1.bf16.msra.mxu0 0
    %2150 = vmatprep.subr.bf16.mxu0 0
    %2151 = vmatpush1.bf16.msra.mxu0 0
    %2152 = vmatprep.subr.bf16.mxu0 0
    %2153 = vmatpush1.bf16.msra.mxu0 0
    %2154 = vmatprep.subr.bf16.mxu0 0
    %2155 = vmatpush1.bf16.msra.mxu0 0
    %2156 = vmatprep.subr.bf16.mxu0 0
    %2157 = vmatpush1.bf16.msra.mxu0 0
    %2158 = vmatprep.subr.bf16.mxu0 0
    %2159 = vmatpush1.bf16.msra.mxu0 0
    %2160 = vmatprep.subr.bf16.mxu0 0
    %2161 = vmatpush1.bf16.msra.mxu0 0
    %2162 = vmatprep.subr.bf16.mxu0 0
    %2163 = vmatpush1.bf16.msra.mxu0 0
    %2164 = vmatprep.subr.bf16.mxu0 0
    %2165 = vmatpush1.bf16.msra.mxu0 0
    %2166 = vmatprep.subr.bf16.mxu0 0
    %2167 = vmatpush1.bf16.msra.mxu0 0
    %2168 = vmatprep.subr.bf16.mxu0 0
    %2169 = vmatpush1.bf16.msra.mxu0 0
    %2170 = vmatprep.subr.bf16.mxu0 0
    %2171 = vmatpush1.bf16.msra.mxu0 0
    %2172 = vmatprep.subr.bf16.mxu0 0
    %2173 = vmatpush1.bf16.msra.mxu0 0
    %2174 = vmatprep.subr.bf16.mxu0 0
    %2175 = vmatpush1.bf16.msra.mxu0 0
    %2176 = vmatprep.subr.bf16.mxu0 0
    %2177 = vmatpush1.bf16.msra.mxu0 0
    %2178 = vmatprep.mubr.bf16.mxu0 0
    %2179 = vmatmul.mubr.bf16.gmra.mrb[0].mxu0 %v2144
    %v2180 = vpop.f32.mrb[0].mxu0
    %v2181 = vadd.f32 0.0, %v2180
    %v2182 = vpop.f32.mrb[0].mxu0
    %v2183 = vpop.f32.mrb[0].mxu0
    %v2184 = vpop.f32.mrb[0].mxu0
    %2185 = vdwg.mxu0
    %v2186 = vmul.f32 %v2181, %v2138
    %v2187 = vadd.f32 %v2078, %v2186
    %2188 = vrot.lane.b32.xlu0 %v1865, 104
    %v2189 = vpop.permute.xlu0 %2188
    %2190 = vrot.lane.b32.xlu0 %v1429, 104
    %v2191 = vpop.permute.xlu0 %2190
    %v2193 = vsel %vm287, %v2189, 0
    %v2196 = vsel %vm287, %v2191, 0
    %2198 = vmatprep.subr.bf16.mxu0 0
    %2199 = vmatpush1.bf16.xpose.msra.mxu0 %v2196
    %2200 = vmatprep.subr.bf16.mxu0 0
    %2201 = vmatpush1.bf16.xpose.msra.mxu0 0
    %2202 = vmatprep.subr.bf16.mxu0 0
    %2203 = vmatpush1.bf16.xpose.msra.mxu0 0
    %2204 = vmatprep.subr.bf16.mxu0 0
    %2205 = vmatpush1.bf16.xpose.msra.mxu0 0
    %2206 = vmatprep.subr.bf16.mxu0 0
    %2207 = vmatpush1.bf16.xpose.msra.mxu0 0
    %2208 = vmatprep.subr.bf16.mxu0 0
    %2209 = vmatpush1.bf16.xpose.msra.mxu0 0
    %2210 = vmatprep.subr.bf16.mxu0 0
    %2211 = vmatpush1.bf16.xpose.msra.mxu0 0
    %2212 = vmatprep.subr.bf16.mxu0 0
    %2213 = vmatpush1.bf16.xpose.msra.mxu0 0
    %2214 = vmatprep.subr.bf16.mxu0 0
    %2215 = vmatpush1.bf16.xpose.msra.mxu0 0
    %2216 = vmatprep.subr.bf16.mxu0 0
    %2217 = vmatpush1.bf16.xpose.msra.mxu0 0
    %2218 = vmatprep.subr.bf16.mxu0 0
    %2219 = vmatpush1.bf16.xpose.msra.mxu0 0
    %2220 = vmatprep.subr.bf16.mxu0 0
    %2221 = vmatpush1.bf16.xpose.msra.mxu0 0
    %2222 = vmatprep.subr.bf16.mxu0 0
    %2223 = vmatpush1.bf16.xpose.msra.mxu0 0
    %2224 = vmatprep.subr.bf16.mxu0 0
    %2225 = vmatpush1.bf16.xpose.msra.mxu0 0
    %2226 = vmatprep.subr.bf16.mxu0 0
    %2227 = vmatpush1.bf16.xpose.msra.mxu0 0
    %2228 = vmatprep.subr.bf16.mxu0 0
    %2229 = vmatpush1.bf16.xpose.msra.mxu0 0
    %2230 = vmatprep.mubr.bf16.mxu0 0
    %2231 = vmatmul.mubr.bf16.gmra.mrb[0].mxu0 %v2193
    %v2232 = vpop.f32.mrb[0].mxu0
    %v2233 = vadd.f32 0.0, %v2232
    %v2234 = vpop.f32.mrb[0].mxu0
    %v2235 = vpop.f32.mrb[0].mxu0
    %v2236 = vpop.f32.mrb[0].mxu0
    %2237 = vdwg.mxu0
    %v2238 = vsel %vm1478, %v2233, -inf
    %2239 = vmax.xlane.f32.xlu0 %v2238
    %v2240 = vpop.xlane.xlu0 %2239
    %v2241 = vsub.f32 %v2233, %v2240
    %v2242 = vmul.f32 %v2241, 1.442695
    %v2243 = vpow.pop %v2242
    %v2244 = vsel %vm1478, %v2243, 0.0
    %2245 = vadd.xlane.f32.xlu0 %v2244
    %v2246 = vpop.xlane.xlu0 %2245
    %v2247 = vrcp.pop %v2246
    %v2248 = vpack.c.bf16 %v2243, %v2243
    %2249 = vrot.lane.b32.xlu0 %v1431, 32
    %v2250 = vpop.permute.xlu0 %2249
    %v2253 = vsel %vm1478, %v2248, 0
    %2255 = vmatprep.subr.bf16.mxu0 0
    %2256 = vmatpush1.bf16.msra.mxu0 %v2250
    %2257 = vmatprep.subr.bf16.mxu0 0
    %2258 = vmatpush1.bf16.msra.mxu0 0
    %2259 = vmatprep.subr.bf16.mxu0 0
    %2260 = vmatpush1.bf16.msra.mxu0 0
    %2261 = vmatprep.subr.bf16.mxu0 0
    %2262 = vmatpush1.bf16.msra.mxu0 0
    %2263 = vmatprep.subr.bf16.mxu0 0
    %2264 = vmatpush1.bf16.msra.mxu0 0
    %2265 = vmatprep.subr.bf16.mxu0 0
    %2266 = vmatpush1.bf16.msra.mxu0 0
    %2267 = vmatprep.subr.bf16.mxu0 0
    %2268 = vmatpush1.bf16.msra.mxu0 0
    %2269 = vmatprep.subr.bf16.mxu0 0
    %2270 = vmatpush1.bf16.msra.mxu0 0
    %2271 = vmatprep.subr.bf16.mxu0 0
    %2272 = vmatpush1.bf16.msra.mxu0 0
    %2273 = vmatprep.subr.bf16.mxu0 0
    %2274 = vmatpush1.bf16.msra.mxu0 0
    %2275 = vmatprep.subr.bf16.mxu0 0
    %2276 = vmatpush1.bf16.msra.mxu0 0
    %2277 = vmatprep.subr.bf16.mxu0 0
    %2278 = vmatpush1.bf16.msra.mxu0 0
    %2279 = vmatprep.subr.bf16.mxu0 0
    %2280 = vmatpush1.bf16.msra.mxu0 0
    %2281 = vmatprep.subr.bf16.mxu0 0
    %2282 = vmatpush1.bf16.msra.mxu0 0
    %2283 = vmatprep.subr.bf16.mxu0 0
    %2284 = vmatpush1.bf16.msra.mxu0 0
    %2285 = vmatprep.subr.bf16.mxu0 0
    %2286 = vmatpush1.bf16.msra.mxu0 0
    %2287 = vmatprep.mubr.bf16.mxu0 0
    %2288 = vmatmul.mubr.bf16.gmra.mrb[0].mxu0 %v2253
    %v2289 = vpop.f32.mrb[0].mxu0
    %v2290 = vadd.f32 0.0, %v2289
    %v2291 = vpop.f32.mrb[0].mxu0
    %v2292 = vpop.f32.mrb[0].mxu0
    %v2293 = vpop.f32.mrb[0].mxu0
    %2294 = vdwg.mxu0
    %v2295 = vmul.f32 %v2290, %v2247
    %v2296 = vadd.f32 %v2187, %v2295
    %v2297 = vadd.f32 %v1170, %v1864
    %v2298 = vadd.f32 %v1171, %v2296
    %v2299 = vsel %vm118, %v2297, 0.0
    %2300 = vadd.xlane.f32.xlu0 %v2299
    %v2301 = vpop.xlane.xlu0 %2300
    %v2302 = vsel %vm118, %v2298, 0.0
    %2303 = vadd.xlane.f32.xlu0 %v2302
    %v2304 = vpop.xlane.xlu0 %2303
    %v2305 = vmul.f32 %v2301, %v125
    %v2306 = vmul.f32 %v2304, %v125
    %v2307 = vsub.f32 %v2297, %v2305
    %v2308 = vsub.f32 %v2298, %v2306
    %v2309 = vmul.f32 %v2307, %v2307
    %v2310 = vmul.f32 %v2308, %v2308
    %v2311 = vsel %vm118, %v2309, 0.0
    %2312 = vadd.xlane.f32.xlu0 %v2311
    %v2313 = vpop.xlane.xlu0 %2312
    %v2314 = vsel %vm118, %v2310, 0.0
    %2315 = vadd.xlane.f32.xlu0 %v2314
    %v2316 = vpop.xlane.xlu0 %2315
    %v2317 = vmul.f32 %v2313, %v125
    %v2318 = vmul.f32 %v2316, %v125
    %v2319 = vadd.f32 %v2317, 1e-05
    %v2320 = vadd.f32 %v2318, 1e-05
    %v2321 = vrsqrt.pop %v2319
    %v2322 = vrsqrt.pop %v2320
    %v2323 = vmul.f32 %v2307, %v2321
    %v2324 = vmul.f32 %v2308, %v2322
    %v2325 = vlaneseq
    %v2326 = vshrl.u32 %v2325, 7
    %v2327 = vsub.s32 0, %v2326
    %v2328 = vrot.slane %v76, %v2327
    %v2329 = vmul.f32 %v2323, %v2328
    %v2330 = vmul.f32 %v2324, %v2328
    %v2331 = vlaneseq
    %v2332 = vshrl.u32 %v2331, 7
    %v2333 = vsub.s32 0, %v2332
    %v2334 = vrot.slane %v77, %v2333
    %v2335 = vadd.f32 %v2329, %v2334
    %v2336 = vadd.f32 %v2330, %v2334
    %v2337 = vpack.c.bf16 %v2336, %v2335
    %v2338 = vlaneseq
    %v2339 = vshrl.u32 %v2338, 7
    %v2340 = vsub.s32 0, %v2339
    %v2341 = vrot.slane %v79, %v2340
    %v2346 = vunpack.c.l.b16 %v100
    %v2347 = vunpack.c.l.b16 %v101
    %v2348 = vunpack.c.l.b16 %v102
    %v2349 = vunpack.c.l.b16 %v103
    %v2350 = vpack.c.b16 %v2347, %v2346
    %v2351 = vpack.c.b16 %v2349, %v2348
    %v2355 = vsel %vm118, %v2337, 0
    %2357 = vmatprep.subr.bf16.mxu0 0
    %2358 = vmatpush1.bf16.msra.mxu0 %v2350
    %2359 = vmatprep.subr.bf16.mxu0 0
    %2360 = vmatpush1.bf16.msra.mxu0 %v2351
    %2361 = vmatprep.subr.bf16.mxu0 0
    %2362 = vmatpush1.bf16.msra.mxu0 0
    %2363 = vmatprep.subr.bf16.mxu0 0
    %2364 = vmatpush1.bf16.msra.mxu0 0
    %2365 = vmatprep.subr.bf16.mxu0 0
    %2366 = vmatpush1.bf16.msra.mxu0 0
    %2367 = vmatprep.subr.bf16.mxu0 0
    %2368 = vmatpush1.bf16.msra.mxu0 0
    %2369 = vmatprep.subr.bf16.mxu0 0
    %2370 = vmatpush1.bf16.msra.mxu0 0
    %2371 = vmatprep.subr.bf16.mxu0 0
    %2372 = vmatpush1.bf16.msra.mxu0 0
    %2373 = vmatprep.subr.bf16.mxu0 0
    %2374 = vmatpush1.bf16.msra.mxu0 0
    %2375 = vmatprep.subr.bf16.mxu0 0
    %2376 = vmatpush1.bf16.msra.mxu0 0
    %2377 = vmatprep.subr.bf16.mxu0 0
    %2378 = vmatpush1.bf16.msra.mxu0 0
    %2379 = vmatprep.subr.bf16.mxu0 0
    %2380 = vmatpush1.bf16.msra.mxu0 0
    %2381 = vmatprep.subr.bf16.mxu0 0
    %2382 = vmatpush1.bf16.msra.mxu0 0
    %2383 = vmatprep.subr.bf16.mxu0 0
    %2384 = vmatpush1.bf16.msra.mxu0 0
    %2385 = vmatprep.subr.bf16.mxu0 0
    %2386 = vmatpush1.bf16.msra.mxu0 0
    %2387 = vmatprep.subr.bf16.mxu0 0
    %2388 = vmatpush1.bf16.msra.mxu0 0
    %2389 = vmatprep.mubr.bf16.mxu0 0
    %2390 = vmatmul.mubr.bf16.gmra.mrb[0].mxu0 %v2355
    %v2391 = vpop.f32.mrb[0].mxu0
    %v2392 = vadd.f32 %v2341, %v2391
    %v2393 = vpop.f32.mrb[0].mxu0
    %v2394 = vpop.f32.mrb[0].mxu0
    %v2395 = vadd.f32 %v2341, %v2394
    %v2396 = vpop.f32.mrb[0].mxu0
    %2397 = vdwg.mxu0
    %v2398 = vmax.f32 %v2392, 0.0
    %v2399 = vmax.f32 %v2395, 0.0
    %v2400 = vpack.c.bf16 %v2399, %v2398
    %v2409 = vunpack.c.l.b16 %v104
    %v2410 = vunpack.c.l.b16 %v105
    %v2411 = vunpack.c.l.b16 %v106
    %v2412 = vunpack.c.l.b16 %v107
    %v2413 = vunpack.c.l.b16 %v108
    %v2414 = vunpack.c.l.b16 %v109
    %v2415 = vunpack.c.l.b16 %v110
    %v2416 = vunpack.c.l.b16 %v111
    %v2417 = vpack.c.b16 %v2410, %v2409
    %v2418 = vpack.c.b16 %v2412, %v2411
    %v2419 = vpack.c.b16 %v2414, %v2413
    %v2420 = vpack.c.b16 %v2416, %v2415
    %vm2425 = vcmask 523264
    %v2427 = vsel %vm2425, %v2400, 0
    %2429 = vmatprep.subr.bf16.mxu0 0
    %2430 = vmatpush1.bf16.msra.mxu0 %v2417
    %2431 = vmatprep.subr.bf16.mxu0 0
    %2432 = vmatpush1.bf16.msra.mxu0 %v2418
    %2433 = vmatprep.subr.bf16.mxu0 0
    %2434 = vmatpush1.bf16.msra.mxu0 %v2419
    %2435 = vmatprep.subr.bf16.mxu0 0
    %2436 = vmatpush1.bf16.msra.mxu0 %v2420
    %2437 = vmatprep.subr.bf16.mxu0 0
    %2438 = vmatpush1.bf16.msra.mxu0 0
    %2439 = vmatprep.subr.bf16.mxu0 0
    %2440 = vmatpush1.bf16.msra.mxu0 0
    %2441 = vmatprep.subr.bf16.mxu0 0
    %2442 = vmatpush1.bf16.msra.mxu0 0
    %2443 = vmatprep.subr.bf16.mxu0 0
    %2444 = vmatpush1.bf16.msra.mxu0 0
    %2445 = vmatprep.subr.bf16.mxu0 0
    %2446 = vmatpush1.bf16.msra.mxu0 0
    %2447 = vmatprep.subr.bf16.mxu0 0
    %2448 = vmatpush1.bf16.msra.mxu0 0
    %2449 = vmatprep.subr.bf16.mxu0 0
    %2450 = vmatpush1.bf16.msra.mxu0 0
    %2451 = vmatprep.subr.bf16.mxu0 0
    %2452 = vmatpush1.bf16.msra.mxu0 0
    %2453 = vmatprep.subr.bf16.mxu0 0
    %2454 = vmatpush1.bf16.msra.mxu0 0
    %2455 = vmatprep.subr.bf16.mxu0 0
    %2456 = vmatpush1.bf16.msra.mxu0 0
    %2457 = vmatprep.subr.bf16.mxu0 0
    %2458 = vmatpush1.bf16.msra.mxu0 0
    %2459 = vmatprep.subr.bf16.mxu0 0
    %2460 = vmatpush1.bf16.msra.mxu0 0
    %2461 = vmatprep.mubr.bf16.mxu0 0
    %2462 = vmatmul.mubr.bf16.gmra.mrb[0].mxu0 %v2427
    %v2463 = vpop.f32.mrb[0].mxu0
    %v2464 = vadd.f32 0.0, %v2463
    %v2465 = vpop.f32.mrb[0].mxu0
    %v2466 = vpop.f32.mrb[0].mxu0
    %v2467 = vadd.f32 0.0, %v2466
    %v2468 = vpop.f32.mrb[0].mxu0
    %2469 = vdwg.mxu0
    %v2470 = vadd.f32 %v2297, %v2464
    %v2471 = vadd.f32 %v2298, %v2467
    %v2472 = vlaneseq
    %v2473 = vshrl.u32 %v2472, 7
    %v2474 = vsub.s32 0, %v2473
    %v2475 = vrot.slane %v78, %v2474
    %v2476 = vadd.f32 %v2470, %v2475
    %v2477 = vadd.f32 %v2471, %v2475
    %2478 = vst.msk [vmem:[#allocation10] sm:$0xff] %vm118, %v2476
    %2479 = vst.msk [vmem:[#allocation10 + $0x8] sm:$0xff] %vm118, %v2477
    // Predicated region
    $region34: #{tpu_custom_call.1} parent=1 // pred_check
      _
    $region35: #{tpu_custom_call.1} parent=1 // pred_check_branch
      %2481 = sbr.rel (0) target = $region37
    $region36: #{tpu_custom_call.1} parent=1 // pred_region
      %s2483 = ssub.s32 256, 256
      %2484 = vsyncadd [#allocation4], %s2483
      %s2485 = sshll.u32 [#allocation10], 4
      %s2486 = int_to_ptr.vmem [resolvable:$true] %s2485
      %2491 = dma.vmem_to_hbm [thread:$0]  %s2486, 256, %s4, [#allocation4], 128, 128, 8
    $region37: #{tpu_custom_call.1} parent=1 // pred_fallthru
      _
    // Predicated region
    $region38: #{tpu_custom_call.1} parent=1 // pred_check
      _
    $region39: #{tpu_custom_call.1} parent=1 // pred_check_branch
      %2493 = sbr.rel (0) target = $region41
    $region40: #{tpu_custom_call.1} parent=1 // pred_region
      %2494 = dma.done [#allocation4], 256
    $region41: #{tpu_custom_call.1} parent=1 // pred_fallthru
      _
    %2495 = vsyncpa [#allocation3], 1
    %2496 = vsyncpa [#allocation6], 1
    %2497 = vsyncpa [#allocation9], 1
    %2498 = vsyncpa [#allocation4], 1

</llo_original>
